<compile_context>
chip_gen: v5e
topology: v5e:2x2
jax: 0.10.0
libtpu: 0.0.40
codegen_flags: <defaults>
</compile_context>

<pallas_src>
from functools import partial

import jax
import jax.numpy as jnp
from jax.experimental import pallas as pl
from jax.experimental.pallas import tpu as pltpu

# ----------------------------------------------------------------------------- config (H)
N_CHANNELS = 4
NDF = 8
RECONSTRUCTION_WEIGHT = 1.0
CODEBOOK_WEIGHT = 1.0
DISENTANGLEMENT_RATIO = 0.5
DISC_WEIGHT = 0.5
DISC_START_STEP = 0

_LANE = 128


def _round_up(x, m):
    return ((x + m - 1) // m) * m


def adopt_weight(weight, global_step, threshold=0, value=0.0):
    if global_step < threshold:
        weight = value
    return weight


# ============================================================================
# Pallas kernel 1: weighted cross-entropy, lane-dense [C, T] layout
#   rec_loss = sum_i w[argmax(inputs_i)] * (-log_softmax(recon_i)[argmax(inputs_i)])
#              / sum_i w[argmax(inputs_i)]
# ============================================================================
def _ce_kernel(recon_ref, inp_ref, w_ref, num_ref, den_ref, acc_num, acc_den, *, n_valid):
    s = pl.program_id(1)

    recon = recon_ref[0].astype(jnp.float32)        # (C, T)  C on sublanes, T on lanes
    inp = inp_ref[0].astype(jnp.float32)            # (C, T)
    w = w_ref[...]                                  # (C, 1)
    C, T = inp.shape

    # target = argmax over channel (sublane) axis, first-max like torch.argmax
    iota_c = jax.lax.broadcasted_iota(jnp.int32, (C, T), 0)
    maxv = jnp.max(inp, axis=0, keepdims=True)
    idx = jnp.min(jnp.where(inp == maxv, iota_c, C), axis=0, keepdims=True)   # (1, T)
    onehot = (iota_c == idx).astype(jnp.float32)                              # (C, T)

    # log-softmax of reconstructions along channel axis
    m = jnp.max(recon, axis=0, keepdims=True)
    z = recon - m
    lse = jnp.log(jnp.sum(jnp.exp(z), axis=0, keepdims=True))
    nll = jnp.sum((lse - z) * onehot, axis=0, keepdims=True)                  # (1, T)

    wt = jnp.sum(w * onehot, axis=0, keepdims=True)                           # (1, T)

    # mask columns past the true spatial size (padded lanes)
    col = jax.lax.broadcasted_iota(jnp.int32, (1, T), 1) + s * T
    wt = wt * (col < n_valid).astype(jnp.float32)

    @pl.when(s == 0)
    def _():
        acc_num[...] = jnp.zeros_like(acc_num)
        acc_den[...] = jnp.zeros_like(acc_den)

    acc_num[...] += wt * nll
    acc_den[...] += wt

    @pl.when(s == pl.num_programs(1) - 1)
    def _():
        num_ref[...] = jnp.zeros_like(num_ref) + jnp.sum(acc_num[...])
        den_ref[...] = jnp.zeros_like(den_ref) + jnp.sum(acc_den[...])


def weighted_cross_entropy(recon_bcs, inp_bcs, class_weights):
    # recon_bcs / inp_bcs: [B, C, S] (free reshape from NCDHW -- no transpose)
    B, C, S = recon_bcs.shape
    T = min(_round_up(S, 512), 16384)           # big lane-dense tiles, multiple of 128
    S_pad = _round_up(S, T)
    if S_pad != S:
        pad = ((0, 0), (0, 0), (0, S_pad - S))
        recon_bcs = jnp.pad(recon_bcs, pad)
        inp_bcs = jnp.pad(inp_bcs, pad)
    grid = (B, S_pad // T)
    num, den = pl.pallas_call(
        partial(_ce_kernel, n_valid=S),
        out_shape=(jax.ShapeDtypeStruct((B, 8, _LANE), jnp.float32),
                   jax.ShapeDtypeStruct((B, 8, _LANE), jnp.float32)),
        grid_spec=pltpu.PrefetchScalarGridSpec(
            num_scalar_prefetch=0,
            grid=grid,
            in_specs=[pl.BlockSpec((1, C, T), lambda b, s: (b, 0, s)),
                      pl.BlockSpec((1, C, T), lambda b, s: (b, 0, s)),
                      pl.BlockSpec((C, 1), lambda b, s: (0, 0))],
            out_specs=(pl.BlockSpec((1, 8, _LANE), lambda b, s: (b, 0, 0)),
                       pl.BlockSpec((1, 8, _LANE), lambda b, s: (b, 0, 0))),
            scratch_shapes=[pltpu.VMEM((1, T), jnp.float32),
                            pltpu.VMEM((1, T), jnp.float32)]),
        compiler_params=pltpu.CompilerParams(
            dimension_semantics=("parallel", "arbitrary")),
    )(recon_bcs, inp_bcs, class_weights.reshape(C, 1).astype(jnp.float32))
    return jnp.sum(num[:, 0, 0]) / jnp.sum(den[:, 0, 0])


# ============================================================================
# Pallas kernel 2: flipped matmul  out[Cout, M_tile] = W[Cout, K] @ A[K, M_tile] + b
#   (+ optional fused LeakyReLU).  M (spatial) is lane-dense, bf16 MXU inputs.
# ============================================================================
def _matmul_bias_kernel(w_ref, a_ref, b_ref, o_ref, *, neg_slope):
    acc = jnp.dot(w_ref[...], a_ref[...], preferred_element_type=jnp.float32)
    acc = acc + b_ref[...]                       # (Cout, 1) broadcast along lanes
    if neg_slope is not None:
        acc = jnp.where(acc >= 0.0, acc, neg_slope * acc)
    o_ref[...] = acc


def pallas_matmul_bias(wmat, patches, bias, neg_slope=None, tile_m=512):
    cout, K = wmat.shape
    K2, M = patches.shape
    assert K == K2
    tm = min(tile_m, _round_up(M, _LANE))        # lane-dense tile, no whole-array fallback
    M_pad = _round_up(M, tm)
    if M_pad != M:
        patches = jnp.pad(patches, ((0, 0), (0, M_pad - M)))
    grid = (M_pad // tm,)
    out = pl.pallas_call(
        partial(_matmul_bias_kernel, neg_slope=neg_slope),
        out_shape=jax.ShapeDtypeStruct((cout, M_pad), jnp.float32),
        grid_spec=pltpu.PrefetchScalarGridSpec(
            num_scalar_prefetch=0,
            grid=grid,
            in_specs=[pl.BlockSpec((cout, K), lambda i: (0, 0)),
                      pl.BlockSpec((K, tm), lambda i: (0, i)),
                      pl.BlockSpec((cout, 1), lambda i: (0, 0))],
            out_specs=pl.BlockSpec((cout, tm), lambda i: (0, i))),
        compiler_params=pltpu.CompilerParams(dimension_semantics=("parallel",)),
    )(wmat.astype(jnp.bfloat16), patches.astype(jnp.bfloat16),
      bias.reshape(cout, 1).astype(jnp.float32))
    return out[:, :M]


# ============================================================================
# Conv3d via im2col (glue) + flipped Pallas matmul.  Patches are built directly in
# [K, M] layout with K = (Cin, kd, kh, kw) and M = (B, oD, oH, oW) so the matmul
# output [Cout, M] reshapes straight into channel-major [Cout, B, oD, oH, oW].
# ============================================================================
def _im2col_km(x, k, stride, pad, channel_axis):
    # TODO(synk): fuse patch extraction into the conv kernel via manual DMAs over the
    #             (kd,kh,kw) offsets (memory_space=pl.ANY) to avoid this 64x HBM-expanded
    #             intermediate; kept as XLA glue for robustness.
    x = jnp.pad(x, ((0, 0), (0, 0), (pad, pad), (pad, pad), (pad, pad)))
    A0, A1, D, H, W = x.shape
    oD = (D - k) // stride + 1
    oH = (H - k) // stride + 1
    oW = (W - k) // stride + 1
    kk = jnp.arange(k)
    di = jnp.arange(oD) * stride
    hi = jnp.arange(oH) * stride
    wi = jnp.arange(oW) * stride
    g = x[:, :, di[:, None] + kk[None, :]]                 # [A0,A1,oD,k,H,W]
    g = g[:, :, :, :, hi[:, None] + kk[None, :]]           # [A0,A1,oD,k,oH,k,W]
    g = g[..., wi[:, None] + kk[None, :]]                  # [A0,A1,oD,k,oH,k,oW,k]
    if channel_axis == 1:                                   # x was [B, C, D, H, W]
        p = jnp.transpose(g, (1, 3, 5, 7, 0, 2, 4, 6))      # [C,kd,kh,kw,B,oD,oH,oW]
        C, B = A1, A0
    else:                                                   # x was [C, B, D, H, W]
        p = jnp.transpose(g, (0, 3, 5, 7, 1, 2, 4, 6))
        C, B = A0, A1
    return p.reshape(C * k * k * k, B * oD * oH * oW), (B, oD, oH, oW)


def conv3d_pallas(x, w, b, stride, pad, channel_axis, neg_slope=None):
    # w: [Cout, Cin, k, k, k] (PyTorch layout), b: [Cout]
    cout = w.shape[0]
    k = w.shape[-1]
    patches, (B, oD, oH, oW) = _im2col_km(x, k, stride, pad, channel_axis)
    wmat = w.reshape(cout, -1)         # K ordering (Cin, kd, kh, kw) matches patches
    out = pallas_matmul_bias(wmat, patches, b, neg_slope)
    return out.reshape(cout, B, oD, oH, oW)


def _instance_norm_cm(y, eps=1e-5):
    # y: [C, B, D, H, W]; InstanceNorm3d (affine=False): normalize over spatial per (C, B)
    C, B = y.shape[:2]
    yf = y.reshape(C, B, -1)
    mean = jnp.mean(yf, axis=-1, keepdims=True)
    var = jnp.var(yf, axis=-1, keepdims=True)
    return ((yf - mean) * jax.lax.rsqrt(var + eps)).reshape(y.shape)


def _leaky_relu(x, slope=0.2):
    return jnp.where(x >= 0.0, x, slope * x)


# ============================================================================
# SpectralDiscriminator3D (input_nc=N_CHANNELS, ndf=NDF, n_layers=3)
# ============================================================================
def spectral_normalize(w, key, n_iter=50, eps=1e-12):
    """Fold spectral norm into the weight (power iteration to convergence).
    Note: PyTorch spectral_norm does one iteration per training step with persistent
    u/v; folding at init is equivalent for a fixed weight (inference/eval)."""
    cout = w.shape[0]
    wm = w.reshape(cout, -1)
    u = jax.random.normal(key, (cout,), jnp.float32)
    u = u / (jnp.linalg.norm(u) + eps)
    v = None
    for _ in range(n_iter):
        v = wm.T @ u
        v = v / (jnp.linalg.norm(v) + eps)
        u = wm @ v
        u = u / (jnp.linalg.norm(u) + eps)
    sigma = u @ (wm @ v)
    return w / sigma


def init_discriminator_params(key, input_nc, ndf):
    shapes = [
        (ndf, input_nc, 4, 4, 4),        # conv1, stride 2
        (ndf * 2, ndf, 4, 4, 4),         # conv2, stride 2 (+ InstanceNorm)
        (ndf * 4, ndf * 2, 4, 4, 4),     # conv3, stride 2 (+ InstanceNorm)
        (1, ndf * 4, 4, 4, 4),           # conv4, stride 1
    ]
    params = {}
    keys = jax.random.split(key, 2 * len(shapes))
    for n, shp in enumerate(shapes):
        w = 0.02 * jax.random.normal(keys[2 * n], shp, jnp.float32)   # N(0, 0.02), bias 0
        w = spectral_normalize(w, keys[2 * n + 1])
        params[f"w{n + 1}"] = w
        params[f"b{n + 1}"] = jnp.zeros((shp[0],), jnp.float32)
    return params


def discriminator_forward(params, x_ncdhw):
    # layer 1: SN-conv s2 p1 + fused LeakyReLU(0.2); consumes NCDHW directly.
    x = conv3d_pallas(x_ncdhw, params["w1"], params["b1"], stride=2, pad=1,
                      channel_axis=1, neg_slope=0.2)
    # layers 2-3: SN-conv s2 p1 -> InstanceNorm3d -> LeakyReLU(0.2), channel-major layout.
    for n in (2, 3):
        y = conv3d_pallas(x, params[f"w{n}"], params[f"b{n}"], stride=2, pad=1,
                          channel_axis=0, neg_slope=None)
        x = _leaky_relu(_instance_norm_cm(y))
    # layer 4: SN-conv s1 p1, no norm / no activation -> patch logits [1, B, D', H', W']
    return conv3d_pallas(x, params["w4"], params["b4"], stride=1, pad=1,
                         channel_axis=0, neg_slope=None)


# ============================================================================
# VQLossDualCodebook.forward
# ============================================================================
def vq_loss_dual_codebook_forward(disc_params, class_weights,
                                  codebook_loss_style, codebook_loss_struct,
                                  inputs, reconstructions, disentangle_loss,
                                  optimizer_idx, global_step):
    B, C, D, H, W = reconstructions.shape
    S = D * H * W
    disc_weight = adopt_weight(DISC_WEIGHT, global_step, threshold=DISC_START_STEP)

    if optimizer_idx == 0:
        # weighted cross-entropy reconstruction loss (Pallas kernel, no transposes)
        ce = weighted_cross_entropy(reconstructions.reshape(B, C, S),
                                    inputs.reshape(B, C, S), class_weights)
        rec_loss = ce * RECONSTRUCTION_WEIGHT

        binary_recon_loss = 0.0                       # binary_out / binary_target = None
        style_loss = jnp.sum(codebook_loss_style[:3]) * CODEBOOK_WEIGHT
        struct_loss = jnp.sum(codebook_loss_struct[:3]) * CODEBOOK_WEIGHT
        biome_feat_loss = 0.0                         # biome_feat = None
        disent_loss = DISENTANGLEMENT_RATIO * disentangle_loss

        # generator adversarial loss (disc_gumbel=False, disc_argmax_ste=False)
        logits_fake = discriminator_forward(disc_params, reconstructions)
        g_loss = -jnp.mean(logits_fake)               # hinge_gen_loss

        disc_adaptive_weight = 1.0                    # disc_adaptive_weight=False

        struct_consistency = 0.0
        cycle_consistency_loss_term = 0.0

        # NOTE: matches the PyTorch reference exactly -- reconstruction_weight is applied
        # both inside rec_loss and again in `loss`, and g_loss is reported but NOT added
        # to `loss` (same as the reference's `loss = rec_loss * self.reconstruction_weight + ...`).
        loss = (rec_loss * RECONSTRUCTION_WEIGHT + style_loss + struct_loss
                + biome_feat_loss + disent_loss + binary_recon_loss
                + struct_consistency + cycle_consistency_loss_term)
        return {
            "loss": loss, "rec_loss": rec_loss, "binary_rec_loss": binary_recon_loss,
            "style_loss": style_loss, "struct_loss": struct_loss,
            "biome_feat_loss": biome_feat_loss, "disent_loss": disent_loss,
            "struct_consistency_loss": struct_consistency, "g_loss": g_loss,
            "disc_weight": disc_weight, "disc_adaptive_weight": disc_adaptive_weight,
            "codebook_usage_style": codebook_loss_style[3],
            "codebook_usage_struct": codebook_loss_struct[3],
            "cycle_consistency_loss": cycle_consistency_loss_term,
        }

    elif optimizer_idx == 1:
        # one discriminator pass over concat([real, fake]) -> half the pallas_calls
        both = jnp.concatenate([inputs, reconstructions], axis=0)
        logits = discriminator_forward(disc_params, both)      # [1, 2B, d, h, w]
        logits_real = logits[:, :B]
        logits_fake = logits[:, B:]
        loss_real = jnp.mean(jax.nn.relu(1.0 - logits_real))
        loss_fake = jnp.mean(jax.nn.relu(1.0 + logits_fake))
        d_loss = 0.5 * (loss_real + loss_fake) * disc_weight
        return {
            "d_loss": d_loss,
            "logits_real": jnp.mean(logits_real),
            "logits_fake": jnp.mean(logits_fake),
            "disc_weight": disc_weight,
        }


# ============================================================================
if __name__ == "__main__":
    key = jax.random.PRNGKey(0)
    k_inp, k_rec, k_disc = jax.random.split(key, 3)

    B, C, D, H, W = 2, N_CHANNELS, 16, 16, 16

    # inputs: one-hot block volumes in NCDHW
    block_ids = jax.random.randint(k_inp, (B, D, H, W), 0, C)
    inputs = jnp.transpose(jax.nn.one_hot(block_ids, C, dtype=jnp.float32),
                           (0, 4, 1, 2, 3))
    reconstructions = jax.random.normal(k_rec, (B, C, D, H, W), jnp.float32)

    codebook_loss_style = jnp.array([0.10, 0.20, 0.05, 0.90], jnp.float32)
    codebook_loss_struct = jnp.array([0.15, 0.10, 0.02, 0.80], jnp.float32)
    disentangle_loss = jnp.float32(0.3)

    class_weights = jnp.ones((C,), jnp.float32)   # uniform (block_weighting=False)
    disc_params = init_discriminator_params(k_disc, input_nc=C, ndf=NDF)

    out_gen = vq_loss_dual_codebook_forward(
        disc_params, class_weights, codebook_loss_style, codebook_loss_struct,
        inputs, reconstructions, disentangle_loss, optimizer_idx=0, global_step=5000)
    out_disc = vq_loss_dual_codebook_forward(
        disc_params, class_weights, codebook_loss_style, codebook_loss_struct,
        inputs, reconstructions, disentangle_loss, optimizer_idx=1, global_step=5000)

    jax.block_until_ready(out_gen["loss"])
    jax.block_until_ready(out_disc["d_loss"])
    print("KERNEL_OK")
</pallas_src>

<mosaic_0001>
module attributes {stable_mosaic.version = 11 : i64} {
  func.func @_ce_kernel(%arg0: i32, %arg1: i32, %arg2: memref<1x4x4096xf32, #tpu.memory_space<vmem>>, %arg3: memref<1x4x4096xf32, #tpu.memory_space<vmem>>, %arg4: memref<4x1xf32, #tpu.memory_space<vmem>>, %arg5: memref<1x8x128xf32, #tpu.memory_space<vmem>>, %arg6: memref<1x8x128xf32, #tpu.memory_space<vmem>>, %arg7: memref<1x4096xf32, #tpu.memory_space<vmem>>, %arg8: memref<1x4096xf32, #tpu.memory_space<vmem>>) attributes {dimension_semantics = [#tpu.dimension_semantics<parallel>, #tpu.dimension_semantics<arbitrary>], iteration_bounds = array<i64: 2, 1>, scalar_prefetch = 0 : i64, scratch_operands = 2 : i64, tpu.core_type = #tpu.core_type<tc>, window_params = [{transform_indices = @transform_0, window_bounds = array<i64: 1, 4, 4096>}, {transform_indices = @transform_1, window_bounds = array<i64: 1, 4, 4096>}, {pipeline_mode = #tpu.pipeline_mode<synchronous>, transform_indices = @transform_2, window_bounds = array<i64: 4, 1>}, {transform_indices = @transform_3, window_bounds = array<i64: 1, 8, 128>}, {transform_indices = @transform_4, window_bounds = array<i64: 1, 8, 128>}]} {
    %c0 = arith.constant 0 : index
    %c0_0 = arith.constant 0 : index
    %c0_1 = arith.constant 0 : index
    %0 = vector.load %arg2[%c0, %c0_0, %c0_1] : memref<1x4x4096xf32, #tpu.memory_space<vmem>>, vector<1x4x4096xf32>
    %1 = vector.shape_cast %0 : vector<1x4x4096xf32> to vector<4x4096xf32>
    %c0_2 = arith.constant 0 : index
    %c0_3 = arith.constant 0 : index
    %c0_4 = arith.constant 0 : index
    %2 = vector.load %arg3[%c0_2, %c0_3, %c0_4] : memref<1x4x4096xf32, #tpu.memory_space<vmem>>, vector<1x4x4096xf32>
    %3 = vector.shape_cast %2 : vector<1x4x4096xf32> to vector<4x4096xf32>
    %c0_5 = arith.constant 0 : index
    %c0_6 = arith.constant 0 : index
    %4 = vector.load %arg4[%c0_5, %c0_6] : memref<4x1xf32, #tpu.memory_space<vmem>>, vector<4x1xf32>
    %5 = tpu.iota {dimensions = array<i32: 0>} : vector<4x4096xi32>
    %cst = arith.constant dense<0xFF800000> : vector<4096xf32>
    %6 = vector.multi_reduction <maximumf>, %3, %cst [0] : vector<4x4096xf32> to vector<4096xf32>
    %7 = vector.shape_cast %6 : vector<4096xf32> to vector<1x4096xf32>
    %8 = vector.broadcast %7 : vector<1x4096xf32> to vector<4x4096xf32>
    %9 = arith.cmpf oeq, %3, %8 : vector<4x4096xf32>
    %c4_i32 = arith.constant 4 : i32
    %10 = vector.broadcast %c4_i32 : i32 to vector<4x4096xi32>
    %11 = arith.select %9, %5, %10 : vector<4x4096xi1>, vector<4x4096xi32>
    %cst_7 = arith.constant dense<2147483647> : vector<4096xi32>
    %12 = vector.multi_reduction <minsi>, %11, %cst_7 [0] : vector<4x4096xi32> to vector<4096xi32>
    %13 = vector.shape_cast %12 : vector<4096xi32> to vector<1x4096xi32>
    %14 = vector.broadcast %13 : vector<1x4096xi32> to vector<4x4096xi32>
    %15 = arith.cmpi eq, %5, %14 : vector<4x4096xi32>
    %16 = arith.extui %15 : vector<4x4096xi1> to vector<4x4096xi32>
    %17 = arith.sitofp %16 : vector<4x4096xi32> to vector<4x4096xf32>
    %cst_8 = arith.constant dense<0xFF800000> : vector<4096xf32>
    %18 = vector.multi_reduction <maximumf>, %1, %cst_8 [0] : vector<4x4096xf32> to vector<4096xf32>
    %19 = vector.shape_cast %18 : vector<4096xf32> to vector<1x4096xf32>
    %20 = vector.broadcast %19 : vector<1x4096xf32> to vector<4x4096xf32>
    %21 = arith.subf %1, %20 : vector<4x4096xf32>
    %22 = math.exp %21 : vector<4x4096xf32>
    %cst_9 = arith.constant dense<0.000000e+00> : vector<4096xf32>
    %23 = vector.multi_reduction <add>, %22, %cst_9 [0] : vector<4x4096xf32> to vector<4096xf32>
    %24 = vector.shape_cast %23 : vector<4096xf32> to vector<1x4096xf32>
    %25 = math.log %24 : vector<1x4096xf32>
    %26 = vector.broadcast %25 : vector<1x4096xf32> to vector<4x4096xf32>
    %27 = arith.subf %26, %21 : vector<4x4096xf32>
    %28 = arith.mulf %27, %17 : vector<4x4096xf32>
    %cst_10 = arith.constant dense<0.000000e+00> : vector<4096xf32>
    %29 = vector.multi_reduction <add>, %28, %cst_10 [0] : vector<4x4096xf32> to vector<4096xf32>
    %30 = vector.shape_cast %29 : vector<4096xf32> to vector<1x4096xf32>
    %31 = vector.broadcast %4 : vector<4x1xf32> to vector<4x4096xf32>
    %32 = arith.mulf %31, %17 : vector<4x4096xf32>
    %cst_11 = arith.constant dense<0.000000e+00> : vector<4096xf32>
    %33 = vector.multi_reduction <add>, %32, %cst_11 [0] : vector<4x4096xf32> to vector<4096xf32>
    %34 = vector.shape_cast %33 : vector<4096xf32> to vector<1x4096xf32>
    %35 = tpu.iota {dimensions = array<i32: 1>} : vector<1x4096xi32>
    %c4096_i32 = arith.constant 4096 : i32
    %36 = arith.muli %arg1, %c4096_i32 : i32
    %37 = vector.broadcast %36 : i32 to vector<1x4096xi32>
    %38 = arith.addi %35, %37 : vector<1x4096xi32>
    %c4096_i32_12 = arith.constant 4096 : i32
    %39 = vector.broadcast %c4096_i32_12 : i32 to vector<1x4096xi32>
    %40 = arith.cmpi slt, %38, %39 : vector<1x4096xi32>
    %41 = arith.extui %40 : vector<1x4096xi1> to vector<1x4096xi32>
    %42 = arith.sitofp %41 : vector<1x4096xi32> to vector<1x4096xf32>
    %43 = arith.mulf %34, %42 : vector<1x4096xf32>
    %c0_i32 = arith.constant 0 : i32
    %44 = arith.cmpi eq, %arg1, %c0_i32 : i32
    %45 = arith.extui %44 : i1 to i32
    %c0_i32_13 = arith.constant 0 : i32
    %46 = arith.cmpi ne, %45, %c0_i32_13 : i32
    scf.if %46 {
      %cst_24 = arith.constant 0.000000e+00 : f32
      %57 = vector.broadcast %cst_24 : f32 to vector<1x4096xf32>
      %c0_25 = arith.constant 0 : index
      %c0_26 = arith.constant 0 : index
      %58 = vector.load %arg7[%c0_25, %c0_26] : memref<1x4096xf32, #tpu.memory_space<vmem>>, vector<1x4096xf32>
      tpu.vector_store %arg7[%c0_25, %c0_26], %57 {strides = array<i32>} : memref<1x4096xf32, #tpu.memory_space<vmem>>, vector<1x4096xf32>,
      %cst_27 = arith.constant 0.000000e+00 : f32
      %59 = vector.broadcast %cst_27 : f32 to vector<1x4096xf32>
      %c0_28 = arith.constant 0 : index
      %c0_29 = arith.constant 0 : index
      %60 = vector.load %arg8[%c0_28, %c0_29] : memref<1x4096xf32, #tpu.memory_space<vmem>>, vector<1x4096xf32>
      tpu.vector_store %arg8[%c0_28, %c0_29], %59 {strides = array<i32>} : memref<1x4096xf32, #tpu.memory_space<vmem>>, vector<1x4096xf32>,
    } else {
    }
    %c0_14 = arith.constant 0 : index
    %c0_15 = arith.constant 0 : index
    %47 = vector.load %arg7[%c0_14, %c0_15] : memref<1x4096xf32, #tpu.memory_space<vmem>>, vector<1x4096xf32>
    %48 = arith.mulf %43, %30 : vector<1x4096xf32>
    %49 = arith.addf %47, %48 : vector<1x4096xf32>
    %c0_16 = arith.constant 0 : index
    %c0_17 = arith.constant 0 : index
    %50 = vector.load %arg7[%c0_16, %c0_17] : memref<1x4096xf32, #tpu.memory_space<vmem>>, vector<1x4096xf32>
    tpu.vector_store %arg7[%c0_16, %c0_17], %49 {strides = array<i32>} : memref<1x4096xf32, #tpu.memory_space<vmem>>, vector<1x4096xf32>,
    %c0_18 = arith.constant 0 : index
    %c0_19 = arith.constant 0 : index
    %51 = vector.load %arg8[%c0_18, %c0_19] : memref<1x4096xf32, #tpu.memory_space<vmem>>, vector<1x4096xf32>
    %52 = arith.addf %51, %43 : vector<1x4096xf32>
    %c0_20 = arith.constant 0 : index
    %c0_21 = arith.constant 0 : index
    %53 = vector.load %arg8[%c0_20, %c0_21] : memref<1x4096xf32, #tpu.memory_space<vmem>>, vector<1x4096xf32>
    tpu.vector_store %arg8[%c0_20, %c0_21], %52 {strides = array<i32>} : memref<1x4096xf32, #tpu.memory_space<vmem>>, vector<1x4096xf32>,
    %c0_i32_22 = arith.constant 0 : i32
    %54 = arith.cmpi eq, %arg1, %c0_i32_22 : i32
    %55 = arith.extui %54 : i1 to i32
    %c0_i32_23 = arith.constant 0 : i32
    %56 = arith.cmpi ne, %55, %c0_i32_23 : i32
    scf.if %56 {
      %cst_24 = arith.constant 0.000000e+00 : f32
      %57 = vector.broadcast %cst_24 : f32 to vector<1x8x128xf32>
      %c0_25 = arith.constant 0 : index
      %c0_26 = arith.constant 0 : index
      %58 = vector.load %arg7[%c0_25, %c0_26] : memref<1x4096xf32, #tpu.memory_space<vmem>>, vector<1x4096xf32>
      %59 = vector.shape_cast %58 : vector<1x4096xf32> to vector<1x1x4096xf32>
      %cst_27 = arith.constant dense<0.000000e+00> : vector<1xf32>
      %60 = vector.multi_reduction <add>, %59, %cst_27 [1, 2] : vector<1x1x4096xf32> to vector<1xf32>
      %61 = vector.shape_cast %60 : vector<1xf32> to vector<1x1x1xf32>
      %62 = vector.extract %61[0, 0, 0] : f32 from vector<1x1x1xf32>
      %63 = vector.broadcast %62 : f32 to vector<1x8x128xf32>
      %64 = arith.addf %57, %63 : vector<1x8x128xf32>
      %c0_28 = arith.constant 0 : index
      %c0_29 = arith.constant 0 : index
      %c0_30 = arith.constant 0 : index
      %65 = vector.load %arg5[%c0_28, %c0_29, %c0_30] : memref<1x8x128xf32, #tpu.memory_space<vmem>>, vector<1x8x128xf32>
      tpu.vector_store %arg5[%c0_28, %c0_29, %c0_30], %64 {strides = array<i32>} : memref<1x8x128xf32, #tpu.memory_space<vmem>>, vector<1x8x128xf32>,
      %cst_31 = arith.constant 0.000000e+00 : f32
      %66 = vector.broadcast %cst_31 : f32 to vector<1x8x128xf32>
      %c0_32 = arith.constant 0 : index
      %c0_33 = arith.constant 0 : index
      %67 = vector.load %arg8[%c0_32, %c0_33] : memref<1x4096xf32, #tpu.memory_space<vmem>>, vector<1x4096xf32>
      %68 = vector.shape_cast %67 : vector<1x4096xf32> to vector<1x1x4096xf32>
      %cst_34 = arith.constant dense<0.000000e+00> : vector<1xf32>
      %69 = vector.multi_reduction <add>, %68, %cst_34 [1, 2] : vector<1x1x4096xf32> to vector<1xf32>
      %70 = vector.shape_cast %69 : vector<1xf32> to vector<1x1x1xf32>
      %71 = vector.extract %70[0, 0, 0] : f32 from vector<1x1x1xf32>
      %72 = vector.broadcast %71 : f32 to vector<1x8x128xf32>
      %73 = arith.addf %66, %72 : vector<1x8x128xf32>
      %c0_35 = arith.constant 0 : index
      %c0_36 = arith.constant 0 : index
      %c0_37 = arith.constant 0 : index
      %74 = vector.load %arg6[%c0_35, %c0_36, %c0_37] : memref<1x8x128xf32, #tpu.memory_space<vmem>>, vector<1x8x128xf32>
      tpu.vector_store %arg6[%c0_35, %c0_36, %c0_37], %73 {strides = array<i32>} : memref<1x8x128xf32, #tpu.memory_space<vmem>>, vector<1x8x128xf32>,
    } else {
    }
    return
  }
  func.func @transform_0(%arg0: i32, %arg1: i32) -> (i32, i32, i32) {
    %c0_i32 = arith.constant 0 : i32
    %c0_i32_0 = arith.constant 0 : i32
    return %arg0, %c0_i32, %arg1 : i32, i32, i32
  }
  func.func @transform_1(%arg0: i32, %arg1: i32) -> (i32, i32, i32) {
    %c0_i32 = arith.constant 0 : i32
    %c0_i32_0 = arith.constant 0 : i32
    return %arg0, %c0_i32, %arg1 : i32, i32, i32
  }
  func.func @transform_2(%arg0: i32, %arg1: i32) -> (i32, i32) {
    %c0_i32 = arith.constant 0 : i32
    %c0_i32_0 = arith.constant 0 : i32
    %c0_i32_1 = arith.constant 0 : i32
    return %c0_i32, %c0_i32_0 : i32, i32
  }
  func.func @transform_3(%arg0: i32, %arg1: i32) -> (i32, i32, i32) {
    %c0_i32 = arith.constant 0 : i32
    %c0_i32_0 = arith.constant 0 : i32
    %c0_i32_1 = arith.constant 0 : i32
    return %arg0, %c0_i32, %c0_i32_0 : i32, i32, i32
  }
  func.func @transform_4(%arg0: i32, %arg1: i32) -> (i32, i32, i32) {
    %c0_i32 = arith.constant 0 : i32
    %c0_i32_0 = arith.constant 0 : i32
    %c0_i32_1 = arith.constant 0 : i32
    return %arg0, %c0_i32, %c0_i32_0 : i32, i32, i32
  }
}

</mosaic_0001>

<llo_original>
// kernel: tpu_custom_call.1
$region0: #{tpu_custom_call.1}
  #allocation0 [shape = 'u32[]', space=smem, size = 0x4, offset = 0x4, fixed_abs, tag = 'smem constant byte address 0x4 - core index']
  #allocation1 [shape = 'u32[72,128]{1,0:T(1,128)}', space=vmem, size = 0x9000, scoped, tag = 'internal scratch']
  #allocation2 [shape = 'f32[1,4096]{1,0:T(1,128)}', space=vmem, size = 0x4000, scoped, tag = 'scratch operand']
  #allocation3 [shape = 'f32[1,4096]{1,0:T(1,128)}', space=vmem, size = 0x4000, scoped, tag = 'scratch operand']
  %s0 = inlined_call_operand.hbm [shape: f32[2,4,4096], index: 0, kind: input, shape index: {}]
  %s1 = inlined_call_operand.hbm [shape: f32[2,4,4096], index: 1, kind: input, shape index: {}]
  %s2 = inlined_call_operand.vmem [shape: f32[4,1], index: 2, kind: input, shape index: {}]
  %s3 = inlined_call_operand.hbm [shape: f32[2,8,128], index: 3, kind: output, shape index: {0}]
  %s4 = inlined_call_operand.hbm [shape: f32[2,8,128], index: 4, kind: output, shape index: {1}]
  %5 = xla_tuple %s3, %s4
  %s6 = sld [smem:[#allocation0]]
  $region69: #{tpu_custom_call.1} parent=0
    _
  %s8 = ssub.s32 1, %s6
  %s9 = scalar_select 0, %s8, %s6
  $region1: #{tpu_custom_call.1} parent=0
    #allocation4 [shape = 'u8[131072]{0}', space=vmem, size = 0x20000, scoped, tag = 'input window, operand 0']
    #allocation5 [shape = 's32[2]{0}', space=sflag, size = 0x8, scoped, tag = 'scoped memory for tpu_custom_call.1']
    #allocation6 [shape = 's32[2]{0}', space=sflag, size = 0x8, scoped, tag = 'scoped memory for tpu_custom_call.1']
    #allocation7 [shape = 'u8[131072]{0}', space=vmem, size = 0x20000, scoped, tag = 'input window, operand 1']
    #allocation8 [shape = 's32[2]{0}', space=sflag, size = 0x8, scoped, tag = 'scoped memory for tpu_custom_call.1']
    #allocation9 [shape = 'u8[8192]{0}', space=vmem, size = 0x2000, scoped, tag = 'output window, operand 0']
    #allocation10 [shape = 'u8[8192]{0}', space=vmem, size = 0x2000, scoped, tag = 'output window, operand 1']
    #allocation11 [shape = 's32[2]{0}', space=sflag, size = 0x8, scoped, tag = 'scoped memory for tpu_custom_call.1']
    %10 = vsyncpa [#allocation5], 0
    %s11 = scalar_lea.sflag [#allocation5], 1
    %12 = vsyncpa %s11, 0
    %13 = vsyncpa [#allocation8], 0
    %s14 = scalar_lea.sflag [#allocation8], 1
    %15 = vsyncpa %s14, 0
    %16 = vsyncpa [#allocation6], 0
    %s17 = scalar_lea.sflag [#allocation6], 1
    %18 = vsyncpa %s17, 0
    %19 = vsyncpa [#allocation11], 0
    %s20 = scalar_lea.sflag [#allocation11], 1
    %21 = vsyncpa %s20, 0
    loop: start=0, step=1, limit=4
    $region2: #{tpu_custom_call.1} parent=1 // loop_pre_header
      _
    $region3: #{tpu_custom_call.1} parent=1 // loop_header
      %s23 = sphi 0, %s27
      %p24 = scmp.ge.s32.totalorder %s23, 4
      %s30 = sphi 0, %s42
      %s31 = sphi 0, %s38
      %s32 = sphi 0, %s30
      %s33 = sphi 0, %s31
      %s34 = sphi 0, %s32
      %s35 = sphi 0, %s33
      %s47 = sphi 0, %s49
      %s50 = sphi 0, %s47
      %s51 = sphi 0, %s50
      %s67 = sphi 0, %s51
      %s75 = sphi 0, %s77
      %s78 = sphi 0, %s75
      %s79 = sphi 0, %s78
      %s95 = sphi 0, %s79
      %s99 = sphi 0, %s99
      %s101 = sphi 0, %s99
      %s102 = sphi 0, %s101
      %s116 = sphi 0, %s102
      %s122 = sphi 0, %s124
      %s125 = sphi 0, %s122
      %s126 = sphi 0, %s125
      %s142 = sphi 0, %s126
      %s148 = sphi 0, %s150
      %s151 = sphi 0, %s148
      %s152 = sphi 0, %s151
      %s168 = sphi 0, %s152
    $region4: #{tpu_custom_call.1} parent=1 // loop_header_branch
      %26 = sbr.rel (%p24) target = $region8
    $region5: #{tpu_custom_call.1} parent=1 // loop_body
      %s28 = ssub.s32 %s23, 1
      %s29 = ssub.s32 %s23, 2
      %s36 = sadd.s32 1, %s31
      %p37 = scmp.ge.s32.totalorder %s36, 1
      %s38 = scalar_select %p37, 0, %s36
      %s39 = sadd.s32 1, %s30
      %s40 = scalar_select %p37, %s39, %s30
      %p41 = scmp.ge.s32.totalorder %s40, 2
      %s42 = scalar_select %p41, 0, %s40
      %s43 = ssub.s32 %s30, %s42
      %s44 = ssub.s32 %s31, %s38
      %s45 = sor.u32 %s43, %s44
      %p46 = scmp.eq.s32.totalorder %s45, 0
      %s48 = sadd.s32 %s47, 1
      %s49 = scalar_select %p46, %s47, %s48
      %p52 = pneg %p46
      %p53 = scmp.eq.s32.totalorder %s23, 1
      %p54 = por %p52, %p53
      %p55 = scmp.ne.s32.totalorder %s47, %s50
      %p56 = scmp.eq.s32.totalorder %s23, 0
      %p57 = por %p55, %p56
      %p58 = scmp.ne.s32.totalorder %s47, %s50
      %p59 = scmp.eq.s32.totalorder %s28, 1
      %p60 = por %p58, %p59
      %p61 = scmp.ne.s32.totalorder %s50, %s51
      %p62 = scmp.eq.s32.totalorder %s28, 0
      %p63 = por %p61, %p62
      %p64 = scmp.ne.s32.totalorder %s50, %s51
      %p65 = scmp.eq.s32.totalorder %s29, 1
      %p66 = por %p64, %p65
      %p68 = scmp.ne.s32.totalorder %s51, %s67
      %p69 = scmp.eq.s32.totalorder %s29, 0
      %p70 = por %p68, %p69
      %s71 = ssub.s32 %s30, %s42
      %s72 = ssub.s32 %s31, %s38
      %s73 = sor.u32 %s71, %s72
      %p74 = scmp.eq.s32.totalorder %s73, 0
      %s76 = sadd.s32 %s75, 1
      %s77 = scalar_select %p74, %s75, %s76
      %p80 = pneg %p74
      %p81 = scmp.eq.s32.totalorder %s23, 1
      %p82 = por %p80, %p81
      %p83 = scmp.ne.s32.totalorder %s75, %s78
      %p84 = scmp.eq.s32.totalorder %s23, 0
      %p85 = por %p83, %p84
      %p86 = scmp.ne.s32.totalorder %s75, %s78
      %p87 = scmp.eq.s32.totalorder %s28, 1
      %p88 = por %p86, %p87
      %p89 = scmp.ne.s32.totalorder %s78, %s79
      %p90 = scmp.eq.s32.totalorder %s28, 0
      %p91 = por %p89, %p90
      %p92 = scmp.ne.s32.totalorder %s78, %s79
      %p93 = scmp.eq.s32.totalorder %s29, 1
      %p94 = por %p92, %p93
      %p96 = scmp.ne.s32.totalorder %s79, %s95
      %p97 = scmp.eq.s32.totalorder %s29, 0
      %p98 = por %p96, %p97
      %s100 = sadd.s32 %s99, 1
      %p103 = scmp.eq.s32.totalorder %s23, 1
      %p104 = scmp.ne.s32.totalorder %s99, %s101
      %p105 = scmp.eq.s32.totalorder %s23, 0
      %p106 = por %p104, %p105
      %p107 = scmp.ne.s32.totalorder %s99, %s101
      %p108 = scmp.eq.s32.totalorder %s28, 1
      %p109 = por %p107, %p108
      %p110 = scmp.ne.s32.totalorder %s101, %s102
      %p111 = scmp.eq.s32.totalorder %s28, 0
      %p112 = por %p110, %p111
      %p113 = scmp.ne.s32.totalorder %s101, %s102
      %p114 = scmp.eq.s32.totalorder %s29, 1
      %p115 = por %p113, %p114
      %p117 = scmp.ne.s32.totalorder %s102, %s116
      %p118 = scmp.eq.s32.totalorder %s29, 0
      %p119 = por %p117, %p118
      %s120 = ssub.s32 %s30, %s42
      %p121 = scmp.eq.s32.totalorder %s120, 0
      %s123 = sadd.s32 %s122, 1
      %s124 = scalar_select %p121, %s122, %s123
      %p127 = pneg %p121
      %p128 = scmp.eq.s32.totalorder %s23, 1
      %p129 = por %p127, %p128
      %p130 = scmp.ne.s32.totalorder %s122, %s125
      %p131 = scmp.eq.s32.totalorder %s23, 0
      %p132 = por %p130, %p131
      %p133 = scmp.ne.s32.totalorder %s122, %s125
      %p134 = scmp.eq.s32.totalorder %s28, 1
      %p135 = por %p133, %p134
      %p136 = scmp.ne.s32.totalorder %s125, %s126
      %p137 = scmp.eq.s32.totalorder %s28, 0
      %p138 = por %p136, %p137
      %p139 = scmp.ne.s32.totalorder %s125, %s126
      %p140 = scmp.eq.s32.totalorder %s29, 1
      %p141 = por %p139, %p140
      %p143 = scmp.ne.s32.totalorder %s126, %s142
      %p144 = scmp.eq.s32.totalorder %s29, 0
      %p145 = por %p143, %p144
      %s146 = ssub.s32 %s30, %s42
      %p147 = scmp.eq.s32.totalorder %s146, 0
      %s149 = sadd.s32 %s148, 1
      %s150 = scalar_select %p147, %s148, %s149
      %p153 = pneg %p147
      %p154 = scmp.eq.s32.totalorder %s23, 1
      %p155 = por %p153, %p154
      %p156 = scmp.ne.s32.totalorder %s148, %s151
      %p157 = scmp.eq.s32.totalorder %s23, 0
      %p158 = por %p156, %p157
      %p159 = scmp.ne.s32.totalorder %s148, %s151
      %p160 = scmp.eq.s32.totalorder %s28, 1
      %p161 = por %p159, %p160
      %p162 = scmp.ne.s32.totalorder %s151, %s152
      %p163 = scmp.eq.s32.totalorder %s28, 0
      %p164 = por %p162, %p163
      %p165 = scmp.ne.s32.totalorder %s151, %s152
      %p166 = scmp.eq.s32.totalorder %s29, 1
      %p167 = por %p165, %p166
      %p169 = scmp.ne.s32.totalorder %s152, %s168
      %p170 = scmp.eq.s32.totalorder %s29, 0
      %p171 = por %p169, %p170
      %p172 = scmp.le.s32.totalorder 1, %s23
      %p173 = scmp.lt.s32.totalorder %s23, 3
      %p174 = pnand %p172, %p173
      %p175 = pneg %p174
      // Predicated region
      $region9: #{tpu_custom_call.1} parent=5 // pred_check
        _
      $region10: #{tpu_custom_call.1} parent=5 // pred_check_branch
        %177 = sbr.rel (%p174) target = $region12
      $region11: #{tpu_custom_call.1} parent=5 // pred_region
        %s178 = ssub.s32 %s23, 1
        // Predicated region
        $region13: #{tpu_custom_call.1} parent=11 // pred_check
          %p179 = pneg %p112
        $region14: #{tpu_custom_call.1} parent=11 // pred_check_branch
          %181 = sbr.rel (%p179) target = $region16
        $region15: #{tpu_custom_call.1} parent=11 // pred_region
          _
        $region16: #{tpu_custom_call.1} parent=11 // pred_fallthru
          _
      $region12: #{tpu_custom_call.1} parent=5 // pred_fallthru
        _
      %p182 = scmp.lt.s32.totalorder %s23, 2
      // Predicated region
      $region17: #{tpu_custom_call.1} parent=5 // pred_check
        %p183 = pneg %p182
      $region18: #{tpu_custom_call.1} parent=5 // pred_check_branch
        %185 = sbr.rel (%p183) target = $region20
      $region19: #{tpu_custom_call.1} parent=5 // pred_region
        // Predicated region
        $region21: #{tpu_custom_call.1} parent=19 // pred_check
          %p186 = pneg %p57
        $region22: #{tpu_custom_call.1} parent=19 // pred_check_branch
          %188 = sbr.rel (%p186) target = $region24
        $region23: #{tpu_custom_call.1} parent=19 // pred_region
          %s189 = sand.u32 %s47, 1
          %s190 = scalar_lea.sflag [#allocation5], %s189
          %s191 = sand.u32 %s47, 1
          %s192 = smul.addr %s191, 128
          %s193 = scalar_lea.vmem [#allocation4], %s192
          %s194 = smul.u32 32, %s31
          %196 = vsyncadd %s190, 0
          %s197 = smul.addr %s30, 32
          %s198 = sadd.s32 %s194, %s197
          %s199 = smul.addr %s198, 4
          %s200 = scalar_lea.hbm %s0, %s199
          %s202 = sshll.u32 %s200, 4
          %s203 = int_to_ptr.hbm [resolvable:$true] %s202
          %s204 = sshll.u32 %s193, 4
          %s205 = int_to_ptr.vmem [resolvable:$true] %s204
          %207 = dma.hbm_to_vmem [thread:$0]  %s203, 2048, %s205, %s190
        $region24: #{tpu_custom_call.1} parent=19 // pred_fallthru
          _
        // Predicated region
        $region25: #{tpu_custom_call.1} parent=19 // pred_check
          %p208 = pneg %p85
        $region26: #{tpu_custom_call.1} parent=19 // pred_check_branch
          %210 = sbr.rel (%p208) target = $region28
        $region27: #{tpu_custom_call.1} parent=19 // pred_region
          %s211 = sand.u32 %s75, 1
          %s212 = scalar_lea.sflag [#allocation8], %s211
          %s213 = sand.u32 %s75, 1
          %s214 = smul.addr %s213, 128
          %s215 = scalar_lea.vmem [#allocation7], %s214
          %s216 = smul.u32 32, %s31
          %218 = vsyncadd %s212, 0
          %s219 = smul.addr %s30, 32
          %s220 = sadd.s32 %s216, %s219
          %s221 = smul.addr %s220, 4
          %s222 = scalar_lea.hbm %s1, %s221
          %s224 = sshll.u32 %s222, 4
          %s225 = int_to_ptr.hbm [resolvable:$true] %s224
          %s226 = sshll.u32 %s215, 4
          %s227 = int_to_ptr.vmem [resolvable:$true] %s226
          %229 = dma.hbm_to_vmem [thread:$0]  %s225, 2048, %s227, %s212
        $region28: #{tpu_custom_call.1} parent=19 // pred_fallthru
          _
      $region20: #{tpu_custom_call.1} parent=5 // pred_fallthru
        _
      %p230 = scmp.le.s32.totalorder 1, %s23
      %p231 = scmp.lt.s32.totalorder %s23, 3
      %p232 = pnand %p230, %p231
      %p233 = pneg %p232
      // Predicated region
      $region29: #{tpu_custom_call.1} parent=5 // pred_check
        _
      $region30: #{tpu_custom_call.1} parent=5 // pred_check_branch
        %235 = sbr.rel (%p232) target = $region32
      $region31: #{tpu_custom_call.1} parent=5 // pred_region
        %s236 = ssub.s32 %s23, 1
        %s237 = sand.u32 %s50, 1
        %s238 = scalar_lea.sflag [#allocation5], %s237
        %s239 = sand.u32 %s50, 1
        %s240 = smul.addr %s239, 128
        %s241 = scalar_lea.vmem [#allocation4], %s240
        // Predicated region
        $region33: #{tpu_custom_call.1} parent=31 // pred_check
          %p242 = pneg %p63
        $region34: #{tpu_custom_call.1} parent=31 // pred_check_branch
          %244 = sbr.rel (%p242) target = $region36
        $region35: #{tpu_custom_call.1} parent=31 // pred_region
          %246 = dma.done %s238, 2048
        $region36: #{tpu_custom_call.1} parent=31 // pred_fallthru
          _
        %s247 = sand.u32 %s78, 1
        %s248 = scalar_lea.sflag [#allocation8], %s247
        %s249 = sand.u32 %s78, 1
        %s250 = smul.addr %s249, 128
        %s251 = scalar_lea.vmem [#allocation7], %s250
        // Predicated region
        $region37: #{tpu_custom_call.1} parent=31 // pred_check
          %p252 = pneg %p91
        $region38: #{tpu_custom_call.1} parent=31 // pred_check_branch
          %254 = sbr.rel (%p252) target = $region40
        $region39: #{tpu_custom_call.1} parent=31 // pred_region
          %256 = dma.done %s248, 2048
        $region40: #{tpu_custom_call.1} parent=31 // pred_fallthru
          _
        %s257 = sand.u32 %s50, 1
        %s258 = scalar_lea.sflag [#allocation5], %s257
        %s259 = sand.u32 %s50, 1
        %s260 = smul.addr %s259, 128
        %s261 = scalar_lea.vmem [#allocation4], %s260
        %p262 = pneg %p63
        %p263 = pneg %p60
        %s264 = sand.u32 %s78, 1
        %s265 = scalar_lea.sflag [#allocation8], %s264
        %s266 = sand.u32 %s78, 1
        %s267 = smul.addr %s266, 128
        %s268 = scalar_lea.vmem [#allocation7], %s267
        %p269 = pneg %p91
        %p270 = pneg %p88
        %p271 = pneg %p112
        %p272 = pneg %p109
        %p273 = pneg %p138
        %p274 = pneg %p135
        %s275 = sand.u32 %s125, 1
        %s276 = scalar_lea.sflag [#allocation6], %s275
        %s277 = sand.u32 %s125, 1
        %s278 = smul.addr %s277, 8
        %s279 = scalar_lea.vmem [#allocation9], %s278
        %p280 = pneg %p164
        %p281 = pneg %p161
        %s282 = sand.u32 %s151, 1
        %s283 = scalar_lea.sflag [#allocation11], %s282
        %s284 = sand.u32 %s151, 1
        %s285 = smul.addr %s284, 8
        %s286 = scalar_lea.vmem [#allocation10], %s285
        %s287 = smul.u32 32, %s33
        %s288 = smul.u32 32, %s33
        %v289 = vld [vmem:[%s241] sm:$0xff]
        %v290 = vld [vmem:[%s241 + $0x8] sm:$0xff]
        %v291 = vld [vmem:[%s241 + $0x10] sm:$0xff]
        %v292 = vld [vmem:[%s241 + $0x18] sm:$0xff]
        %v293 = vld [vmem:[%s241 + $0x20] sm:$0xff]
        %v294 = vld [vmem:[%s241 + $0x28] sm:$0xff]
        %v295 = vld [vmem:[%s241 + $0x30] sm:$0xff]
        %v296 = vld [vmem:[%s241 + $0x38] sm:$0xff]
        %v297 = vld [vmem:[%s241 + $0x40] sm:$0xff]
        %v298 = vld [vmem:[%s241 + $0x48] sm:$0xff]
        %v299 = vld [vmem:[%s241 + $0x50] sm:$0xff]
        %v300 = vld [vmem:[%s241 + $0x58] sm:$0xff]
        %v301 = vld [vmem:[%s241 + $0x60] sm:$0xff]
        %v302 = vld [vmem:[%s241 + $0x68] sm:$0xff]
        %v303 = vld [vmem:[%s241 + $0x70] sm:$0xff]
        %v304 = vld [vmem:[%s241 + $0x78] sm:$0xff]
        %v305 = vld [vmem:[%s251] sm:$0xff]
        %v306 = vld [vmem:[%s251 + $0x8] sm:$0xff]
        %v307 = vld [vmem:[%s251 + $0x10] sm:$0xff]
        %v308 = vld [vmem:[%s251 + $0x18] sm:$0xff]
        %v309 = vld [vmem:[%s251 + $0x20] sm:$0xff]
        %v310 = vld [vmem:[%s251 + $0x28] sm:$0xff]
        %v311 = vld [vmem:[%s251 + $0x30] sm:$0xff]
        %v312 = vld [vmem:[%s251 + $0x38] sm:$0xff]
        %v313 = vld [vmem:[%s251 + $0x40] sm:$0xff]
        %v314 = vld [vmem:[%s251 + $0x48] sm:$0xff]
        %v315 = vld [vmem:[%s251 + $0x50] sm:$0xff]
        %v316 = vld [vmem:[%s251 + $0x58] sm:$0xff]
        %v317 = vld [vmem:[%s251 + $0x60] sm:$0xff]
        %v318 = vld [vmem:[%s251 + $0x68] sm:$0xff]
        %v319 = vld [vmem:[%s251 + $0x70] sm:$0xff]
        %v320 = vld [vmem:[%s251 + $0x78] sm:$0xff]
        %v321 = vld [vmem:[%s2] sm:$0xf]
        %v322 = vlaneseq
        %v323 = vshrl.u32 %v322, 7
        %340 = vst [vmem:[#allocation1] ss:$2 sm:$0xff] %v305
        %s341 = scalar_lea.vmem [#allocation1], 16
        %342 = vst [vmem:[%s341] ss:$2 sm:$0xff] %v306
        %s343 = scalar_lea.vmem [#allocation1], 32
        %344 = vst [vmem:[%s343] ss:$2 sm:$0xff] %v307
        %s345 = scalar_lea.vmem [#allocation1], 48
        %346 = vst [vmem:[%s345] ss:$2 sm:$0xff] %v308
        %v347 = vld.sshfl [vmem:[#allocation1] sm:$0xff pattern:$0x75316420]
        %v348 = vld.sshfl [vmem:[#allocation1 + $0x8] sm:$0xff pattern:$0x75316420]
        %v349 = vld.sshfl [vmem:[#allocation1 + $0x10] sm:$0xff pattern:$0x75316420]
        %v350 = vld.sshfl [vmem:[#allocation1 + $0x18] sm:$0xff pattern:$0x75316420]
        %v351 = vld.sshfl [vmem:[#allocation1 + $0x20] sm:$0xff pattern:$0x75316420]
        %v352 = vld.sshfl [vmem:[#allocation1 + $0x28] sm:$0xff pattern:$0x75316420]
        %v353 = vld.sshfl [vmem:[#allocation1 + $0x30] sm:$0xff pattern:$0x75316420]
        %v354 = vld.sshfl [vmem:[#allocation1 + $0x38] sm:$0xff pattern:$0x75316420]
        %355 = vst [vmem:[#allocation1] ss:$2 sm:$0xff] %v309
        %356 = vst [vmem:[%s341] ss:$2 sm:$0xff] %v310
        %357 = vst [vmem:[%s343] ss:$2 sm:$0xff] %v311
        %358 = vst [vmem:[%s345] ss:$2 sm:$0xff] %v312
        %v359 = vld.sshfl [vmem:[#allocation1] sm:$0xff pattern:$0x75316420]
        %v360 = vld.sshfl [vmem:[#allocation1 + $0x8] sm:$0xff pattern:$0x75316420]
        %v361 = vld.sshfl [vmem:[#allocation1 + $0x10] sm:$0xff pattern:$0x75316420]
        %v362 = vld.sshfl [vmem:[#allocation1 + $0x18] sm:$0xff pattern:$0x75316420]
        %v363 = vld.sshfl [vmem:[#allocation1 + $0x20] sm:$0xff pattern:$0x75316420]
        %v364 = vld.sshfl [vmem:[#allocation1 + $0x28] sm:$0xff pattern:$0x75316420]
        %v365 = vld.sshfl [vmem:[#allocation1 + $0x30] sm:$0xff pattern:$0x75316420]
        %v366 = vld.sshfl [vmem:[#allocation1 + $0x38] sm:$0xff pattern:$0x75316420]
        %367 = vst [vmem:[#allocation1] ss:$2 sm:$0xff] %v313
        %368 = vst [vmem:[%s341] ss:$2 sm:$0xff] %v314
        %369 = vst [vmem:[%s343] ss:$2 sm:$0xff] %v315
        %370 = vst [vmem:[%s345] ss:$2 sm:$0xff] %v316
        %v371 = vld.sshfl [vmem:[#allocation1] sm:$0xff pattern:$0x75316420]
        %v372 = vld.sshfl [vmem:[#allocation1 + $0x8] sm:$0xff pattern:$0x75316420]
        %v373 = vld.sshfl [vmem:[#allocation1 + $0x10] sm:$0xff pattern:$0x75316420]
        %v374 = vld.sshfl [vmem:[#allocation1 + $0x18] sm:$0xff pattern:$0x75316420]
        %v375 = vld.sshfl [vmem:[#allocation1 + $0x20] sm:$0xff pattern:$0x75316420]
        %v376 = vld.sshfl [vmem:[#allocation1 + $0x28] sm:$0xff pattern:$0x75316420]
        %v377 = vld.sshfl [vmem:[#allocation1 + $0x30] sm:$0xff pattern:$0x75316420]
        %v378 = vld.sshfl [vmem:[#allocation1 + $0x38] sm:$0xff pattern:$0x75316420]
        %379 = vst [vmem:[#allocation1] ss:$2 sm:$0xff] %v317
        %380 = vst [vmem:[%s341] ss:$2 sm:$0xff] %v318
        %381 = vst [vmem:[%s343] ss:$2 sm:$0xff] %v319
        %382 = vst [vmem:[%s345] ss:$2 sm:$0xff] %v320
        %v383 = vld.sshfl [vmem:[#allocation1] sm:$0xff pattern:$0x75316420]
        %v384 = vld.sshfl [vmem:[#allocation1 + $0x8] sm:$0xff pattern:$0x75316420]
        %v385 = vld.sshfl [vmem:[#allocation1 + $0x10] sm:$0xff pattern:$0x75316420]
        %v386 = vld.sshfl [vmem:[#allocation1 + $0x18] sm:$0xff pattern:$0x75316420]
        %v387 = vld.sshfl [vmem:[#allocation1 + $0x20] sm:$0xff pattern:$0x75316420]
        %v388 = vld.sshfl [vmem:[#allocation1 + $0x28] sm:$0xff pattern:$0x75316420]
        %v389 = vld.sshfl [vmem:[#allocation1 + $0x30] sm:$0xff pattern:$0x75316420]
        %v390 = vld.sshfl [vmem:[#allocation1 + $0x38] sm:$0xff pattern:$0x75316420]
        %vm423 = vcmask 1043456
        %v424 = vsel %vm423, %v347, -inf
        %v425 = vrot.slane %v424, 4
        %v426 = vmax.f32 %v424, %v425
        %v427 = vrot.slane %v426, 2
        %v428 = vmax.f32 %v426, %v427
        %v429 = vrot.slane %v428, 1
        %v430 = vmax.f32 %v428, %v429
        %v431 = vsel %vm423, %v348, -inf
        %v432 = vrot.slane %v431, 4
        %v433 = vmax.f32 %v431, %v432
        %v434 = vrot.slane %v433, 2
        %v435 = vmax.f32 %v433, %v434
        %v436 = vrot.slane %v435, 1
        %v437 = vmax.f32 %v435, %v436
        %v438 = vsel %vm423, %v349, -inf
        %v439 = vrot.slane %v438, 4
        %v440 = vmax.f32 %v438, %v439
        %v441 = vrot.slane %v440, 2
        %v442 = vmax.f32 %v440, %v441
        %v443 = vrot.slane %v442, 1
        %v444 = vmax.f32 %v442, %v443
        %v445 = vsel %vm423, %v350, -inf
        %v446 = vrot.slane %v445, 4
        %v447 = vmax.f32 %v445, %v446
        %v448 = vrot.slane %v447, 2
        %v449 = vmax.f32 %v447, %v448
        %v450 = vrot.slane %v449, 1
        %v451 = vmax.f32 %v449, %v450
        %v452 = vsel %vm423, %v351, -inf
        %v453 = vrot.slane %v452, 4
        %v454 = vmax.f32 %v452, %v453
        %v455 = vrot.slane %v454, 2
        %v456 = vmax.f32 %v454, %v455
        %v457 = vrot.slane %v456, 1
        %v458 = vmax.f32 %v456, %v457
        %v459 = vsel %vm423, %v352, -inf
        %v460 = vrot.slane %v459, 4
        %v461 = vmax.f32 %v459, %v460
        %v462 = vrot.slane %v461, 2
        %v463 = vmax.f32 %v461, %v462
        %v464 = vrot.slane %v463, 1
        %v465 = vmax.f32 %v463, %v464
        %v466 = vsel %vm423, %v353, -inf
        %v467 = vrot.slane %v466, 4
        %v468 = vmax.f32 %v466, %v467
        %v469 = vrot.slane %v468, 2
        %v470 = vmax.f32 %v468, %v469
        %v471 = vrot.slane %v470, 1
        %v472 = vmax.f32 %v470, %v471
        %v473 = vsel %vm423, %v354, -inf
        %v474 = vrot.slane %v473, 4
        %v475 = vmax.f32 %v473, %v474
        %v476 = vrot.slane %v475, 2
        %v477 = vmax.f32 %v475, %v476
        %v478 = vrot.slane %v477, 1
        %v479 = vmax.f32 %v477, %v478
        %v480 = vsel %vm423, %v359, -inf
        %v481 = vrot.slane %v480, 4
        %v482 = vmax.f32 %v480, %v481
        %v483 = vrot.slane %v482, 2
        %v484 = vmax.f32 %v482, %v483
        %v485 = vrot.slane %v484, 1
        %v486 = vmax.f32 %v484, %v485
        %v487 = vsel %vm423, %v360, -inf
        %v488 = vrot.slane %v487, 4
        %v489 = vmax.f32 %v487, %v488
        %v490 = vrot.slane %v489, 2
        %v491 = vmax.f32 %v489, %v490
        %v492 = vrot.slane %v491, 1
        %v493 = vmax.f32 %v491, %v492
        %v494 = vsel %vm423, %v361, -inf
        %v495 = vrot.slane %v494, 4
        %v496 = vmax.f32 %v494, %v495
        %v497 = vrot.slane %v496, 2
        %v498 = vmax.f32 %v496, %v497
        %v499 = vrot.slane %v498, 1
        %v500 = vmax.f32 %v498, %v499
        %v501 = vsel %vm423, %v362, -inf
        %v502 = vrot.slane %v501, 4
        %v503 = vmax.f32 %v501, %v502
        %v504 = vrot.slane %v503, 2
        %v505 = vmax.f32 %v503, %v504
        %v506 = vrot.slane %v505, 1
        %v507 = vmax.f32 %v505, %v506
        %v508 = vsel %vm423, %v363, -inf
        %v509 = vrot.slane %v508, 4
        %v510 = vmax.f32 %v508, %v509
        %v511 = vrot.slane %v510, 2
        %v512 = vmax.f32 %v510, %v511
        %v513 = vrot.slane %v512, 1
        %v514 = vmax.f32 %v512, %v513
        %v515 = vsel %vm423, %v364, -inf
        %v516 = vrot.slane %v515, 4
        %v517 = vmax.f32 %v515, %v516
        %v518 = vrot.slane %v517, 2
        %v519 = vmax.f32 %v517, %v518
        %v520 = vrot.slane %v519, 1
        %v521 = vmax.f32 %v519, %v520
        %v522 = vsel %vm423, %v365, -inf
        %v523 = vrot.slane %v522, 4
        %v524 = vmax.f32 %v522, %v523
        %v525 = vrot.slane %v524, 2
        %v526 = vmax.f32 %v524, %v525
        %v527 = vrot.slane %v526, 1
        %v528 = vmax.f32 %v526, %v527
        %v529 = vsel %vm423, %v366, -inf
        %v530 = vrot.slane %v529, 4
        %v531 = vmax.f32 %v529, %v530
        %v532 = vrot.slane %v531, 2
        %v533 = vmax.f32 %v531, %v532
        %v534 = vrot.slane %v533, 1
        %v535 = vmax.f32 %v533, %v534
        %v536 = vsel %vm423, %v371, -inf
        %v537 = vrot.slane %v536, 4
        %v538 = vmax.f32 %v536, %v537
        %v539 = vrot.slane %v538, 2
        %v540 = vmax.f32 %v538, %v539
        %v541 = vrot.slane %v540, 1
        %v542 = vmax.f32 %v540, %v541
        %v543 = vsel %vm423, %v372, -inf
        %v544 = vrot.slane %v543, 4
        %v545 = vmax.f32 %v543, %v544
        %v546 = vrot.slane %v545, 2
        %v547 = vmax.f32 %v545, %v546
        %v548 = vrot.slane %v547, 1
        %v549 = vmax.f32 %v547, %v548
        %v550 = vsel %vm423, %v373, -inf
        %v551 = vrot.slane %v550, 4
        %v552 = vmax.f32 %v550, %v551
        %v553 = vrot.slane %v552, 2
        %v554 = vmax.f32 %v552, %v553
        %v555 = vrot.slane %v554, 1
        %v556 = vmax.f32 %v554, %v555
        %v557 = vsel %vm423, %v374, -inf
        %v558 = vrot.slane %v557, 4
        %v559 = vmax.f32 %v557, %v558
        %v560 = vrot.slane %v559, 2
        %v561 = vmax.f32 %v559, %v560
        %v562 = vrot.slane %v561, 1
        %v563 = vmax.f32 %v561, %v562
        %v564 = vsel %vm423, %v375, -inf
        %v565 = vrot.slane %v564, 4
        %v566 = vmax.f32 %v564, %v565
        %v567 = vrot.slane %v566, 2
        %v568 = vmax.f32 %v566, %v567
        %v569 = vrot.slane %v568, 1
        %v570 = vmax.f32 %v568, %v569
        %v571 = vsel %vm423, %v376, -inf
        %v572 = vrot.slane %v571, 4
        %v573 = vmax.f32 %v571, %v572
        %v574 = vrot.slane %v573, 2
        %v575 = vmax.f32 %v573, %v574
        %v576 = vrot.slane %v575, 1
        %v577 = vmax.f32 %v575, %v576
        %v578 = vsel %vm423, %v377, -inf
        %v579 = vrot.slane %v578, 4
        %v580 = vmax.f32 %v578, %v579
        %v581 = vrot.slane %v580, 2
        %v582 = vmax.f32 %v580, %v581
        %v583 = vrot.slane %v582, 1
        %v584 = vmax.f32 %v582, %v583
        %v585 = vsel %vm423, %v378, -inf
        %v586 = vrot.slane %v585, 4
        %v587 = vmax.f32 %v585, %v586
        %v588 = vrot.slane %v587, 2
        %v589 = vmax.f32 %v587, %v588
        %v590 = vrot.slane %v589, 1
        %v591 = vmax.f32 %v589, %v590
        %v592 = vsel %vm423, %v383, -inf
        %v593 = vrot.slane %v592, 4
        %v594 = vmax.f32 %v592, %v593
        %v595 = vrot.slane %v594, 2
        %v596 = vmax.f32 %v594, %v595
        %v597 = vrot.slane %v596, 1
        %v598 = vmax.f32 %v596, %v597
        %v599 = vsel %vm423, %v384, -inf
        %v600 = vrot.slane %v599, 4
        %v601 = vmax.f32 %v599, %v600
        %v602 = vrot.slane %v601, 2
        %v603 = vmax.f32 %v601, %v602
        %v604 = vrot.slane %v603, 1
        %v605 = vmax.f32 %v603, %v604
        %v606 = vsel %vm423, %v385, -inf
        %v607 = vrot.slane %v606, 4
        %v608 = vmax.f32 %v606, %v607
        %v609 = vrot.slane %v608, 2
        %v610 = vmax.f32 %v608, %v609
        %v611 = vrot.slane %v610, 1
        %v612 = vmax.f32 %v610, %v611
        %v613 = vsel %vm423, %v386, -inf
        %v614 = vrot.slane %v613, 4
        %v615 = vmax.f32 %v613, %v614
        %v616 = vrot.slane %v615, 2
        %v617 = vmax.f32 %v615, %v616
        %v618 = vrot.slane %v617, 1
        %v619 = vmax.f32 %v617, %v618
        %v620 = vsel %vm423, %v387, -inf
        %v621 = vrot.slane %v620, 4
        %v622 = vmax.f32 %v620, %v621
        %v623 = vrot.slane %v622, 2
        %v624 = vmax.f32 %v622, %v623
        %v625 = vrot.slane %v624, 1
        %v626 = vmax.f32 %v624, %v625
        %v627 = vsel %vm423, %v388, -inf
        %v628 = vrot.slane %v627, 4
        %v629 = vmax.f32 %v627, %v628
        %v630 = vrot.slane %v629, 2
        %v631 = vmax.f32 %v629, %v630
        %v632 = vrot.slane %v631, 1
        %v633 = vmax.f32 %v631, %v632
        %v634 = vsel %vm423, %v389, -inf
        %v635 = vrot.slane %v634, 4
        %v636 = vmax.f32 %v634, %v635
        %v637 = vrot.slane %v636, 2
        %v638 = vmax.f32 %v636, %v637
        %v639 = vrot.slane %v638, 1
        %v640 = vmax.f32 %v638, %v639
        %v641 = vsel %vm423, %v390, -inf
        %v642 = vrot.slane %v641, 4
        %v643 = vmax.f32 %v641, %v642
        %v644 = vrot.slane %v643, 2
        %v645 = vmax.f32 %v643, %v644
        %v646 = vrot.slane %v645, 1
        %v647 = vmax.f32 %v645, %v646
        %v680 = vrot.slane %v437, 4
        %v681 = vrot.slane %v451, 4
        %v682 = vrot.slane %v465, 4
        %v683 = vrot.slane %v479, 4
        %v684 = vrot.slane %v493, 4
        %v685 = vrot.slane %v507, 4
        %v686 = vrot.slane %v521, 4
        %v687 = vrot.slane %v535, 4
        %v688 = vrot.slane %v549, 4
        %v689 = vrot.slane %v563, 4
        %v690 = vrot.slane %v577, 4
        %v691 = vrot.slane %v591, 4
        %v692 = vrot.slane %v605, 4
        %v693 = vrot.slane %v619, 4
        %v694 = vrot.slane %v633, 4
        %v695 = vrot.slane %v647, 4
        %v696 = vsel %vm423, %v430, %v680
        %v697 = vsel %vm423, %v444, %v681
        %v698 = vsel %vm423, %v458, %v682
        %v699 = vsel %vm423, %v472, %v683
        %v700 = vsel %vm423, %v486, %v684
        %v701 = vsel %vm423, %v500, %v685
        %v702 = vsel %vm423, %v514, %v686
        %v703 = vsel %vm423, %v528, %v687
        %v704 = vsel %vm423, %v542, %v688
        %v705 = vsel %vm423, %v556, %v689
        %v706 = vsel %vm423, %v570, %v690
        %v707 = vsel %vm423, %v584, %v691
        %v708 = vsel %vm423, %v598, %v692
        %v709 = vsel %vm423, %v612, %v693
        %v710 = vsel %vm423, %v626, %v694
        %v711 = vsel %vm423, %v640, %v695
        %vm728 = vcmp.eq.f32.partialorder %v305, %v696
        %vm729 = vcmp.eq.f32.partialorder %v306, %v697
        %vm730 = vcmp.eq.f32.partialorder %v307, %v698
        %vm731 = vcmp.eq.f32.partialorder %v308, %v699
        %vm732 = vcmp.eq.f32.partialorder %v309, %v700
        %vm733 = vcmp.eq.f32.partialorder %v310, %v701
        %vm734 = vcmp.eq.f32.partialorder %v311, %v702
        %vm735 = vcmp.eq.f32.partialorder %v312, %v703
        %vm736 = vcmp.eq.f32.partialorder %v313, %v704
        %vm737 = vcmp.eq.f32.partialorder %v314, %v705
        %vm738 = vcmp.eq.f32.partialorder %v315, %v706
        %vm739 = vcmp.eq.f32.partialorder %v316, %v707
        %vm740 = vcmp.eq.f32.partialorder %v317, %v708
        %vm741 = vcmp.eq.f32.partialorder %v318, %v709
        %vm742 = vcmp.eq.f32.partialorder %v319, %v710
        %vm743 = vcmp.eq.f32.partialorder %v320, %v711
        %v745 = vunpack.c.l.s4 839922192
        %v746 = vunpack.c.0.s8 %v745
        %v747 = vperm.slane %v323, %v746
        %v748 = vsel %vm728, %v747, 4
        %v749 = vsel %vm729, %v747, 4
        %v750 = vsel %vm730, %v747, 4
        %v751 = vsel %vm731, %v747, 4
        %v752 = vsel %vm732, %v747, 4
        %v753 = vsel %vm733, %v747, 4
        %v754 = vsel %vm734, %v747, 4
        %v755 = vsel %vm735, %v747, 4
        %v756 = vsel %vm736, %v747, 4
        %v757 = vsel %vm737, %v747, 4
        %v758 = vsel %vm738, %v747, 4
        %v759 = vsel %vm739, %v747, 4
        %v760 = vsel %vm740, %v747, 4
        %v761 = vsel %vm741, %v747, 4
        %v762 = vsel %vm742, %v747, 4
        %v763 = vsel %vm743, %v747, 4
        %764 = vst [vmem:[#allocation1] ss:$2 sm:$0xff] %v748
        %s765 = scalar_lea.vmem [#allocation1], 16
        %766 = vst [vmem:[%s765] ss:$2 sm:$0xff] %v749
        %s767 = scalar_lea.vmem [#allocation1], 32
        %768 = vst [vmem:[%s767] ss:$2 sm:$0xff] %v750
        %s769 = scalar_lea.vmem [#allocation1], 48
        %770 = vst [vmem:[%s769] ss:$2 sm:$0xff] %v751
        %v771 = vld.sshfl [vmem:[#allocation1] sm:$0xff pattern:$0x75316420]
        %v772 = vld.sshfl [vmem:[#allocation1 + $0x8] sm:$0xff pattern:$0x75316420]
        %v773 = vld.sshfl [vmem:[#allocation1 + $0x10] sm:$0xff pattern:$0x75316420]
        %v774 = vld.sshfl [vmem:[#allocation1 + $0x18] sm:$0xff pattern:$0x75316420]
        %v775 = vld.sshfl [vmem:[#allocation1 + $0x20] sm:$0xff pattern:$0x75316420]
        %v776 = vld.sshfl [vmem:[#allocation1 + $0x28] sm:$0xff pattern:$0x75316420]
        %v777 = vld.sshfl [vmem:[#allocation1 + $0x30] sm:$0xff pattern:$0x75316420]
        %v778 = vld.sshfl [vmem:[#allocation1 + $0x38] sm:$0xff pattern:$0x75316420]
        %779 = vst [vmem:[#allocation1] ss:$2 sm:$0xff] %v752
        %780 = vst [vmem:[%s765] ss:$2 sm:$0xff] %v753
        %781 = vst [vmem:[%s767] ss:$2 sm:$0xff] %v754
        %782 = vst [vmem:[%s769] ss:$2 sm:$0xff] %v755
        %v783 = vld.sshfl [vmem:[#allocation1] sm:$0xff pattern:$0x75316420]
        %v784 = vld.sshfl [vmem:[#allocation1 + $0x8] sm:$0xff pattern:$0x75316420]
        %v785 = vld.sshfl [vmem:[#allocation1 + $0x10] sm:$0xff pattern:$0x75316420]
        %v786 = vld.sshfl [vmem:[#allocation1 + $0x18] sm:$0xff pattern:$0x75316420]
        %v787 = vld.sshfl [vmem:[#allocation1 + $0x20] sm:$0xff pattern:$0x75316420]
        %v788 = vld.sshfl [vmem:[#allocation1 + $0x28] sm:$0xff pattern:$0x75316420]
        %v789 = vld.sshfl [vmem:[#allocation1 + $0x30] sm:$0xff pattern:$0x75316420]
        %v790 = vld.sshfl [vmem:[#allocation1 + $0x38] sm:$0xff pattern:$0x75316420]
        %791 = vst [vmem:[#allocation1] ss:$2 sm:$0xff] %v756
        %792 = vst [vmem:[%s765] ss:$2 sm:$0xff] %v757
        %793 = vst [vmem:[%s767] ss:$2 sm:$0xff] %v758
        %794 = vst [vmem:[%s769] ss:$2 sm:$0xff] %v759
        %v795 = vld.sshfl [vmem:[#allocation1] sm:$0xff pattern:$0x75316420]
        %v796 = vld.sshfl [vmem:[#allocation1 + $0x8] sm:$0xff pattern:$0x75316420]
        %v797 = vld.sshfl [vmem:[#allocation1 + $0x10] sm:$0xff pattern:$0x75316420]
        %v798 = vld.sshfl [vmem:[#allocation1 + $0x18] sm:$0xff pattern:$0x75316420]
        %v799 = vld.sshfl [vmem:[#allocation1 + $0x20] sm:$0xff pattern:$0x75316420]
        %v800 = vld.sshfl [vmem:[#allocation1 + $0x28] sm:$0xff pattern:$0x75316420]
        %v801 = vld.sshfl [vmem:[#allocation1 + $0x30] sm:$0xff pattern:$0x75316420]
        %v802 = vld.sshfl [vmem:[#allocation1 + $0x38] sm:$0xff pattern:$0x75316420]
        %803 = vst [vmem:[#allocation1] ss:$2 sm:$0xff] %v760
        %804 = vst [vmem:[%s765] ss:$2 sm:$0xff] %v761
        %805 = vst [vmem:[%s767] ss:$2 sm:$0xff] %v762
        %806 = vst [vmem:[%s769] ss:$2 sm:$0xff] %v763
        %v807 = vld.sshfl [vmem:[#allocation1] sm:$0xff pattern:$0x75316420]
        %v808 = vld.sshfl [vmem:[#allocation1 + $0x8] sm:$0xff pattern:$0x75316420]
        %v809 = vld.sshfl [vmem:[#allocation1 + $0x10] sm:$0xff pattern:$0x75316420]
        %v810 = vld.sshfl [vmem:[#allocation1 + $0x18] sm:$0xff pattern:$0x75316420]
        %v811 = vld.sshfl [vmem:[#allocation1 + $0x20] sm:$0xff pattern:$0x75316420]
        %v812 = vld.sshfl [vmem:[#allocation1 + $0x28] sm:$0xff pattern:$0x75316420]
        %v813 = vld.sshfl [vmem:[#allocation1 + $0x30] sm:$0xff pattern:$0x75316420]
        %v814 = vld.sshfl [vmem:[#allocation1 + $0x38] sm:$0xff pattern:$0x75316420]
        %v815 = vsel %vm423, %v771, 2147483647
        %v816 = vrot.slane %v815, 4
        %vm817 = vcmp.lt.s32.totalorder %v815, %v816
        %v818 = vsel %vm817, %v815, %v816
        %v819 = vrot.slane %v818, 2
        %vm820 = vcmp.lt.s32.totalorder %v818, %v819
        %v821 = vsel %vm820, %v818, %v819
        %v822 = vrot.slane %v821, 1
        %vm823 = vcmp.lt.s32.totalorder %v821, %v822
        %v824 = vsel %vm823, %v821, %v822
        %v825 = vsel %vm423, %v772, 2147483647
        %v826 = vrot.slane %v825, 4
        %vm827 = vcmp.lt.s32.totalorder %v825, %v826
        %v828 = vsel %vm827, %v825, %v826
        %v829 = vrot.slane %v828, 2
        %vm830 = vcmp.lt.s32.totalorder %v828, %v829
        %v831 = vsel %vm830, %v828, %v829
        %v832 = vrot.slane %v831, 1
        %vm833 = vcmp.lt.s32.totalorder %v831, %v832
        %v834 = vsel %vm833, %v831, %v832
        %v835 = vsel %vm423, %v773, 2147483647
        %v836 = vrot.slane %v835, 4
        %vm837 = vcmp.lt.s32.totalorder %v835, %v836
        %v838 = vsel %vm837, %v835, %v836
        %v839 = vrot.slane %v838, 2
        %vm840 = vcmp.lt.s32.totalorder %v838, %v839
        %v841 = vsel %vm840, %v838, %v839
        %v842 = vrot.slane %v841, 1
        %vm843 = vcmp.lt.s32.totalorder %v841, %v842
        %v844 = vsel %vm843, %v841, %v842
        %v845 = vsel %vm423, %v774, 2147483647
        %v846 = vrot.slane %v845, 4
        %vm847 = vcmp.lt.s32.totalorder %v845, %v846
        %v848 = vsel %vm847, %v845, %v846
        %v849 = vrot.slane %v848, 2
        %vm850 = vcmp.lt.s32.totalorder %v848, %v849
        %v851 = vsel %vm850, %v848, %v849
        %v852 = vrot.slane %v851, 1
        %vm853 = vcmp.lt.s32.totalorder %v851, %v852
        %v854 = vsel %vm853, %v851, %v852
        %v855 = vsel %vm423, %v775, 2147483647
        %v856 = vrot.slane %v855, 4
        %vm857 = vcmp.lt.s32.totalorder %v855, %v856
        %v858 = vsel %vm857, %v855, %v856
        %v859 = vrot.slane %v858, 2
        %vm860 = vcmp.lt.s32.totalorder %v858, %v859
        %v861 = vsel %vm860, %v858, %v859
        %v862 = vrot.slane %v861, 1
        %vm863 = vcmp.lt.s32.totalorder %v861, %v862
        %v864 = vsel %vm863, %v861, %v862
        %v865 = vsel %vm423, %v776, 2147483647
        %v866 = vrot.slane %v865, 4
        %vm867 = vcmp.lt.s32.totalorder %v865, %v866
        %v868 = vsel %vm867, %v865, %v866
        %v869 = vrot.slane %v868, 2
        %vm870 = vcmp.lt.s32.totalorder %v868, %v869
        %v871 = vsel %vm870, %v868, %v869
        %v872 = vrot.slane %v871, 1
        %vm873 = vcmp.lt.s32.totalorder %v871, %v872
        %v874 = vsel %vm873, %v871, %v872
        %v875 = vsel %vm423, %v777, 2147483647
        %v876 = vrot.slane %v875, 4
        %vm877 = vcmp.lt.s32.totalorder %v875, %v876
        %v878 = vsel %vm877, %v875, %v876
        %v879 = vrot.slane %v878, 2
        %vm880 = vcmp.lt.s32.totalorder %v878, %v879
        %v881 = vsel %vm880, %v878, %v879
        %v882 = vrot.slane %v881, 1
        %vm883 = vcmp.lt.s32.totalorder %v881, %v882
        %v884 = vsel %vm883, %v881, %v882
        %v885 = vsel %vm423, %v778, 2147483647
        %v886 = vrot.slane %v885, 4
        %vm887 = vcmp.lt.s32.totalorder %v885, %v886
        %v888 = vsel %vm887, %v885, %v886
        %v889 = vrot.slane %v888, 2
        %vm890 = vcmp.lt.s32.totalorder %v888, %v889
        %v891 = vsel %vm890, %v888, %v889
        %v892 = vrot.slane %v891, 1
        %vm893 = vcmp.lt.s32.totalorder %v891, %v892
        %v894 = vsel %vm893, %v891, %v892
        %v895 = vsel %vm423, %v783, 2147483647
        %v896 = vrot.slane %v895, 4
        %vm897 = vcmp.lt.s32.totalorder %v895, %v896
        %v898 = vsel %vm897, %v895, %v896
        %v899 = vrot.slane %v898, 2
        %vm900 = vcmp.lt.s32.totalorder %v898, %v899
        %v901 = vsel %vm900, %v898, %v899
        %v902 = vrot.slane %v901, 1
        %vm903 = vcmp.lt.s32.totalorder %v901, %v902
        %v904 = vsel %vm903, %v901, %v902
        %v905 = vsel %vm423, %v784, 2147483647
        %v906 = vrot.slane %v905, 4
        %vm907 = vcmp.lt.s32.totalorder %v905, %v906
        %v908 = vsel %vm907, %v905, %v906
        %v909 = vrot.slane %v908, 2
        %vm910 = vcmp.lt.s32.totalorder %v908, %v909
        %v911 = vsel %vm910, %v908, %v909
        %v912 = vrot.slane %v911, 1
        %vm913 = vcmp.lt.s32.totalorder %v911, %v912
        %v914 = vsel %vm913, %v911, %v912
        %v915 = vsel %vm423, %v785, 2147483647
        %v916 = vrot.slane %v915, 4
        %vm917 = vcmp.lt.s32.totalorder %v915, %v916
        %v918 = vsel %vm917, %v915, %v916
        %v919 = vrot.slane %v918, 2
        %vm920 = vcmp.lt.s32.totalorder %v918, %v919
        %v921 = vsel %vm920, %v918, %v919
        %v922 = vrot.slane %v921, 1
        %vm923 = vcmp.lt.s32.totalorder %v921, %v922
        %v924 = vsel %vm923, %v921, %v922
        %v925 = vsel %vm423, %v786, 2147483647
        %v926 = vrot.slane %v925, 4
        %vm927 = vcmp.lt.s32.totalorder %v925, %v926
        %v928 = vsel %vm927, %v925, %v926
        %v929 = vrot.slane %v928, 2
        %vm930 = vcmp.lt.s32.totalorder %v928, %v929
        %v931 = vsel %vm930, %v928, %v929
        %v932 = vrot.slane %v931, 1
        %vm933 = vcmp.lt.s32.totalorder %v931, %v932
        %v934 = vsel %vm933, %v931, %v932
        %v935 = vsel %vm423, %v787, 2147483647
        %v936 = vrot.slane %v935, 4
        %vm937 = vcmp.lt.s32.totalorder %v935, %v936
        %v938 = vsel %vm937, %v935, %v936
        %v939 = vrot.slane %v938, 2
        %vm940 = vcmp.lt.s32.totalorder %v938, %v939
        %v941 = vsel %vm940, %v938, %v939
        %v942 = vrot.slane %v941, 1
        %vm943 = vcmp.lt.s32.totalorder %v941, %v942
        %v944 = vsel %vm943, %v941, %v942
        %v945 = vsel %vm423, %v788, 2147483647
        %v946 = vrot.slane %v945, 4
        %vm947 = vcmp.lt.s32.totalorder %v945, %v946
        %v948 = vsel %vm947, %v945, %v946
        %v949 = vrot.slane %v948, 2
        %vm950 = vcmp.lt.s32.totalorder %v948, %v949
        %v951 = vsel %vm950, %v948, %v949
        %v952 = vrot.slane %v951, 1
        %vm953 = vcmp.lt.s32.totalorder %v951, %v952
        %v954 = vsel %vm953, %v951, %v952
        %v955 = vsel %vm423, %v789, 2147483647
        %v956 = vrot.slane %v955, 4
        %vm957 = vcmp.lt.s32.totalorder %v955, %v956
        %v958 = vsel %vm957, %v955, %v956
        %v959 = vrot.slane %v958, 2
        %vm960 = vcmp.lt.s32.totalorder %v958, %v959
        %v961 = vsel %vm960, %v958, %v959
        %v962 = vrot.slane %v961, 1
        %vm963 = vcmp.lt.s32.totalorder %v961, %v962
        %v964 = vsel %vm963, %v961, %v962
        %v965 = vsel %vm423, %v790, 2147483647
        %v966 = vrot.slane %v965, 4
        %vm967 = vcmp.lt.s32.totalorder %v965, %v966
        %v968 = vsel %vm967, %v965, %v966
        %v969 = vrot.slane %v968, 2
        %vm970 = vcmp.lt.s32.totalorder %v968, %v969
        %v971 = vsel %vm970, %v968, %v969
        %v972 = vrot.slane %v971, 1
        %vm973 = vcmp.lt.s32.totalorder %v971, %v972
        %v974 = vsel %vm973, %v971, %v972
        %v975 = vsel %vm423, %v795, 2147483647
        %v976 = vrot.slane %v975, 4
        %vm977 = vcmp.lt.s32.totalorder %v975, %v976
        %v978 = vsel %vm977, %v975, %v976
        %v979 = vrot.slane %v978, 2
        %vm980 = vcmp.lt.s32.totalorder %v978, %v979
        %v981 = vsel %vm980, %v978, %v979
        %v982 = vrot.slane %v981, 1
        %vm983 = vcmp.lt.s32.totalorder %v981, %v982
        %v984 = vsel %vm983, %v981, %v982
        %v985 = vsel %vm423, %v796, 2147483647
        %v986 = vrot.slane %v985, 4
        %vm987 = vcmp.lt.s32.totalorder %v985, %v986
        %v988 = vsel %vm987, %v985, %v986
        %v989 = vrot.slane %v988, 2
        %vm990 = vcmp.lt.s32.totalorder %v988, %v989
        %v991 = vsel %vm990, %v988, %v989
        %v992 = vrot.slane %v991, 1
        %vm993 = vcmp.lt.s32.totalorder %v991, %v992
        %v994 = vsel %vm993, %v991, %v992
        %v995 = vsel %vm423, %v797, 2147483647
        %v996 = vrot.slane %v995, 4
        %vm997 = vcmp.lt.s32.totalorder %v995, %v996
        %v998 = vsel %vm997, %v995, %v996
        %v999 = vrot.slane %v998, 2
        %vm1000 = vcmp.lt.s32.totalorder %v998, %v999
        %v1001 = vsel %vm1000, %v998, %v999
        %v1002 = vrot.slane %v1001, 1
        %vm1003 = vcmp.lt.s32.totalorder %v1001, %v1002
        %v1004 = vsel %vm1003, %v1001, %v1002
        %v1005 = vsel %vm423, %v798, 2147483647
        %v1006 = vrot.slane %v1005, 4
        %vm1007 = vcmp.lt.s32.totalorder %v1005, %v1006
        %v1008 = vsel %vm1007, %v1005, %v1006
        %v1009 = vrot.slane %v1008, 2
        %vm1010 = vcmp.lt.s32.totalorder %v1008, %v1009
        %v1011 = vsel %vm1010, %v1008, %v1009
        %v1012 = vrot.slane %v1011, 1
        %vm1013 = vcmp.lt.s32.totalorder %v1011, %v1012
        %v1014 = vsel %vm1013, %v1011, %v1012
        %v1015 = vsel %vm423, %v799, 2147483647
        %v1016 = vrot.slane %v1015, 4
        %vm1017 = vcmp.lt.s32.totalorder %v1015, %v1016
        %v1018 = vsel %vm1017, %v1015, %v1016
        %v1019 = vrot.slane %v1018, 2
        %vm1020 = vcmp.lt.s32.totalorder %v1018, %v1019
        %v1021 = vsel %vm1020, %v1018, %v1019
        %v1022 = vrot.slane %v1021, 1
        %vm1023 = vcmp.lt.s32.totalorder %v1021, %v1022
        %v1024 = vsel %vm1023, %v1021, %v1022
        %v1025 = vsel %vm423, %v800, 2147483647
        %v1026 = vrot.slane %v1025, 4
        %vm1027 = vcmp.lt.s32.totalorder %v1025, %v1026
        %v1028 = vsel %vm1027, %v1025, %v1026
        %v1029 = vrot.slane %v1028, 2
        %vm1030 = vcmp.lt.s32.totalorder %v1028, %v1029
        %v1031 = vsel %vm1030, %v1028, %v1029
        %v1032 = vrot.slane %v1031, 1
        %vm1033 = vcmp.lt.s32.totalorder %v1031, %v1032
        %v1034 = vsel %vm1033, %v1031, %v1032
        %v1035 = vsel %vm423, %v801, 2147483647
        %v1036 = vrot.slane %v1035, 4
        %vm1037 = vcmp.lt.s32.totalorder %v1035, %v1036
        %v1038 = vsel %vm1037, %v1035, %v1036
        %v1039 = vrot.slane %v1038, 2
        %vm1040 = vcmp.lt.s32.totalorder %v1038, %v1039
        %v1041 = vsel %vm1040, %v1038, %v1039
        %v1042 = vrot.slane %v1041, 1
        %vm1043 = vcmp.lt.s32.totalorder %v1041, %v1042
        %v1044 = vsel %vm1043, %v1041, %v1042
        %v1045 = vsel %vm423, %v802, 2147483647
        %v1046 = vrot.slane %v1045, 4
        %vm1047 = vcmp.lt.s32.totalorder %v1045, %v1046
        %v1048 = vsel %vm1047, %v1045, %v1046
        %v1049 = vrot.slane %v1048, 2
        %vm1050 = vcmp.lt.s32.totalorder %v1048, %v1049
        %v1051 = vsel %vm1050, %v1048, %v1049
        %v1052 = vrot.slane %v1051, 1
        %vm1053 = vcmp.lt.s32.totalorder %v1051, %v1052
        %v1054 = vsel %vm1053, %v1051, %v1052
        %v1055 = vsel %vm423, %v807, 2147483647
        %v1056 = vrot.slane %v1055, 4
        %vm1057 = vcmp.lt.s32.totalorder %v1055, %v1056
        %v1058 = vsel %vm1057, %v1055, %v1056
        %v1059 = vrot.slane %v1058, 2
        %vm1060 = vcmp.lt.s32.totalorder %v1058, %v1059
        %v1061 = vsel %vm1060, %v1058, %v1059
        %v1062 = vrot.slane %v1061, 1
        %vm1063 = vcmp.lt.s32.totalorder %v1061, %v1062
        %v1064 = vsel %vm1063, %v1061, %v1062
        %v1065 = vsel %vm423, %v808, 2147483647
        %v1066 = vrot.slane %v1065, 4
        %vm1067 = vcmp.lt.s32.totalorder %v1065, %v1066
        %v1068 = vsel %vm1067, %v1065, %v1066
        %v1069 = vrot.slane %v1068, 2
        %vm1070 = vcmp.lt.s32.totalorder %v1068, %v1069
        %v1071 = vsel %vm1070, %v1068, %v1069
        %v1072 = vrot.slane %v1071, 1
        %vm1073 = vcmp.lt.s32.totalorder %v1071, %v1072
        %v1074 = vsel %vm1073, %v1071, %v1072
        %v1075 = vsel %vm423, %v809, 2147483647
        %v1076 = vrot.slane %v1075, 4
        %vm1077 = vcmp.lt.s32.totalorder %v1075, %v1076
        %v1078 = vsel %vm1077, %v1075, %v1076
        %v1079 = vrot.slane %v1078, 2
        %vm1080 = vcmp.lt.s32.totalorder %v1078, %v1079
        %v1081 = vsel %vm1080, %v1078, %v1079
        %v1082 = vrot.slane %v1081, 1
        %vm1083 = vcmp.lt.s32.totalorder %v1081, %v1082
        %v1084 = vsel %vm1083, %v1081, %v1082
        %v1085 = vsel %vm423, %v810, 2147483647
        %v1086 = vrot.slane %v1085, 4
        %vm1087 = vcmp.lt.s32.totalorder %v1085, %v1086
        %v1088 = vsel %vm1087, %v1085, %v1086
        %v1089 = vrot.slane %v1088, 2
        %vm1090 = vcmp.lt.s32.totalorder %v1088, %v1089
        %v1091 = vsel %vm1090, %v1088, %v1089
        %v1092 = vrot.slane %v1091, 1
        %vm1093 = vcmp.lt.s32.totalorder %v1091, %v1092
        %v1094 = vsel %vm1093, %v1091, %v1092
        %v1095 = vsel %vm423, %v811, 2147483647
        %v1096 = vrot.slane %v1095, 4
        %vm1097 = vcmp.lt.s32.totalorder %v1095, %v1096
        %v1098 = vsel %vm1097, %v1095, %v1096
        %v1099 = vrot.slane %v1098, 2
        %vm1100 = vcmp.lt.s32.totalorder %v1098, %v1099
        %v1101 = vsel %vm1100, %v1098, %v1099
        %v1102 = vrot.slane %v1101, 1
        %vm1103 = vcmp.lt.s32.totalorder %v1101, %v1102
        %v1104 = vsel %vm1103, %v1101, %v1102
        %v1105 = vsel %vm423, %v812, 2147483647
        %v1106 = vrot.slane %v1105, 4
        %vm1107 = vcmp.lt.s32.totalorder %v1105, %v1106
        %v1108 = vsel %vm1107, %v1105, %v1106
        %v1109 = vrot.slane %v1108, 2
        %vm1110 = vcmp.lt.s32.totalorder %v1108, %v1109
        %v1111 = vsel %vm1110, %v1108, %v1109
        %v1112 = vrot.slane %v1111, 1
        %vm1113 = vcmp.lt.s32.totalorder %v1111, %v1112
        %v1114 = vsel %vm1113, %v1111, %v1112
        %v1115 = vsel %vm423, %v813, 2147483647
        %v1116 = vrot.slane %v1115, 4
        %vm1117 = vcmp.lt.s32.totalorder %v1115, %v1116
        %v1118 = vsel %vm1117, %v1115, %v1116
        %v1119 = vrot.slane %v1118, 2
        %vm1120 = vcmp.lt.s32.totalorder %v1118, %v1119
        %v1121 = vsel %vm1120, %v1118, %v1119
        %v1122 = vrot.slane %v1121, 1
        %vm1123 = vcmp.lt.s32.totalorder %v1121, %v1122
        %v1124 = vsel %vm1123, %v1121, %v1122
        %v1125 = vsel %vm423, %v814, 2147483647
        %v1126 = vrot.slane %v1125, 4
        %vm1127 = vcmp.lt.s32.totalorder %v1125, %v1126
        %v1128 = vsel %vm1127, %v1125, %v1126
        %v1129 = vrot.slane %v1128, 2
        %vm1130 = vcmp.lt.s32.totalorder %v1128, %v1129
        %v1131 = vsel %vm1130, %v1128, %v1129
        %v1132 = vrot.slane %v1131, 1
        %vm1133 = vcmp.lt.s32.totalorder %v1131, %v1132
        %v1134 = vsel %vm1133, %v1131, %v1132
        %vm1135 = vcmp.eq.s32.totalorder %v323, %v824
        %vm1136 = vcmp.eq.s32.totalorder %v323, %v834
        %vm1137 = vcmp.eq.s32.totalorder %v323, %v844
        %vm1138 = vcmp.eq.s32.totalorder %v323, %v854
        %vm1139 = vcmp.eq.s32.totalorder %v323, %v864
        %vm1140 = vcmp.eq.s32.totalorder %v323, %v874
        %vm1141 = vcmp.eq.s32.totalorder %v323, %v884
        %vm1142 = vcmp.eq.s32.totalorder %v323, %v894
        %vm1143 = vcmp.eq.s32.totalorder %v323, %v904
        %vm1144 = vcmp.eq.s32.totalorder %v323, %v914
        %vm1145 = vcmp.eq.s32.totalorder %v323, %v924
        %vm1146 = vcmp.eq.s32.totalorder %v323, %v934
        %vm1147 = vcmp.eq.s32.totalorder %v323, %v944
        %vm1148 = vcmp.eq.s32.totalorder %v323, %v954
        %vm1149 = vcmp.eq.s32.totalorder %v323, %v964
        %vm1150 = vcmp.eq.s32.totalorder %v323, %v974
        %vm1151 = vcmp.eq.s32.totalorder %v323, %v984
        %vm1152 = vcmp.eq.s32.totalorder %v323, %v994
        %vm1153 = vcmp.eq.s32.totalorder %v323, %v1004
        %vm1154 = vcmp.eq.s32.totalorder %v323, %v1014
        %vm1155 = vcmp.eq.s32.totalorder %v323, %v1024
        %vm1156 = vcmp.eq.s32.totalorder %v323, %v1034
        %vm1157 = vcmp.eq.s32.totalorder %v323, %v1044
        %vm1158 = vcmp.eq.s32.totalorder %v323, %v1054
        %vm1159 = vcmp.eq.s32.totalorder %v323, %v1064
        %vm1160 = vcmp.eq.s32.totalorder %v323, %v1074
        %vm1161 = vcmp.eq.s32.totalorder %v323, %v1084
        %vm1162 = vcmp.eq.s32.totalorder %v323, %v1094
        %vm1163 = vcmp.eq.s32.totalorder %v323, %v1104
        %vm1164 = vcmp.eq.s32.totalorder %v323, %v1114
        %vm1165 = vcmp.eq.s32.totalorder %v323, %v1124
        %vm1166 = vcmp.eq.s32.totalorder %v323, %v1134
        %v1167 = vsel %vm1135, 1, 0
        %v1168 = vsel %vm1136, 1, 0
        %v1169 = vsel %vm1137, 1, 0
        %v1170 = vsel %vm1138, 1, 0
        %v1171 = vsel %vm1139, 1, 0
        %v1172 = vsel %vm1140, 1, 0
        %v1173 = vsel %vm1141, 1, 0
        %v1174 = vsel %vm1142, 1, 0
        %v1175 = vsel %vm1143, 1, 0
        %v1176 = vsel %vm1144, 1, 0
        %v1177 = vsel %vm1145, 1, 0
        %v1178 = vsel %vm1146, 1, 0
        %v1179 = vsel %vm1147, 1, 0
        %v1180 = vsel %vm1148, 1, 0
        %v1181 = vsel %vm1149, 1, 0
        %v1182 = vsel %vm1150, 1, 0
        %v1183 = vsel %vm1151, 1, 0
        %v1184 = vsel %vm1152, 1, 0
        %v1185 = vsel %vm1153, 1, 0
        %v1186 = vsel %vm1154, 1, 0
        %v1187 = vsel %vm1155, 1, 0
        %v1188 = vsel %vm1156, 1, 0
        %v1189 = vsel %vm1157, 1, 0
        %v1190 = vsel %vm1158, 1, 0
        %v1191 = vsel %vm1159, 1, 0
        %v1192 = vsel %vm1160, 1, 0
        %v1193 = vsel %vm1161, 1, 0
        %v1194 = vsel %vm1162, 1, 0
        %v1195 = vsel %vm1163, 1, 0
        %v1196 = vsel %vm1164, 1, 0
        %v1197 = vsel %vm1165, 1, 0
        %v1198 = vsel %vm1166, 1, 0
        %v1199 = vcvt.s32.f32 %v1167
        %v1200 = vcvt.s32.f32 %v1168
        %v1201 = vcvt.s32.f32 %v1169
        %v1202 = vcvt.s32.f32 %v1170
        %v1203 = vcvt.s32.f32 %v1171
        %v1204 = vcvt.s32.f32 %v1172
        %v1205 = vcvt.s32.f32 %v1173
        %v1206 = vcvt.s32.f32 %v1174
        %v1207 = vcvt.s32.f32 %v1175
        %v1208 = vcvt.s32.f32 %v1176
        %v1209 = vcvt.s32.f32 %v1177
        %v1210 = vcvt.s32.f32 %v1178
        %v1211 = vcvt.s32.f32 %v1179
        %v1212 = vcvt.s32.f32 %v1180
        %v1213 = vcvt.s32.f32 %v1181
        %v1214 = vcvt.s32.f32 %v1182
        %v1215 = vcvt.s32.f32 %v1183
        %v1216 = vcvt.s32.f32 %v1184
        %v1217 = vcvt.s32.f32 %v1185
        %v1218 = vcvt.s32.f32 %v1186
        %v1219 = vcvt.s32.f32 %v1187
        %v1220 = vcvt.s32.f32 %v1188
        %v1221 = vcvt.s32.f32 %v1189
        %v1222 = vcvt.s32.f32 %v1190
        %v1223 = vcvt.s32.f32 %v1191
        %v1224 = vcvt.s32.f32 %v1192
        %v1225 = vcvt.s32.f32 %v1193
        %v1226 = vcvt.s32.f32 %v1194
        %v1227 = vcvt.s32.f32 %v1195
        %v1228 = vcvt.s32.f32 %v1196
        %v1229 = vcvt.s32.f32 %v1197
        %v1230 = vcvt.s32.f32 %v1198
        %1247 = vst [vmem:[#allocation1] ss:$2 sm:$0xff] %v289
        %s1248 = scalar_lea.vmem [#allocation1], 16
        %1249 = vst [vmem:[%s1248] ss:$2 sm:$0xff] %v290
        %s1250 = scalar_lea.vmem [#allocation1], 32
        %1251 = vst [vmem:[%s1250] ss:$2 sm:$0xff] %v291
        %s1252 = scalar_lea.vmem [#allocation1], 48
        %1253 = vst [vmem:[%s1252] ss:$2 sm:$0xff] %v292
        %v1254 = vld.sshfl [vmem:[#allocation1] sm:$0xff pattern:$0x75316420]
        %v1255 = vld.sshfl [vmem:[#allocation1 + $0x8] sm:$0xff pattern:$0x75316420]
        %v1256 = vld.sshfl [vmem:[#allocation1 + $0x10] sm:$0xff pattern:$0x75316420]
        %v1257 = vld.sshfl [vmem:[#allocation1 + $0x18] sm:$0xff pattern:$0x75316420]
        %v1258 = vld.sshfl [vmem:[#allocation1 + $0x20] sm:$0xff pattern:$0x75316420]
        %v1259 = vld.sshfl [vmem:[#allocation1 + $0x28] sm:$0xff pattern:$0x75316420]
        %v1260 = vld.sshfl [vmem:[#allocation1 + $0x30] sm:$0xff pattern:$0x75316420]
        %v1261 = vld.sshfl [vmem:[#allocation1 + $0x38] sm:$0xff pattern:$0x75316420]
        %1262 = vst [vmem:[#allocation1] ss:$2 sm:$0xff] %v293
        %1263 = vst [vmem:[%s1248] ss:$2 sm:$0xff] %v294
        %1264 = vst [vmem:[%s1250] ss:$2 sm:$0xff] %v295
        %1265 = vst [vmem:[%s1252] ss:$2 sm:$0xff] %v296
        %v1266 = vld.sshfl [vmem:[#allocation1] sm:$0xff pattern:$0x75316420]
        %v1267 = vld.sshfl [vmem:[#allocation1 + $0x8] sm:$0xff pattern:$0x75316420]
        %v1268 = vld.sshfl [vmem:[#allocation1 + $0x10] sm:$0xff pattern:$0x75316420]
        %v1269 = vld.sshfl [vmem:[#allocation1 + $0x18] sm:$0xff pattern:$0x75316420]
        %v1270 = vld.sshfl [vmem:[#allocation1 + $0x20] sm:$0xff pattern:$0x75316420]
        %v1271 = vld.sshfl [vmem:[#allocation1 + $0x28] sm:$0xff pattern:$0x75316420]
        %v1272 = vld.sshfl [vmem:[#allocation1 + $0x30] sm:$0xff pattern:$0x75316420]
        %v1273 = vld.sshfl [vmem:[#allocation1 + $0x38] sm:$0xff pattern:$0x75316420]
        %1274 = vst [vmem:[#allocation1] ss:$2 sm:$0xff] %v297
        %1275 = vst [vmem:[%s1248] ss:$2 sm:$0xff] %v298
        %1276 = vst [vmem:[%s1250] ss:$2 sm:$0xff] %v299
        %1277 = vst [vmem:[%s1252] ss:$2 sm:$0xff] %v300
        %v1278 = vld.sshfl [vmem:[#allocation1] sm:$0xff pattern:$0x75316420]
        %v1279 = vld.sshfl [vmem:[#allocation1 + $0x8] sm:$0xff pattern:$0x75316420]
        %v1280 = vld.sshfl [vmem:[#allocation1 + $0x10] sm:$0xff pattern:$0x75316420]
        %v1281 = vld.sshfl [vmem:[#allocation1 + $0x18] sm:$0xff pattern:$0x75316420]
        %v1282 = vld.sshfl [vmem:[#allocation1 + $0x20] sm:$0xff pattern:$0x75316420]
        %v1283 = vld.sshfl [vmem:[#allocation1 + $0x28] sm:$0xff pattern:$0x75316420]
        %v1284 = vld.sshfl [vmem:[#allocation1 + $0x30] sm:$0xff pattern:$0x75316420]
        %v1285 = vld.sshfl [vmem:[#allocation1 + $0x38] sm:$0xff pattern:$0x75316420]
        %1286 = vst [vmem:[#allocation1] ss:$2 sm:$0xff] %v301
        %1287 = vst [vmem:[%s1248] ss:$2 sm:$0xff] %v302
        %1288 = vst [vmem:[%s1250] ss:$2 sm:$0xff] %v303
        %1289 = vst [vmem:[%s1252] ss:$2 sm:$0xff] %v304
        %v1290 = vld.sshfl [vmem:[#allocation1] sm:$0xff pattern:$0x75316420]
        %v1291 = vld.sshfl [vmem:[#allocation1 + $0x8] sm:$0xff pattern:$0x75316420]
        %v1292 = vld.sshfl [vmem:[#allocation1 + $0x10] sm:$0xff pattern:$0x75316420]
        %v1293 = vld.sshfl [vmem:[#allocation1 + $0x18] sm:$0xff pattern:$0x75316420]
        %v1294 = vld.sshfl [vmem:[#allocation1 + $0x20] sm:$0xff pattern:$0x75316420]
        %v1295 = vld.sshfl [vmem:[#allocation1 + $0x28] sm:$0xff pattern:$0x75316420]
        %v1296 = vld.sshfl [vmem:[#allocation1 + $0x30] sm:$0xff pattern:$0x75316420]
        %v1297 = vld.sshfl [vmem:[#allocation1 + $0x38] sm:$0xff pattern:$0x75316420]
        %v1330 = vsel %vm423, %v1254, -inf
        %v1331 = vrot.slane %v1330, 4
        %v1332 = vmax.f32 %v1330, %v1331
        %v1333 = vrot.slane %v1332, 2
        %v1334 = vmax.f32 %v1332, %v1333
        %v1335 = vrot.slane %v1334, 1
        %v1336 = vmax.f32 %v1334, %v1335
        %v1337 = vsel %vm423, %v1255, -inf
        %v1338 = vrot.slane %v1337, 4
        %v1339 = vmax.f32 %v1337, %v1338
        %v1340 = vrot.slane %v1339, 2
        %v1341 = vmax.f32 %v1339, %v1340
        %v1342 = vrot.slane %v1341, 1
        %v1343 = vmax.f32 %v1341, %v1342
        %v1344 = vsel %vm423, %v1256, -inf
        %v1345 = vrot.slane %v1344, 4
        %v1346 = vmax.f32 %v1344, %v1345
        %v1347 = vrot.slane %v1346, 2
        %v1348 = vmax.f32 %v1346, %v1347
        %v1349 = vrot.slane %v1348, 1
        %v1350 = vmax.f32 %v1348, %v1349
        %v1351 = vsel %vm423, %v1257, -inf
        %v1352 = vrot.slane %v1351, 4
        %v1353 = vmax.f32 %v1351, %v1352
        %v1354 = vrot.slane %v1353, 2
        %v1355 = vmax.f32 %v1353, %v1354
        %v1356 = vrot.slane %v1355, 1
        %v1357 = vmax.f32 %v1355, %v1356
        %v1358 = vsel %vm423, %v1258, -inf
        %v1359 = vrot.slane %v1358, 4
        %v1360 = vmax.f32 %v1358, %v1359
        %v1361 = vrot.slane %v1360, 2
        %v1362 = vmax.f32 %v1360, %v1361
        %v1363 = vrot.slane %v1362, 1
        %v1364 = vmax.f32 %v1362, %v1363
        %v1365 = vsel %vm423, %v1259, -inf
        %v1366 = vrot.slane %v1365, 4
        %v1367 = vmax.f32 %v1365, %v1366
        %v1368 = vrot.slane %v1367, 2
        %v1369 = vmax.f32 %v1367, %v1368
        %v1370 = vrot.slane %v1369, 1
        %v1371 = vmax.f32 %v1369, %v1370
        %v1372 = vsel %vm423, %v1260, -inf
        %v1373 = vrot.slane %v1372, 4
        %v1374 = vmax.f32 %v1372, %v1373
        %v1375 = vrot.slane %v1374, 2
        %v1376 = vmax.f32 %v1374, %v1375
        %v1377 = vrot.slane %v1376, 1
        %v1378 = vmax.f32 %v1376, %v1377
        %v1379 = vsel %vm423, %v1261, -inf
        %v1380 = vrot.slane %v1379, 4
        %v1381 = vmax.f32 %v1379, %v1380
        %v1382 = vrot.slane %v1381, 2
        %v1383 = vmax.f32 %v1381, %v1382
        %v1384 = vrot.slane %v1383, 1
        %v1385 = vmax.f32 %v1383, %v1384
        %v1386 = vsel %vm423, %v1266, -inf
        %v1387 = vrot.slane %v1386, 4
        %v1388 = vmax.f32 %v1386, %v1387
        %v1389 = vrot.slane %v1388, 2
        %v1390 = vmax.f32 %v1388, %v1389
        %v1391 = vrot.slane %v1390, 1
        %v1392 = vmax.f32 %v1390, %v1391
        %v1393 = vsel %vm423, %v1267, -inf
        %v1394 = vrot.slane %v1393, 4
        %v1395 = vmax.f32 %v1393, %v1394
        %v1396 = vrot.slane %v1395, 2
        %v1397 = vmax.f32 %v1395, %v1396
        %v1398 = vrot.slane %v1397, 1
        %v1399 = vmax.f32 %v1397, %v1398
        %v1400 = vsel %vm423, %v1268, -inf
        %v1401 = vrot.slane %v1400, 4
        %v1402 = vmax.f32 %v1400, %v1401
        %v1403 = vrot.slane %v1402, 2
        %v1404 = vmax.f32 %v1402, %v1403
        %v1405 = vrot.slane %v1404, 1
        %v1406 = vmax.f32 %v1404, %v1405
        %v1407 = vsel %vm423, %v1269, -inf
        %v1408 = vrot.slane %v1407, 4
        %v1409 = vmax.f32 %v1407, %v1408
        %v1410 = vrot.slane %v1409, 2
        %v1411 = vmax.f32 %v1409, %v1410
        %v1412 = vrot.slane %v1411, 1
        %v1413 = vmax.f32 %v1411, %v1412
        %v1414 = vsel %vm423, %v1270, -inf
        %v1415 = vrot.slane %v1414, 4
        %v1416 = vmax.f32 %v1414, %v1415
        %v1417 = vrot.slane %v1416, 2
        %v1418 = vmax.f32 %v1416, %v1417
        %v1419 = vrot.slane %v1418, 1
        %v1420 = vmax.f32 %v1418, %v1419
        %v1421 = vsel %vm423, %v1271, -inf
        %v1422 = vrot.slane %v1421, 4
        %v1423 = vmax.f32 %v1421, %v1422
        %v1424 = vrot.slane %v1423, 2
        %v1425 = vmax.f32 %v1423, %v1424
        %v1426 = vrot.slane %v1425, 1
        %v1427 = vmax.f32 %v1425, %v1426
        %v1428 = vsel %vm423, %v1272, -inf
        %v1429 = vrot.slane %v1428, 4
        %v1430 = vmax.f32 %v1428, %v1429
        %v1431 = vrot.slane %v1430, 2
        %v1432 = vmax.f32 %v1430, %v1431
        %v1433 = vrot.slane %v1432, 1
        %v1434 = vmax.f32 %v1432, %v1433
        %v1435 = vsel %vm423, %v1273, -inf
        %v1436 = vrot.slane %v1435, 4
        %v1437 = vmax.f32 %v1435, %v1436
        %v1438 = vrot.slane %v1437, 2
        %v1439 = vmax.f32 %v1437, %v1438
        %v1440 = vrot.slane %v1439, 1
        %v1441 = vmax.f32 %v1439, %v1440
        %v1442 = vsel %vm423, %v1278, -inf
        %v1443 = vrot.slane %v1442, 4
        %v1444 = vmax.f32 %v1442, %v1443
        %v1445 = vrot.slane %v1444, 2
        %v1446 = vmax.f32 %v1444, %v1445
        %v1447 = vrot.slane %v1446, 1
        %v1448 = vmax.f32 %v1446, %v1447
        %v1449 = vsel %vm423, %v1279, -inf
        %v1450 = vrot.slane %v1449, 4
        %v1451 = vmax.f32 %v1449, %v1450
        %v1452 = vrot.slane %v1451, 2
        %v1453 = vmax.f32 %v1451, %v1452
        %v1454 = vrot.slane %v1453, 1
        %v1455 = vmax.f32 %v1453, %v1454
        %v1456 = vsel %vm423, %v1280, -inf
        %v1457 = vrot.slane %v1456, 4
        %v1458 = vmax.f32 %v1456, %v1457
        %v1459 = vrot.slane %v1458, 2
        %v1460 = vmax.f32 %v1458, %v1459
        %v1461 = vrot.slane %v1460, 1
        %v1462 = vmax.f32 %v1460, %v1461
        %v1463 = vsel %vm423, %v1281, -inf
        %v1464 = vrot.slane %v1463, 4
        %v1465 = vmax.f32 %v1463, %v1464
        %v1466 = vrot.slane %v1465, 2
        %v1467 = vmax.f32 %v1465, %v1466
        %v1468 = vrot.slane %v1467, 1
        %v1469 = vmax.f32 %v1467, %v1468
        %v1470 = vsel %vm423, %v1282, -inf
        %v1471 = vrot.slane %v1470, 4
        %v1472 = vmax.f32 %v1470, %v1471
        %v1473 = vrot.slane %v1472, 2
        %v1474 = vmax.f32 %v1472, %v1473
        %v1475 = vrot.slane %v1474, 1
        %v1476 = vmax.f32 %v1474, %v1475
        %v1477 = vsel %vm423, %v1283, -inf
        %v1478 = vrot.slane %v1477, 4
        %v1479 = vmax.f32 %v1477, %v1478
        %v1480 = vrot.slane %v1479, 2
        %v1481 = vmax.f32 %v1479, %v1480
        %v1482 = vrot.slane %v1481, 1
        %v1483 = vmax.f32 %v1481, %v1482
        %v1484 = vsel %vm423, %v1284, -inf
        %v1485 = vrot.slane %v1484, 4
        %v1486 = vmax.f32 %v1484, %v1485
        %v1487 = vrot.slane %v1486, 2
        %v1488 = vmax.f32 %v1486, %v1487
        %v1489 = vrot.slane %v1488, 1
        %v1490 = vmax.f32 %v1488, %v1489
        %v1491 = vsel %vm423, %v1285, -inf
        %v1492 = vrot.slane %v1491, 4
        %v1493 = vmax.f32 %v1491, %v1492
        %v1494 = vrot.slane %v1493, 2
        %v1495 = vmax.f32 %v1493, %v1494
        %v1496 = vrot.slane %v1495, 1
        %v1497 = vmax.f32 %v1495, %v1496
        %v1498 = vsel %vm423, %v1290, -inf
        %v1499 = vrot.slane %v1498, 4
        %v1500 = vmax.f32 %v1498, %v1499
        %v1501 = vrot.slane %v1500, 2
        %v1502 = vmax.f32 %v1500, %v1501
        %v1503 = vrot.slane %v1502, 1
        %v1504 = vmax.f32 %v1502, %v1503
        %v1505 = vsel %vm423, %v1291, -inf
        %v1506 = vrot.slane %v1505, 4
        %v1507 = vmax.f32 %v1505, %v1506
        %v1508 = vrot.slane %v1507, 2
        %v1509 = vmax.f32 %v1507, %v1508
        %v1510 = vrot.slane %v1509, 1
        %v1511 = vmax.f32 %v1509, %v1510
        %v1512 = vsel %vm423, %v1292, -inf
        %v1513 = vrot.slane %v1512, 4
        %v1514 = vmax.f32 %v1512, %v1513
        %v1515 = vrot.slane %v1514, 2
        %v1516 = vmax.f32 %v1514, %v1515
        %v1517 = vrot.slane %v1516, 1
        %v1518 = vmax.f32 %v1516, %v1517
        %v1519 = vsel %vm423, %v1293, -inf
        %v1520 = vrot.slane %v1519, 4
        %v1521 = vmax.f32 %v1519, %v1520
        %v1522 = vrot.slane %v1521, 2
        %v1523 = vmax.f32 %v1521, %v1522
        %v1524 = vrot.slane %v1523, 1
        %v1525 = vmax.f32 %v1523, %v1524
        %v1526 = vsel %vm423, %v1294, -inf
        %v1527 = vrot.slane %v1526, 4
        %v1528 = vmax.f32 %v1526, %v1527
        %v1529 = vrot.slane %v1528, 2
        %v1530 = vmax.f32 %v1528, %v1529
        %v1531 = vrot.slane %v1530, 1
        %v1532 = vmax.f32 %v1530, %v1531
        %v1533 = vsel %vm423, %v1295, -inf
        %v1534 = vrot.slane %v1533, 4
        %v1535 = vmax.f32 %v1533, %v1534
        %v1536 = vrot.slane %v1535, 2
        %v1537 = vmax.f32 %v1535, %v1536
        %v1538 = vrot.slane %v1537, 1
        %v1539 = vmax.f32 %v1537, %v1538
        %v1540 = vsel %vm423, %v1296, -inf
        %v1541 = vrot.slane %v1540, 4
        %v1542 = vmax.f32 %v1540, %v1541
        %v1543 = vrot.slane %v1542, 2
        %v1544 = vmax.f32 %v1542, %v1543
        %v1545 = vrot.slane %v1544, 1
        %v1546 = vmax.f32 %v1544, %v1545
        %v1547 = vsel %vm423, %v1297, -inf
        %v1548 = vrot.slane %v1547, 4
        %v1549 = vmax.f32 %v1547, %v1548
        %v1550 = vrot.slane %v1549, 2
        %v1551 = vmax.f32 %v1549, %v1550
        %v1552 = vrot.slane %v1551, 1
        %v1553 = vmax.f32 %v1551, %v1552
        %v1586 = vrot.slane %v1343, 4
        %v1587 = vrot.slane %v1357, 4
        %v1588 = vrot.slane %v1371, 4
        %v1589 = vrot.slane %v1385, 4
        %v1590 = vrot.slane %v1399, 4
        %v1591 = vrot.slane %v1413, 4
        %v1592 = vrot.slane %v1427, 4
        %v1593 = vrot.slane %v1441, 4
        %v1594 = vrot.slane %v1455, 4
        %v1595 = vrot.slane %v1469, 4
        %v1596 = vrot.slane %v1483, 4
        %v1597 = vrot.slane %v1497, 4
        %v1598 = vrot.slane %v1511, 4
        %v1599 = vrot.slane %v1525, 4
        %v1600 = vrot.slane %v1539, 4
        %v1601 = vrot.slane %v1553, 4
        %v1602 = vsel %vm423, %v1336, %v1586
        %v1603 = vsel %vm423, %v1350, %v1587
        %v1604 = vsel %vm423, %v1364, %v1588
        %v1605 = vsel %vm423, %v1378, %v1589
        %v1606 = vsel %vm423, %v1392, %v1590
        %v1607 = vsel %vm423, %v1406, %v1591
        %v1608 = vsel %vm423, %v1420, %v1592
        %v1609 = vsel %vm423, %v1434, %v1593
        %v1610 = vsel %vm423, %v1448, %v1594
        %v1611 = vsel %vm423, %v1462, %v1595
        %v1612 = vsel %vm423, %v1476, %v1596
        %v1613 = vsel %vm423, %v1490, %v1597
        %v1614 = vsel %vm423, %v1504, %v1598
        %v1615 = vsel %vm423, %v1518, %v1599
        %v1616 = vsel %vm423, %v1532, %v1600
        %v1617 = vsel %vm423, %v1546, %v1601
        %v1634 = vsub.f32 %v289, %v1602
        %v1635 = vsub.f32 %v290, %v1603
        %v1636 = vsub.f32 %v291, %v1604
        %v1637 = vsub.f32 %v292, %v1605
        %v1638 = vsub.f32 %v293, %v1606
        %v1639 = vsub.f32 %v294, %v1607
        %v1640 = vsub.f32 %v295, %v1608
        %v1641 = vsub.f32 %v296, %v1609
        %v1642 = vsub.f32 %v297, %v1610
        %v1643 = vsub.f32 %v298, %v1611
        %v1644 = vsub.f32 %v299, %v1612
        %v1645 = vsub.f32 %v300, %v1613
        %v1646 = vsub.f32 %v301, %v1614
        %v1647 = vsub.f32 %v302, %v1615
        %v1648 = vsub.f32 %v303, %v1616
        %v1649 = vsub.f32 %v304, %v1617
        %v1650 = vmul.f32 %v1634, 1.442695
        %v1651 = vpow.pop %v1650
        %v1652 = vmul.f32 %v1635, 1.442695
        %v1653 = vpow.pop %v1652
        %v1654 = vmul.f32 %v1636, 1.442695
        %v1655 = vpow.pop %v1654
        %v1656 = vmul.f32 %v1637, 1.442695
        %v1657 = vpow.pop %v1656
        %v1658 = vmul.f32 %v1638, 1.442695
        %v1659 = vpow.pop %v1658
        %v1660 = vmul.f32 %v1639, 1.442695
        %v1661 = vpow.pop %v1660
        %v1662 = vmul.f32 %v1640, 1.442695
        %v1663 = vpow.pop %v1662
        %v1664 = vmul.f32 %v1641, 1.442695
        %v1665 = vpow.pop %v1664
        %v1666 = vmul.f32 %v1642, 1.442695
        %v1667 = vpow.pop %v1666
        %v1668 = vmul.f32 %v1643, 1.442695
        %v1669 = vpow.pop %v1668
        %v1670 = vmul.f32 %v1644, 1.442695
        %v1671 = vpow.pop %v1670
        %v1672 = vmul.f32 %v1645, 1.442695
        %v1673 = vpow.pop %v1672
        %v1674 = vmul.f32 %v1646, 1.442695
        %v1675 = vpow.pop %v1674
        %v1676 = vmul.f32 %v1647, 1.442695
        %v1677 = vpow.pop %v1676
        %v1678 = vmul.f32 %v1648, 1.442695
        %v1679 = vpow.pop %v1678
        %v1680 = vmul.f32 %v1649, 1.442695
        %v1681 = vpow.pop %v1680
        %1698 = vst [vmem:[#allocation1] ss:$2 sm:$0xff] %v1651
        %s1699 = scalar_lea.vmem [#allocation1], 16
        %1700 = vst [vmem:[%s1699] ss:$2 sm:$0xff] %v1653
        %s1701 = scalar_lea.vmem [#allocation1], 32
        %1702 = vst [vmem:[%s1701] ss:$2 sm:$0xff] %v1655
        %s1703 = scalar_lea.vmem [#allocation1], 48
        %1704 = vst [vmem:[%s1703] ss:$2 sm:$0xff] %v1657
        %v1705 = vld.sshfl [vmem:[#allocation1] sm:$0xff pattern:$0x75316420]
        %v1706 = vld.sshfl [vmem:[#allocation1 + $0x8] sm:$0xff pattern:$0x75316420]
        %v1707 = vld.sshfl [vmem:[#allocation1 + $0x10] sm:$0xff pattern:$0x75316420]
        %v1708 = vld.sshfl [vmem:[#allocation1 + $0x18] sm:$0xff pattern:$0x75316420]
        %v1709 = vld.sshfl [vmem:[#allocation1 + $0x20] sm:$0xff pattern:$0x75316420]
        %v1710 = vld.sshfl [vmem:[#allocation1 + $0x28] sm:$0xff pattern:$0x75316420]
        %v1711 = vld.sshfl [vmem:[#allocation1 + $0x30] sm:$0xff pattern:$0x75316420]
        %v1712 = vld.sshfl [vmem:[#allocation1 + $0x38] sm:$0xff pattern:$0x75316420]
        %1713 = vst [vmem:[#allocation1] ss:$2 sm:$0xff] %v1659
        %1714 = vst [vmem:[%s1699] ss:$2 sm:$0xff] %v1661
        %1715 = vst [vmem:[%s1701] ss:$2 sm:$0xff] %v1663
        %1716 = vst [vmem:[%s1703] ss:$2 sm:$0xff] %v1665
        %v1717 = vld.sshfl [vmem:[#allocation1] sm:$0xff pattern:$0x75316420]
        %v1718 = vld.sshfl [vmem:[#allocation1 + $0x8] sm:$0xff pattern:$0x75316420]
        %v1719 = vld.sshfl [vmem:[#allocation1 + $0x10] sm:$0xff pattern:$0x75316420]
        %v1720 = vld.sshfl [vmem:[#allocation1 + $0x18] sm:$0xff pattern:$0x75316420]
        %v1721 = vld.sshfl [vmem:[#allocation1 + $0x20] sm:$0xff pattern:$0x75316420]
        %v1722 = vld.sshfl [vmem:[#allocation1 + $0x28] sm:$0xff pattern:$0x75316420]
        %v1723 = vld.sshfl [vmem:[#allocation1 + $0x30] sm:$0xff pattern:$0x75316420]
        %v1724 = vld.sshfl [vmem:[#allocation1 + $0x38] sm:$0xff pattern:$0x75316420]
        %1725 = vst [vmem:[#allocation1] ss:$2 sm:$0xff] %v1667
        %1726 = vst [vmem:[%s1699] ss:$2 sm:$0xff] %v1669
        %1727 = vst [vmem:[%s1701] ss:$2 sm:$0xff] %v1671
        %1728 = vst [vmem:[%s1703] ss:$2 sm:$0xff] %v1673
        %v1729 = vld.sshfl [vmem:[#allocation1] sm:$0xff pattern:$0x75316420]
        %v1730 = vld.sshfl [vmem:[#allocation1 + $0x8] sm:$0xff pattern:$0x75316420]
        %v1731 = vld.sshfl [vmem:[#allocation1 + $0x10] sm:$0xff pattern:$0x75316420]
        %v1732 = vld.sshfl [vmem:[#allocation1 + $0x18] sm:$0xff pattern:$0x75316420]
        %v1733 = vld.sshfl [vmem:[#allocation1 + $0x20] sm:$0xff pattern:$0x75316420]
        %v1734 = vld.sshfl [vmem:[#allocation1 + $0x28] sm:$0xff pattern:$0x75316420]
        %v1735 = vld.sshfl [vmem:[#allocation1 + $0x30] sm:$0xff pattern:$0x75316420]
        %v1736 = vld.sshfl [vmem:[#allocation1 + $0x38] sm:$0xff pattern:$0x75316420]
        %1737 = vst [vmem:[#allocation1] ss:$2 sm:$0xff] %v1675
        %1738 = vst [vmem:[%s1699] ss:$2 sm:$0xff] %v1677
        %1739 = vst [vmem:[%s1701] ss:$2 sm:$0xff] %v1679
        %1740 = vst [vmem:[%s1703] ss:$2 sm:$0xff] %v1681
        %v1741 = vld.sshfl [vmem:[#allocation1] sm:$0xff pattern:$0x75316420]
        %v1742 = vld.sshfl [vmem:[#allocation1 + $0x8] sm:$0xff pattern:$0x75316420]
        %v1743 = vld.sshfl [vmem:[#allocation1 + $0x10] sm:$0xff pattern:$0x75316420]
        %v1744 = vld.sshfl [vmem:[#allocation1 + $0x18] sm:$0xff pattern:$0x75316420]
        %v1745 = vld.sshfl [vmem:[#allocation1 + $0x20] sm:$0xff pattern:$0x75316420]
        %v1746 = vld.sshfl [vmem:[#allocation1 + $0x28] sm:$0xff pattern:$0x75316420]
        %v1747 = vld.sshfl [vmem:[#allocation1 + $0x30] sm:$0xff pattern:$0x75316420]
        %v1748 = vld.sshfl [vmem:[#allocation1 + $0x38] sm:$0xff pattern:$0x75316420]
        %v1781 = vsel %vm423, %v1705, 0.0
        %v1782 = vrot.slane %v1781, 4
        %v1783 = vadd.f32 %v1781, %v1782
        %v1784 = vrot.slane %v1783, 2
        %v1785 = vadd.f32 %v1783, %v1784
        %v1786 = vrot.slane %v1785, 1
        %v1787 = vadd.f32 %v1785, %v1786
        %v1788 = vsel %vm423, %v1706, 0.0
        %v1789 = vrot.slane %v1788, 4
        %v1790 = vadd.f32 %v1788, %v1789
        %v1791 = vrot.slane %v1790, 2
        %v1792 = vadd.f32 %v1790, %v1791
        %v1793 = vrot.slane %v1792, 1
        %v1794 = vadd.f32 %v1792, %v1793
        %v1795 = vsel %vm423, %v1707, 0.0
        %v1796 = vrot.slane %v1795, 4
        %v1797 = vadd.f32 %v1795, %v1796
        %v1798 = vrot.slane %v1797, 2
        %v1799 = vadd.f32 %v1797, %v1798
        %v1800 = vrot.slane %v1799, 1
        %v1801 = vadd.f32 %v1799, %v1800
        %v1802 = vsel %vm423, %v1708, 0.0
        %v1803 = vrot.slane %v1802, 4
        %v1804 = vadd.f32 %v1802, %v1803
        %v1805 = vrot.slane %v1804, 2
        %v1806 = vadd.f32 %v1804, %v1805
        %v1807 = vrot.slane %v1806, 1
        %v1808 = vadd.f32 %v1806, %v1807
        %v1809 = vsel %vm423, %v1709, 0.0
        %v1810 = vrot.slane %v1809, 4
        %v1811 = vadd.f32 %v1809, %v1810
        %v1812 = vrot.slane %v1811, 2
        %v1813 = vadd.f32 %v1811, %v1812
        %v1814 = vrot.slane %v1813, 1
        %v1815 = vadd.f32 %v1813, %v1814
        %v1816 = vsel %vm423, %v1710, 0.0
        %v1817 = vrot.slane %v1816, 4
        %v1818 = vadd.f32 %v1816, %v1817
        %v1819 = vrot.slane %v1818, 2
        %v1820 = vadd.f32 %v1818, %v1819
        %v1821 = vrot.slane %v1820, 1
        %v1822 = vadd.f32 %v1820, %v1821
        %v1823 = vsel %vm423, %v1711, 0.0
        %v1824 = vrot.slane %v1823, 4
        %v1825 = vadd.f32 %v1823, %v1824
        %v1826 = vrot.slane %v1825, 2
        %v1827 = vadd.f32 %v1825, %v1826
        %v1828 = vrot.slane %v1827, 1
        %v1829 = vadd.f32 %v1827, %v1828
        %v1830 = vsel %vm423, %v1712, 0.0
        %v1831 = vrot.slane %v1830, 4
        %v1832 = vadd.f32 %v1830, %v1831
        %v1833 = vrot.slane %v1832, 2
        %v1834 = vadd.f32 %v1832, %v1833
        %v1835 = vrot.slane %v1834, 1
        %v1836 = vadd.f32 %v1834, %v1835
        %v1837 = vsel %vm423, %v1717, 0.0
        %v1838 = vrot.slane %v1837, 4
        %v1839 = vadd.f32 %v1837, %v1838
        %v1840 = vrot.slane %v1839, 2
        %v1841 = vadd.f32 %v1839, %v1840
        %v1842 = vrot.slane %v1841, 1
        %v1843 = vadd.f32 %v1841, %v1842
        %v1844 = vsel %vm423, %v1718, 0.0
        %v1845 = vrot.slane %v1844, 4
        %v1846 = vadd.f32 %v1844, %v1845
        %v1847 = vrot.slane %v1846, 2
        %v1848 = vadd.f32 %v1846, %v1847
        %v1849 = vrot.slane %v1848, 1
        %v1850 = vadd.f32 %v1848, %v1849
        %v1851 = vsel %vm423, %v1719, 0.0
        %v1852 = vrot.slane %v1851, 4
        %v1853 = vadd.f32 %v1851, %v1852
        %v1854 = vrot.slane %v1853, 2
        %v1855 = vadd.f32 %v1853, %v1854
        %v1856 = vrot.slane %v1855, 1
        %v1857 = vadd.f32 %v1855, %v1856
        %v1858 = vsel %vm423, %v1720, 0.0
        %v1859 = vrot.slane %v1858, 4
        %v1860 = vadd.f32 %v1858, %v1859
        %v1861 = vrot.slane %v1860, 2
        %v1862 = vadd.f32 %v1860, %v1861
        %v1863 = vrot.slane %v1862, 1
        %v1864 = vadd.f32 %v1862, %v1863
        %v1865 = vsel %vm423, %v1721, 0.0
        %v1866 = vrot.slane %v1865, 4
        %v1867 = vadd.f32 %v1865, %v1866
        %v1868 = vrot.slane %v1867, 2
        %v1869 = vadd.f32 %v1867, %v1868
        %v1870 = vrot.slane %v1869, 1
        %v1871 = vadd.f32 %v1869, %v1870
        %v1872 = vsel %vm423, %v1722, 0.0
        %v1873 = vrot.slane %v1872, 4
        %v1874 = vadd.f32 %v1872, %v1873
        %v1875 = vrot.slane %v1874, 2
        %v1876 = vadd.f32 %v1874, %v1875
        %v1877 = vrot.slane %v1876, 1
        %v1878 = vadd.f32 %v1876, %v1877
        %v1879 = vsel %vm423, %v1723, 0.0
        %v1880 = vrot.slane %v1879, 4
        %v1881 = vadd.f32 %v1879, %v1880
        %v1882 = vrot.slane %v1881, 2
        %v1883 = vadd.f32 %v1881, %v1882
        %v1884 = vrot.slane %v1883, 1
        %v1885 = vadd.f32 %v1883, %v1884
        %v1886 = vsel %vm423, %v1724, 0.0
        %v1887 = vrot.slane %v1886, 4
        %v1888 = vadd.f32 %v1886, %v1887
        %v1889 = vrot.slane %v1888, 2
        %v1890 = vadd.f32 %v1888, %v1889
        %v1891 = vrot.slane %v1890, 1
        %v1892 = vadd.f32 %v1890, %v1891
        %v1893 = vsel %vm423, %v1729, 0.0
        %v1894 = vrot.slane %v1893, 4
        %v1895 = vadd.f32 %v1893, %v1894
        %v1896 = vrot.slane %v1895, 2
        %v1897 = vadd.f32 %v1895, %v1896
        %v1898 = vrot.slane %v1897, 1
        %v1899 = vadd.f32 %v1897, %v1898
        %v1900 = vsel %vm423, %v1730, 0.0
        %v1901 = vrot.slane %v1900, 4
        %v1902 = vadd.f32 %v1900, %v1901
        %v1903 = vrot.slane %v1902, 2
        %v1904 = vadd.f32 %v1902, %v1903
        %v1905 = vrot.slane %v1904, 1
        %v1906 = vadd.f32 %v1904, %v1905
        %v1907 = vsel %vm423, %v1731, 0.0
        %v1908 = vrot.slane %v1907, 4
        %v1909 = vadd.f32 %v1907, %v1908
        %v1910 = vrot.slane %v1909, 2
        %v1911 = vadd.f32 %v1909, %v1910
        %v1912 = vrot.slane %v1911, 1
        %v1913 = vadd.f32 %v1911, %v1912
        %v1914 = vsel %vm423, %v1732, 0.0
        %v1915 = vrot.slane %v1914, 4
        %v1916 = vadd.f32 %v1914, %v1915
        %v1917 = vrot.slane %v1916, 2
        %v1918 = vadd.f32 %v1916, %v1917
        %v1919 = vrot.slane %v1918, 1
        %v1920 = vadd.f32 %v1918, %v1919
        %v1921 = vsel %vm423, %v1733, 0.0
        %v1922 = vrot.slane %v1921, 4
        %v1923 = vadd.f32 %v1921, %v1922
        %v1924 = vrot.slane %v1923, 2
        %v1925 = vadd.f32 %v1923, %v1924
        %v1926 = vrot.slane %v1925, 1
        %v1927 = vadd.f32 %v1925, %v1926
        %v1928 = vsel %vm423, %v1734, 0.0
        %v1929 = vrot.slane %v1928, 4
        %v1930 = vadd.f32 %v1928, %v1929
        %v1931 = vrot.slane %v1930, 2
        %v1932 = vadd.f32 %v1930, %v1931
        %v1933 = vrot.slane %v1932, 1
        %v1934 = vadd.f32 %v1932, %v1933
        %v1935 = vsel %vm423, %v1735, 0.0
        %v1936 = vrot.slane %v1935, 4
        %v1937 = vadd.f32 %v1935, %v1936
        %v1938 = vrot.slane %v1937, 2
        %v1939 = vadd.f32 %v1937, %v1938
        %v1940 = vrot.slane %v1939, 1
        %v1941 = vadd.f32 %v1939, %v1940
        %v1942 = vsel %vm423, %v1736, 0.0
        %v1943 = vrot.slane %v1942, 4
        %v1944 = vadd.f32 %v1942, %v1943
        %v1945 = vrot.slane %v1944, 2
        %v1946 = vadd.f32 %v1944, %v1945
        %v1947 = vrot.slane %v1946, 1
        %v1948 = vadd.f32 %v1946, %v1947
        %v1949 = vsel %vm423, %v1741, 0.0
        %v1950 = vrot.slane %v1949, 4
        %v1951 = vadd.f32 %v1949, %v1950
        %v1952 = vrot.slane %v1951, 2
        %v1953 = vadd.f32 %v1951, %v1952
        %v1954 = vrot.slane %v1953, 1
        %v1955 = vadd.f32 %v1953, %v1954
        %v1956 = vsel %vm423, %v1742, 0.0
        %v1957 = vrot.slane %v1956, 4
        %v1958 = vadd.f32 %v1956, %v1957
        %v1959 = vrot.slane %v1958, 2
        %v1960 = vadd.f32 %v1958, %v1959
        %v1961 = vrot.slane %v1960, 1
        %v1962 = vadd.f32 %v1960, %v1961
        %v1963 = vsel %vm423, %v1743, 0.0
        %v1964 = vrot.slane %v1963, 4
        %v1965 = vadd.f32 %v1963, %v1964
        %v1966 = vrot.slane %v1965, 2
        %v1967 = vadd.f32 %v1965, %v1966
        %v1968 = vrot.slane %v1967, 1
        %v1969 = vadd.f32 %v1967, %v1968
        %v1970 = vsel %vm423, %v1744, 0.0
        %v1971 = vrot.slane %v1970, 4
        %v1972 = vadd.f32 %v1970, %v1971
        %v1973 = vrot.slane %v1972, 2
        %v1974 = vadd.f32 %v1972, %v1973
        %v1975 = vrot.slane %v1974, 1
        %v1976 = vadd.f32 %v1974, %v1975
        %v1977 = vsel %vm423, %v1745, 0.0
        %v1978 = vrot.slane %v1977, 4
        %v1979 = vadd.f32 %v1977, %v1978
        %v1980 = vrot.slane %v1979, 2
        %v1981 = vadd.f32 %v1979, %v1980
        %v1982 = vrot.slane %v1981, 1
        %v1983 = vadd.f32 %v1981, %v1982
        %v1984 = vsel %vm423, %v1746, 0.0
        %v1985 = vrot.slane %v1984, 4
        %v1986 = vadd.f32 %v1984, %v1985
        %v1987 = vrot.slane %v1986, 2
        %v1988 = vadd.f32 %v1986, %v1987
        %v1989 = vrot.slane %v1988, 1
        %v1990 = vadd.f32 %v1988, %v1989
        %v1991 = vsel %vm423, %v1747, 0.0
        %v1992 = vrot.slane %v1991, 4
        %v1993 = vadd.f32 %v1991, %v1992
        %v1994 = vrot.slane %v1993, 2
        %v1995 = vadd.f32 %v1993, %v1994
        %v1996 = vrot.slane %v1995, 1
        %v1997 = vadd.f32 %v1995, %v1996
        %v1998 = vsel %vm423, %v1748, 0.0
        %v1999 = vrot.slane %v1998, 4
        %v2000 = vadd.f32 %v1998, %v1999
        %v2001 = vrot.slane %v2000, 2
        %v2002 = vadd.f32 %v2000, %v2001
        %v2003 = vrot.slane %v2002, 1
        %v2004 = vadd.f32 %v2002, %v2003
        %v2005 = vlog2.pop %v1787
        %v2006 = vmul.f32 %v2005, 0.6931472
        %v2007 = vlog2.pop %v1794
        %v2008 = vmul.f32 %v2007, 0.6931472
        %v2009 = vlog2.pop %v1801
        %v2010 = vmul.f32 %v2009, 0.6931472
        %v2011 = vlog2.pop %v1808
        %v2012 = vmul.f32 %v2011, 0.6931472
        %v2013 = vlog2.pop %v1815
        %v2014 = vmul.f32 %v2013, 0.6931472
        %v2015 = vlog2.pop %v1822
        %v2016 = vmul.f32 %v2015, 0.6931472
        %v2017 = vlog2.pop %v1829
        %v2018 = vmul.f32 %v2017, 0.6931472
        %v2019 = vlog2.pop %v1836
        %v2020 = vmul.f32 %v2019, 0.6931472
        %v2021 = vlog2.pop %v1843
        %v2022 = vmul.f32 %v2021, 0.6931472
        %v2023 = vlog2.pop %v1850
        %v2024 = vmul.f32 %v2023, 0.6931472
        %v2025 = vlog2.pop %v1857
        %v2026 = vmul.f32 %v2025, 0.6931472
        %v2027 = vlog2.pop %v1864
        %v2028 = vmul.f32 %v2027, 0.6931472
        %v2029 = vlog2.pop %v1871
        %v2030 = vmul.f32 %v2029, 0.6931472
        %v2031 = vlog2.pop %v1878
        %v2032 = vmul.f32 %v2031, 0.6931472
        %v2033 = vlog2.pop %v1885
        %v2034 = vmul.f32 %v2033, 0.6931472
        %v2035 = vlog2.pop %v1892
        %v2036 = vmul.f32 %v2035, 0.6931472
        %v2037 = vlog2.pop %v1899
        %v2038 = vmul.f32 %v2037, 0.6931472
        %v2039 = vlog2.pop %v1906
        %v2040 = vmul.f32 %v2039, 0.6931472
        %v2041 = vlog2.pop %v1913
        %v2042 = vmul.f32 %v2041, 0.6931472
        %v2043 = vlog2.pop %v1920
        %v2044 = vmul.f32 %v2043, 0.6931472
        %v2045 = vlog2.pop %v1927
        %v2046 = vmul.f32 %v2045, 0.6931472
        %v2047 = vlog2.pop %v1934
        %v2048 = vmul.f32 %v2047, 0.6931472
        %v2049 = vlog2.pop %v1941
        %v2050 = vmul.f32 %v2049, 0.6931472
        %v2051 = vlog2.pop %v1948
        %v2052 = vmul.f32 %v2051, 0.6931472
        %v2053 = vlog2.pop %v1955
        %v2054 = vmul.f32 %v2053, 0.6931472
        %v2055 = vlog2.pop %v1962
        %v2056 = vmul.f32 %v2055, 0.6931472
        %v2057 = vlog2.pop %v1969
        %v2058 = vmul.f32 %v2057, 0.6931472
        %v2059 = vlog2.pop %v1976
        %v2060 = vmul.f32 %v2059, 0.6931472
        %v2061 = vlog2.pop %v1983
        %v2062 = vmul.f32 %v2061, 0.6931472
        %v2063 = vlog2.pop %v1990
        %v2064 = vmul.f32 %v2063, 0.6931472
        %v2065 = vlog2.pop %v1997
        %v2066 = vmul.f32 %v2065, 0.6931472
        %v2067 = vlog2.pop %v2004
        %v2068 = vmul.f32 %v2067, 0.6931472
        %2085 = vst [vmem:[#allocation1] ss:$2 sm:$0xff] %v1634
        %s2086 = scalar_lea.vmem [#allocation1], 16
        %2087 = vst [vmem:[%s2086] ss:$2 sm:$0xff] %v1635
        %s2088 = scalar_lea.vmem [#allocation1], 32
        %2089 = vst [vmem:[%s2088] ss:$2 sm:$0xff] %v1636
        %s2090 = scalar_lea.vmem [#allocation1], 48
        %2091 = vst [vmem:[%s2090] ss:$2 sm:$0xff] %v1637
        %v2092 = vld.sshfl [vmem:[#allocation1] sm:$0xff pattern:$0x75316420]
        %v2093 = vld.sshfl [vmem:[#allocation1 + $0x8] sm:$0xff pattern:$0x75316420]
        %v2094 = vld.sshfl [vmem:[#allocation1 + $0x10] sm:$0xff pattern:$0x75316420]
        %v2095 = vld.sshfl [vmem:[#allocation1 + $0x18] sm:$0xff pattern:$0x75316420]
        %v2096 = vld.sshfl [vmem:[#allocation1 + $0x20] sm:$0xff pattern:$0x75316420]
        %v2097 = vld.sshfl [vmem:[#allocation1 + $0x28] sm:$0xff pattern:$0x75316420]
        %v2098 = vld.sshfl [vmem:[#allocation1 + $0x30] sm:$0xff pattern:$0x75316420]
        %v2099 = vld.sshfl [vmem:[#allocation1 + $0x38] sm:$0xff pattern:$0x75316420]
        %2100 = vst [vmem:[#allocation1] ss:$2 sm:$0xff] %v1638
        %2101 = vst [vmem:[%s2086] ss:$2 sm:$0xff] %v1639
        %2102 = vst [vmem:[%s2088] ss:$2 sm:$0xff] %v1640
        %2103 = vst [vmem:[%s2090] ss:$2 sm:$0xff] %v1641
        %v2104 = vld.sshfl [vmem:[#allocation1] sm:$0xff pattern:$0x75316420]
        %v2105 = vld.sshfl [vmem:[#allocation1 + $0x8] sm:$0xff pattern:$0x75316420]
        %v2106 = vld.sshfl [vmem:[#allocation1 + $0x10] sm:$0xff pattern:$0x75316420]
        %v2107 = vld.sshfl [vmem:[#allocation1 + $0x18] sm:$0xff pattern:$0x75316420]
        %v2108 = vld.sshfl [vmem:[#allocation1 + $0x20] sm:$0xff pattern:$0x75316420]
        %v2109 = vld.sshfl [vmem:[#allocation1 + $0x28] sm:$0xff pattern:$0x75316420]
        %v2110 = vld.sshfl [vmem:[#allocation1 + $0x30] sm:$0xff pattern:$0x75316420]
        %v2111 = vld.sshfl [vmem:[#allocation1 + $0x38] sm:$0xff pattern:$0x75316420]
        %2112 = vst [vmem:[#allocation1] ss:$2 sm:$0xff] %v1642
        %2113 = vst [vmem:[%s2086] ss:$2 sm:$0xff] %v1643
        %2114 = vst [vmem:[%s2088] ss:$2 sm:$0xff] %v1644
        %2115 = vst [vmem:[%s2090] ss:$2 sm:$0xff] %v1645
        %v2116 = vld.sshfl [vmem:[#allocation1] sm:$0xff pattern:$0x75316420]
        %v2117 = vld.sshfl [vmem:[#allocation1 + $0x8] sm:$0xff pattern:$0x75316420]
        %v2118 = vld.sshfl [vmem:[#allocation1 + $0x10] sm:$0xff pattern:$0x75316420]
        %v2119 = vld.sshfl [vmem:[#allocation1 + $0x18] sm:$0xff pattern:$0x75316420]
        %v2120 = vld.sshfl [vmem:[#allocation1 + $0x20] sm:$0xff pattern:$0x75316420]
        %v2121 = vld.sshfl [vmem:[#allocation1 + $0x28] sm:$0xff pattern:$0x75316420]
        %v2122 = vld.sshfl [vmem:[#allocation1 + $0x30] sm:$0xff pattern:$0x75316420]
        %v2123 = vld.sshfl [vmem:[#allocation1 + $0x38] sm:$0xff pattern:$0x75316420]
        %2124 = vst [vmem:[#allocation1] ss:$2 sm:$0xff] %v1646
        %2125 = vst [vmem:[%s2086] ss:$2 sm:$0xff] %v1647
        %2126 = vst [vmem:[%s2088] ss:$2 sm:$0xff] %v1648
        %2127 = vst [vmem:[%s2090] ss:$2 sm:$0xff] %v1649
        %v2128 = vld.sshfl [vmem:[#allocation1] sm:$0xff pattern:$0x75316420]
        %v2129 = vld.sshfl [vmem:[#allocation1 + $0x8] sm:$0xff pattern:$0x75316420]
        %v2130 = vld.sshfl [vmem:[#allocation1 + $0x10] sm:$0xff pattern:$0x75316420]
        %v2131 = vld.sshfl [vmem:[#allocation1 + $0x18] sm:$0xff pattern:$0x75316420]
        %v2132 = vld.sshfl [vmem:[#allocation1 + $0x20] sm:$0xff pattern:$0x75316420]
        %v2133 = vld.sshfl [vmem:[#allocation1 + $0x28] sm:$0xff pattern:$0x75316420]
        %v2134 = vld.sshfl [vmem:[#allocation1 + $0x30] sm:$0xff pattern:$0x75316420]
        %v2135 = vld.sshfl [vmem:[#allocation1 + $0x38] sm:$0xff pattern:$0x75316420]
        %v2168 = vsub.f32 %v2006, %v2092
        %v2169 = vsub.f32 %v2008, %v2093
        %v2170 = vsub.f32 %v2010, %v2094
        %v2171 = vsub.f32 %v2012, %v2095
        %v2172 = vsub.f32 %v2014, %v2096
        %v2173 = vsub.f32 %v2016, %v2097
        %v2174 = vsub.f32 %v2018, %v2098
        %v2175 = vsub.f32 %v2020, %v2099
        %v2176 = vsub.f32 %v2022, %v2104
        %v2177 = vsub.f32 %v2024, %v2105
        %v2178 = vsub.f32 %v2026, %v2106
        %v2179 = vsub.f32 %v2028, %v2107
        %v2180 = vsub.f32 %v2030, %v2108
        %v2181 = vsub.f32 %v2032, %v2109
        %v2182 = vsub.f32 %v2034, %v2110
        %v2183 = vsub.f32 %v2036, %v2111
        %v2184 = vsub.f32 %v2038, %v2116
        %v2185 = vsub.f32 %v2040, %v2117
        %v2186 = vsub.f32 %v2042, %v2118
        %v2187 = vsub.f32 %v2044, %v2119
        %v2188 = vsub.f32 %v2046, %v2120
        %v2189 = vsub.f32 %v2048, %v2121
        %v2190 = vsub.f32 %v2050, %v2122
        %v2191 = vsub.f32 %v2052, %v2123
        %v2192 = vsub.f32 %v2054, %v2128
        %v2193 = vsub.f32 %v2056, %v2129
        %v2194 = vsub.f32 %v2058, %v2130
        %v2195 = vsub.f32 %v2060, %v2131
        %v2196 = vsub.f32 %v2062, %v2132
        %v2197 = vsub.f32 %v2064, %v2133
        %v2198 = vsub.f32 %v2066, %v2134
        %v2199 = vsub.f32 %v2068, %v2135
        %v2200 = vmul.f32 %v2168, %v1199
        %v2201 = vmul.f32 %v2169, %v1200
        %v2202 = vmul.f32 %v2170, %v1201
        %v2203 = vmul.f32 %v2171, %v1202
        %v2204 = vmul.f32 %v2172, %v1203
        %v2205 = vmul.f32 %v2173, %v1204
        %v2206 = vmul.f32 %v2174, %v1205
        %v2207 = vmul.f32 %v2175, %v1206
        %v2208 = vmul.f32 %v2176, %v1207
        %v2209 = vmul.f32 %v2177, %v1208
        %v2210 = vmul.f32 %v2178, %v1209
        %v2211 = vmul.f32 %v2179, %v1210
        %v2212 = vmul.f32 %v2180, %v1211
        %v2213 = vmul.f32 %v2181, %v1212
        %v2214 = vmul.f32 %v2182, %v1213
        %v2215 = vmul.f32 %v2183, %v1214
        %v2216 = vmul.f32 %v2184, %v1215
        %v2217 = vmul.f32 %v2185, %v1216
        %v2218 = vmul.f32 %v2186, %v1217
        %v2219 = vmul.f32 %v2187, %v1218
        %v2220 = vmul.f32 %v2188, %v1219
        %v2221 = vmul.f32 %v2189, %v1220
        %v2222 = vmul.f32 %v2190, %v1221
        %v2223 = vmul.f32 %v2191, %v1222
        %v2224 = vmul.f32 %v2192, %v1223
        %v2225 = vmul.f32 %v2193, %v1224
        %v2226 = vmul.f32 %v2194, %v1225
        %v2227 = vmul.f32 %v2195, %v1226
        %v2228 = vmul.f32 %v2196, %v1227
        %v2229 = vmul.f32 %v2197, %v1228
        %v2230 = vmul.f32 %v2198, %v1229
        %v2231 = vmul.f32 %v2199, %v1230
        %v2232 = vsel %vm423, %v2200, 0.0
        %v2233 = vrot.slane %v2232, 4
        %v2234 = vadd.f32 %v2232, %v2233
        %v2235 = vrot.slane %v2234, 2
        %v2236 = vadd.f32 %v2234, %v2235
        %v2237 = vrot.slane %v2236, 1
        %v2238 = vadd.f32 %v2236, %v2237
        %v2239 = vsel %vm423, %v2201, 0.0
        %v2240 = vrot.slane %v2239, 4
        %v2241 = vadd.f32 %v2239, %v2240
        %v2242 = vrot.slane %v2241, 2
        %v2243 = vadd.f32 %v2241, %v2242
        %v2244 = vrot.slane %v2243, 1
        %v2245 = vadd.f32 %v2243, %v2244
        %v2246 = vsel %vm423, %v2202, 0.0
        %v2247 = vrot.slane %v2246, 4
        %v2248 = vadd.f32 %v2246, %v2247
        %v2249 = vrot.slane %v2248, 2
        %v2250 = vadd.f32 %v2248, %v2249
        %v2251 = vrot.slane %v2250, 1
        %v2252 = vadd.f32 %v2250, %v2251
        %v2253 = vsel %vm423, %v2203, 0.0
        %v2254 = vrot.slane %v2253, 4
        %v2255 = vadd.f32 %v2253, %v2254
        %v2256 = vrot.slane %v2255, 2
        %v2257 = vadd.f32 %v2255, %v2256
        %v2258 = vrot.slane %v2257, 1
        %v2259 = vadd.f32 %v2257, %v2258
        %v2260 = vsel %vm423, %v2204, 0.0
        %v2261 = vrot.slane %v2260, 4
        %v2262 = vadd.f32 %v2260, %v2261
        %v2263 = vrot.slane %v2262, 2
        %v2264 = vadd.f32 %v2262, %v2263
        %v2265 = vrot.slane %v2264, 1
        %v2266 = vadd.f32 %v2264, %v2265
        %v2267 = vsel %vm423, %v2205, 0.0
        %v2268 = vrot.slane %v2267, 4
        %v2269 = vadd.f32 %v2267, %v2268
        %v2270 = vrot.slane %v2269, 2
        %v2271 = vadd.f32 %v2269, %v2270
        %v2272 = vrot.slane %v2271, 1
        %v2273 = vadd.f32 %v2271, %v2272
        %v2274 = vsel %vm423, %v2206, 0.0
        %v2275 = vrot.slane %v2274, 4
        %v2276 = vadd.f32 %v2274, %v2275
        %v2277 = vrot.slane %v2276, 2
        %v2278 = vadd.f32 %v2276, %v2277
        %v2279 = vrot.slane %v2278, 1
        %v2280 = vadd.f32 %v2278, %v2279
        %v2281 = vsel %vm423, %v2207, 0.0
        %v2282 = vrot.slane %v2281, 4
        %v2283 = vadd.f32 %v2281, %v2282
        %v2284 = vrot.slane %v2283, 2
        %v2285 = vadd.f32 %v2283, %v2284
        %v2286 = vrot.slane %v2285, 1
        %v2287 = vadd.f32 %v2285, %v2286
        %v2288 = vsel %vm423, %v2208, 0.0
        %v2289 = vrot.slane %v2288, 4
        %v2290 = vadd.f32 %v2288, %v2289
        %v2291 = vrot.slane %v2290, 2
        %v2292 = vadd.f32 %v2290, %v2291
        %v2293 = vrot.slane %v2292, 1
        %v2294 = vadd.f32 %v2292, %v2293
        %v2295 = vsel %vm423, %v2209, 0.0
        %v2296 = vrot.slane %v2295, 4
        %v2297 = vadd.f32 %v2295, %v2296
        %v2298 = vrot.slane %v2297, 2
        %v2299 = vadd.f32 %v2297, %v2298
        %v2300 = vrot.slane %v2299, 1
        %v2301 = vadd.f32 %v2299, %v2300
        %v2302 = vsel %vm423, %v2210, 0.0
        %v2303 = vrot.slane %v2302, 4
        %v2304 = vadd.f32 %v2302, %v2303
        %v2305 = vrot.slane %v2304, 2
        %v2306 = vadd.f32 %v2304, %v2305
        %v2307 = vrot.slane %v2306, 1
        %v2308 = vadd.f32 %v2306, %v2307
        %v2309 = vsel %vm423, %v2211, 0.0
        %v2310 = vrot.slane %v2309, 4
        %v2311 = vadd.f32 %v2309, %v2310
        %v2312 = vrot.slane %v2311, 2
        %v2313 = vadd.f32 %v2311, %v2312
        %v2314 = vrot.slane %v2313, 1
        %v2315 = vadd.f32 %v2313, %v2314
        %v2316 = vsel %vm423, %v2212, 0.0
        %v2317 = vrot.slane %v2316, 4
        %v2318 = vadd.f32 %v2316, %v2317
        %v2319 = vrot.slane %v2318, 2
        %v2320 = vadd.f32 %v2318, %v2319
        %v2321 = vrot.slane %v2320, 1
        %v2322 = vadd.f32 %v2320, %v2321
        %v2323 = vsel %vm423, %v2213, 0.0
        %v2324 = vrot.slane %v2323, 4
        %v2325 = vadd.f32 %v2323, %v2324
        %v2326 = vrot.slane %v2325, 2
        %v2327 = vadd.f32 %v2325, %v2326
        %v2328 = vrot.slane %v2327, 1
        %v2329 = vadd.f32 %v2327, %v2328
        %v2330 = vsel %vm423, %v2214, 0.0
        %v2331 = vrot.slane %v2330, 4
        %v2332 = vadd.f32 %v2330, %v2331
        %v2333 = vrot.slane %v2332, 2
        %v2334 = vadd.f32 %v2332, %v2333
        %v2335 = vrot.slane %v2334, 1
        %v2336 = vadd.f32 %v2334, %v2335
        %v2337 = vsel %vm423, %v2215, 0.0
        %v2338 = vrot.slane %v2337, 4
        %v2339 = vadd.f32 %v2337, %v2338
        %v2340 = vrot.slane %v2339, 2
        %v2341 = vadd.f32 %v2339, %v2340
        %v2342 = vrot.slane %v2341, 1
        %v2343 = vadd.f32 %v2341, %v2342
        %v2344 = vsel %vm423, %v2216, 0.0
        %v2345 = vrot.slane %v2344, 4
        %v2346 = vadd.f32 %v2344, %v2345
        %v2347 = vrot.slane %v2346, 2
        %v2348 = vadd.f32 %v2346, %v2347
        %v2349 = vrot.slane %v2348, 1
        %v2350 = vadd.f32 %v2348, %v2349
        %v2351 = vsel %vm423, %v2217, 0.0
        %v2352 = vrot.slane %v2351, 4
        %v2353 = vadd.f32 %v2351, %v2352
        %v2354 = vrot.slane %v2353, 2
        %v2355 = vadd.f32 %v2353, %v2354
        %v2356 = vrot.slane %v2355, 1
        %v2357 = vadd.f32 %v2355, %v2356
        %v2358 = vsel %vm423, %v2218, 0.0
        %v2359 = vrot.slane %v2358, 4
        %v2360 = vadd.f32 %v2358, %v2359
        %v2361 = vrot.slane %v2360, 2
        %v2362 = vadd.f32 %v2360, %v2361
        %v2363 = vrot.slane %v2362, 1
        %v2364 = vadd.f32 %v2362, %v2363
        %v2365 = vsel %vm423, %v2219, 0.0
        %v2366 = vrot.slane %v2365, 4
        %v2367 = vadd.f32 %v2365, %v2366
        %v2368 = vrot.slane %v2367, 2
        %v2369 = vadd.f32 %v2367, %v2368
        %v2370 = vrot.slane %v2369, 1
        %v2371 = vadd.f32 %v2369, %v2370
        %v2372 = vsel %vm423, %v2220, 0.0
        %v2373 = vrot.slane %v2372, 4
        %v2374 = vadd.f32 %v2372, %v2373
        %v2375 = vrot.slane %v2374, 2
        %v2376 = vadd.f32 %v2374, %v2375
        %v2377 = vrot.slane %v2376, 1
        %v2378 = vadd.f32 %v2376, %v2377
        %v2379 = vsel %vm423, %v2221, 0.0
        %v2380 = vrot.slane %v2379, 4
        %v2381 = vadd.f32 %v2379, %v2380
        %v2382 = vrot.slane %v2381, 2
        %v2383 = vadd.f32 %v2381, %v2382
        %v2384 = vrot.slane %v2383, 1
        %v2385 = vadd.f32 %v2383, %v2384
        %v2386 = vsel %vm423, %v2222, 0.0
        %v2387 = vrot.slane %v2386, 4
        %v2388 = vadd.f32 %v2386, %v2387
        %v2389 = vrot.slane %v2388, 2
        %v2390 = vadd.f32 %v2388, %v2389
        %v2391 = vrot.slane %v2390, 1
        %v2392 = vadd.f32 %v2390, %v2391
        %v2393 = vsel %vm423, %v2223, 0.0
        %v2394 = vrot.slane %v2393, 4
        %v2395 = vadd.f32 %v2393, %v2394
        %v2396 = vrot.slane %v2395, 2
        %v2397 = vadd.f32 %v2395, %v2396
        %v2398 = vrot.slane %v2397, 1
        %v2399 = vadd.f32 %v2397, %v2398
        %v2400 = vsel %vm423, %v2224, 0.0
        %v2401 = vrot.slane %v2400, 4
        %v2402 = vadd.f32 %v2400, %v2401
        %v2403 = vrot.slane %v2402, 2
        %v2404 = vadd.f32 %v2402, %v2403
        %v2405 = vrot.slane %v2404, 1
        %v2406 = vadd.f32 %v2404, %v2405
        %v2407 = vsel %vm423, %v2225, 0.0
        %v2408 = vrot.slane %v2407, 4
        %v2409 = vadd.f32 %v2407, %v2408
        %v2410 = vrot.slane %v2409, 2
        %v2411 = vadd.f32 %v2409, %v2410
        %v2412 = vrot.slane %v2411, 1
        %v2413 = vadd.f32 %v2411, %v2412
        %v2414 = vsel %vm423, %v2226, 0.0
        %v2415 = vrot.slane %v2414, 4
        %v2416 = vadd.f32 %v2414, %v2415
        %v2417 = vrot.slane %v2416, 2
        %v2418 = vadd.f32 %v2416, %v2417
        %v2419 = vrot.slane %v2418, 1
        %v2420 = vadd.f32 %v2418, %v2419
        %v2421 = vsel %vm423, %v2227, 0.0
        %v2422 = vrot.slane %v2421, 4
        %v2423 = vadd.f32 %v2421, %v2422
        %v2424 = vrot.slane %v2423, 2
        %v2425 = vadd.f32 %v2423, %v2424
        %v2426 = vrot.slane %v2425, 1
        %v2427 = vadd.f32 %v2425, %v2426
        %v2428 = vsel %vm423, %v2228, 0.0
        %v2429 = vrot.slane %v2428, 4
        %v2430 = vadd.f32 %v2428, %v2429
        %v2431 = vrot.slane %v2430, 2
        %v2432 = vadd.f32 %v2430, %v2431
        %v2433 = vrot.slane %v2432, 1
        %v2434 = vadd.f32 %v2432, %v2433
        %v2435 = vsel %vm423, %v2229, 0.0
        %v2436 = vrot.slane %v2435, 4
        %v2437 = vadd.f32 %v2435, %v2436
        %v2438 = vrot.slane %v2437, 2
        %v2439 = vadd.f32 %v2437, %v2438
        %v2440 = vrot.slane %v2439, 1
        %v2441 = vadd.f32 %v2439, %v2440
        %v2442 = vsel %vm423, %v2230, 0.0
        %v2443 = vrot.slane %v2442, 4
        %v2444 = vadd.f32 %v2442, %v2443
        %v2445 = vrot.slane %v2444, 2
        %v2446 = vadd.f32 %v2444, %v2445
        %v2447 = vrot.slane %v2446, 1
        %v2448 = vadd.f32 %v2446, %v2447
        %v2449 = vsel %vm423, %v2231, 0.0
        %v2450 = vrot.slane %v2449, 4
        %v2451 = vadd.f32 %v2449, %v2450
        %v2452 = vrot.slane %v2451, 2
        %v2453 = vadd.f32 %v2451, %v2452
        %v2454 = vrot.slane %v2453, 1
        %v2455 = vadd.f32 %v2453, %v2454
        %2457 = vset.pattern.permute.xlu0 0
        %2458 = vperm.xlu0 %2457, %v321
        %v2459 = vpop.permute.xlu0 %2458
        %v2461 = vmul.f32 %v2459, %v1199
        %v2462 = vmul.f32 %v2459, %v1200
        %v2463 = vmul.f32 %v2459, %v1201
        %v2464 = vmul.f32 %v2459, %v1202
        %v2465 = vmul.f32 %v2459, %v1203
        %v2466 = vmul.f32 %v2459, %v1204
        %v2467 = vmul.f32 %v2459, %v1205
        %v2468 = vmul.f32 %v2459, %v1206
        %v2469 = vmul.f32 %v2459, %v1207
        %v2470 = vmul.f32 %v2459, %v1208
        %v2471 = vmul.f32 %v2459, %v1209
        %v2472 = vmul.f32 %v2459, %v1210
        %v2473 = vmul.f32 %v2459, %v1211
        %v2474 = vmul.f32 %v2459, %v1212
        %v2475 = vmul.f32 %v2459, %v1213
        %v2476 = vmul.f32 %v2459, %v1214
        %v2477 = vmul.f32 %v2459, %v1215
        %v2478 = vmul.f32 %v2459, %v1216
        %v2479 = vmul.f32 %v2459, %v1217
        %v2480 = vmul.f32 %v2459, %v1218
        %v2481 = vmul.f32 %v2459, %v1219
        %v2482 = vmul.f32 %v2459, %v1220
        %v2483 = vmul.f32 %v2459, %v1221
        %v2484 = vmul.f32 %v2459, %v1222
        %v2485 = vmul.f32 %v2459, %v1223
        %v2486 = vmul.f32 %v2459, %v1224
        %v2487 = vmul.f32 %v2459, %v1225
        %v2488 = vmul.f32 %v2459, %v1226
        %v2489 = vmul.f32 %v2459, %v1227
        %v2490 = vmul.f32 %v2459, %v1228
        %v2491 = vmul.f32 %v2459, %v1229
        %v2492 = vmul.f32 %v2459, %v1230
        %v2493 = vsel %vm423, %v2461, 0.0
        %v2494 = vrot.slane %v2493, 4
        %v2495 = vadd.f32 %v2493, %v2494
        %v2496 = vrot.slane %v2495, 2
        %v2497 = vadd.f32 %v2495, %v2496
        %v2498 = vrot.slane %v2497, 1
        %v2499 = vadd.f32 %v2497, %v2498
        %v2500 = vsel %vm423, %v2462, 0.0
        %v2501 = vrot.slane %v2500, 4
        %v2502 = vadd.f32 %v2500, %v2501
        %v2503 = vrot.slane %v2502, 2
        %v2504 = vadd.f32 %v2502, %v2503
        %v2505 = vrot.slane %v2504, 1
        %v2506 = vadd.f32 %v2504, %v2505
        %v2507 = vsel %vm423, %v2463, 0.0
        %v2508 = vrot.slane %v2507, 4
        %v2509 = vadd.f32 %v2507, %v2508
        %v2510 = vrot.slane %v2509, 2
        %v2511 = vadd.f32 %v2509, %v2510
        %v2512 = vrot.slane %v2511, 1
        %v2513 = vadd.f32 %v2511, %v2512
        %v2514 = vsel %vm423, %v2464, 0.0
        %v2515 = vrot.slane %v2514, 4
        %v2516 = vadd.f32 %v2514, %v2515
        %v2517 = vrot.slane %v2516, 2
        %v2518 = vadd.f32 %v2516, %v2517
        %v2519 = vrot.slane %v2518, 1
        %v2520 = vadd.f32 %v2518, %v2519
        %v2521 = vsel %vm423, %v2465, 0.0
        %v2522 = vrot.slane %v2521, 4
        %v2523 = vadd.f32 %v2521, %v2522
        %v2524 = vrot.slane %v2523, 2
        %v2525 = vadd.f32 %v2523, %v2524
        %v2526 = vrot.slane %v2525, 1
        %v2527 = vadd.f32 %v2525, %v2526
        %v2528 = vsel %vm423, %v2466, 0.0
        %v2529 = vrot.slane %v2528, 4
        %v2530 = vadd.f32 %v2528, %v2529
        %v2531 = vrot.slane %v2530, 2
        %v2532 = vadd.f32 %v2530, %v2531
        %v2533 = vrot.slane %v2532, 1
        %v2534 = vadd.f32 %v2532, %v2533
        %v2535 = vsel %vm423, %v2467, 0.0
        %v2536 = vrot.slane %v2535, 4
        %v2537 = vadd.f32 %v2535, %v2536
        %v2538 = vrot.slane %v2537, 2
        %v2539 = vadd.f32 %v2537, %v2538
        %v2540 = vrot.slane %v2539, 1
        %v2541 = vadd.f32 %v2539, %v2540
        %v2542 = vsel %vm423, %v2468, 0.0
        %v2543 = vrot.slane %v2542, 4
        %v2544 = vadd.f32 %v2542, %v2543
        %v2545 = vrot.slane %v2544, 2
        %v2546 = vadd.f32 %v2544, %v2545
        %v2547 = vrot.slane %v2546, 1
        %v2548 = vadd.f32 %v2546, %v2547
        %v2549 = vsel %vm423, %v2469, 0.0
        %v2550 = vrot.slane %v2549, 4
        %v2551 = vadd.f32 %v2549, %v2550
        %v2552 = vrot.slane %v2551, 2
        %v2553 = vadd.f32 %v2551, %v2552
        %v2554 = vrot.slane %v2553, 1
        %v2555 = vadd.f32 %v2553, %v2554
        %v2556 = vsel %vm423, %v2470, 0.0
        %v2557 = vrot.slane %v2556, 4
        %v2558 = vadd.f32 %v2556, %v2557
        %v2559 = vrot.slane %v2558, 2
        %v2560 = vadd.f32 %v2558, %v2559
        %v2561 = vrot.slane %v2560, 1
        %v2562 = vadd.f32 %v2560, %v2561
        %v2563 = vsel %vm423, %v2471, 0.0
        %v2564 = vrot.slane %v2563, 4
        %v2565 = vadd.f32 %v2563, %v2564
        %v2566 = vrot.slane %v2565, 2
        %v2567 = vadd.f32 %v2565, %v2566
        %v2568 = vrot.slane %v2567, 1
        %v2569 = vadd.f32 %v2567, %v2568
        %v2570 = vsel %vm423, %v2472, 0.0
        %v2571 = vrot.slane %v2570, 4
        %v2572 = vadd.f32 %v2570, %v2571
        %v2573 = vrot.slane %v2572, 2
        %v2574 = vadd.f32 %v2572, %v2573
        %v2575 = vrot.slane %v2574, 1
        %v2576 = vadd.f32 %v2574, %v2575
        %v2577 = vsel %vm423, %v2473, 0.0
        %v2578 = vrot.slane %v2577, 4
        %v2579 = vadd.f32 %v2577, %v2578
        %v2580 = vrot.slane %v2579, 2
        %v2581 = vadd.f32 %v2579, %v2580
        %v2582 = vrot.slane %v2581, 1
        %v2583 = vadd.f32 %v2581, %v2582
        %v2584 = vsel %vm423, %v2474, 0.0
        %v2585 = vrot.slane %v2584, 4
        %v2586 = vadd.f32 %v2584, %v2585
        %v2587 = vrot.slane %v2586, 2
        %v2588 = vadd.f32 %v2586, %v2587
        %v2589 = vrot.slane %v2588, 1
        %v2590 = vadd.f32 %v2588, %v2589
        %v2591 = vsel %vm423, %v2475, 0.0
        %v2592 = vrot.slane %v2591, 4
        %v2593 = vadd.f32 %v2591, %v2592
        %v2594 = vrot.slane %v2593, 2
        %v2595 = vadd.f32 %v2593, %v2594
        %v2596 = vrot.slane %v2595, 1
        %v2597 = vadd.f32 %v2595, %v2596
        %v2598 = vsel %vm423, %v2476, 0.0
        %v2599 = vrot.slane %v2598, 4
        %v2600 = vadd.f32 %v2598, %v2599
        %v2601 = vrot.slane %v2600, 2
        %v2602 = vadd.f32 %v2600, %v2601
        %v2603 = vrot.slane %v2602, 1
        %v2604 = vadd.f32 %v2602, %v2603
        %v2605 = vsel %vm423, %v2477, 0.0
        %v2606 = vrot.slane %v2605, 4
        %v2607 = vadd.f32 %v2605, %v2606
        %v2608 = vrot.slane %v2607, 2
        %v2609 = vadd.f32 %v2607, %v2608
        %v2610 = vrot.slane %v2609, 1
        %v2611 = vadd.f32 %v2609, %v2610
        %v2612 = vsel %vm423, %v2478, 0.0
        %v2613 = vrot.slane %v2612, 4
        %v2614 = vadd.f32 %v2612, %v2613
        %v2615 = vrot.slane %v2614, 2
        %v2616 = vadd.f32 %v2614, %v2615
        %v2617 = vrot.slane %v2616, 1
        %v2618 = vadd.f32 %v2616, %v2617
        %v2619 = vsel %vm423, %v2479, 0.0
        %v2620 = vrot.slane %v2619, 4
        %v2621 = vadd.f32 %v2619, %v2620
        %v2622 = vrot.slane %v2621, 2
        %v2623 = vadd.f32 %v2621, %v2622
        %v2624 = vrot.slane %v2623, 1
        %v2625 = vadd.f32 %v2623, %v2624
        %v2626 = vsel %vm423, %v2480, 0.0
        %v2627 = vrot.slane %v2626, 4
        %v2628 = vadd.f32 %v2626, %v2627
        %v2629 = vrot.slane %v2628, 2
        %v2630 = vadd.f32 %v2628, %v2629
        %v2631 = vrot.slane %v2630, 1
        %v2632 = vadd.f32 %v2630, %v2631
        %v2633 = vsel %vm423, %v2481, 0.0
        %v2634 = vrot.slane %v2633, 4
        %v2635 = vadd.f32 %v2633, %v2634
        %v2636 = vrot.slane %v2635, 2
        %v2637 = vadd.f32 %v2635, %v2636
        %v2638 = vrot.slane %v2637, 1
        %v2639 = vadd.f32 %v2637, %v2638
        %v2640 = vsel %vm423, %v2482, 0.0
        %v2641 = vrot.slane %v2640, 4
        %v2642 = vadd.f32 %v2640, %v2641
        %v2643 = vrot.slane %v2642, 2
        %v2644 = vadd.f32 %v2642, %v2643
        %v2645 = vrot.slane %v2644, 1
        %v2646 = vadd.f32 %v2644, %v2645
        %v2647 = vsel %vm423, %v2483, 0.0
        %v2648 = vrot.slane %v2647, 4
        %v2649 = vadd.f32 %v2647, %v2648
        %v2650 = vrot.slane %v2649, 2
        %v2651 = vadd.f32 %v2649, %v2650
        %v2652 = vrot.slane %v2651, 1
        %v2653 = vadd.f32 %v2651, %v2652
        %v2654 = vsel %vm423, %v2484, 0.0
        %v2655 = vrot.slane %v2654, 4
        %v2656 = vadd.f32 %v2654, %v2655
        %v2657 = vrot.slane %v2656, 2
        %v2658 = vadd.f32 %v2656, %v2657
        %v2659 = vrot.slane %v2658, 1
        %v2660 = vadd.f32 %v2658, %v2659
        %v2661 = vsel %vm423, %v2485, 0.0
        %v2662 = vrot.slane %v2661, 4
        %v2663 = vadd.f32 %v2661, %v2662
        %v2664 = vrot.slane %v2663, 2
        %v2665 = vadd.f32 %v2663, %v2664
        %v2666 = vrot.slane %v2665, 1
        %v2667 = vadd.f32 %v2665, %v2666
        %v2668 = vsel %vm423, %v2486, 0.0
        %v2669 = vrot.slane %v2668, 4
        %v2670 = vadd.f32 %v2668, %v2669
        %v2671 = vrot.slane %v2670, 2
        %v2672 = vadd.f32 %v2670, %v2671
        %v2673 = vrot.slane %v2672, 1
        %v2674 = vadd.f32 %v2672, %v2673
        %v2675 = vsel %vm423, %v2487, 0.0
        %v2676 = vrot.slane %v2675, 4
        %v2677 = vadd.f32 %v2675, %v2676
        %v2678 = vrot.slane %v2677, 2
        %v2679 = vadd.f32 %v2677, %v2678
        %v2680 = vrot.slane %v2679, 1
        %v2681 = vadd.f32 %v2679, %v2680
        %v2682 = vsel %vm423, %v2488, 0.0
        %v2683 = vrot.slane %v2682, 4
        %v2684 = vadd.f32 %v2682, %v2683
        %v2685 = vrot.slane %v2684, 2
        %v2686 = vadd.f32 %v2684, %v2685
        %v2687 = vrot.slane %v2686, 1
        %v2688 = vadd.f32 %v2686, %v2687
        %v2689 = vsel %vm423, %v2489, 0.0
        %v2690 = vrot.slane %v2689, 4
        %v2691 = vadd.f32 %v2689, %v2690
        %v2692 = vrot.slane %v2691, 2
        %v2693 = vadd.f32 %v2691, %v2692
        %v2694 = vrot.slane %v2693, 1
        %v2695 = vadd.f32 %v2693, %v2694
        %v2696 = vsel %vm423, %v2490, 0.0
        %v2697 = vrot.slane %v2696, 4
        %v2698 = vadd.f32 %v2696, %v2697
        %v2699 = vrot.slane %v2698, 2
        %v2700 = vadd.f32 %v2698, %v2699
        %v2701 = vrot.slane %v2700, 1
        %v2702 = vadd.f32 %v2700, %v2701
        %v2703 = vsel %vm423, %v2491, 0.0
        %v2704 = vrot.slane %v2703, 4
        %v2705 = vadd.f32 %v2703, %v2704
        %v2706 = vrot.slane %v2705, 2
        %v2707 = vadd.f32 %v2705, %v2706
        %v2708 = vrot.slane %v2707, 1
        %v2709 = vadd.f32 %v2707, %v2708
        %v2710 = vsel %vm423, %v2492, 0.0
        %v2711 = vrot.slane %v2710, 4
        %v2712 = vadd.f32 %v2710, %v2711
        %v2713 = vrot.slane %v2712, 2
        %v2714 = vadd.f32 %v2712, %v2713
        %v2715 = vrot.slane %v2714, 1
        %v2716 = vadd.f32 %v2714, %v2715
        %v2717 = vlaneseq
        %v2718 = vand.u32 %v2717, 127
        %v2719 = vadd.s32 %v2718, 128
        %v2720 = vadd.s32 %v2718, 256
        %v2721 = vadd.s32 %v2718, 384
        %v2722 = vadd.s32 %v2718, 512
        %v2723 = vadd.s32 %v2718, 640
        %v2724 = vadd.s32 %v2718, 768
        %v2725 = vadd.s32 %v2718, 896
        %v2726 = vadd.s32 %v2718, 1024
        %v2727 = vadd.s32 %v2718, 1152
        %v2728 = vadd.s32 %v2718, 1280
        %v2729 = vadd.s32 %v2718, 1408
        %v2730 = vadd.s32 %v2718, 1536
        %v2731 = vadd.s32 %v2718, 1664
        %v2732 = vadd.s32 %v2718, 1792
        %v2733 = vadd.s32 %v2718, 1920
        %v2734 = vadd.s32 %v2718, 2048
        %v2735 = vadd.s32 %v2718, 2176
        %v2736 = vadd.s32 %v2718, 2304
        %v2737 = vadd.s32 %v2718, 2432
        %v2738 = vadd.s32 %v2718, 2560
        %v2739 = vadd.s32 %v2718, 2688
        %v2740 = vadd.s32 %v2718, 2816
        %v2741 = vadd.s32 %v2718, 2944
        %v2742 = vadd.s32 %v2718, 3072
        %v2743 = vadd.s32 %v2718, 3200
        %v2744 = vadd.s32 %v2718, 3328
        %v2745 = vadd.s32 %v2718, 3456
        %v2746 = vadd.s32 %v2718, 3584
        %v2747 = vadd.s32 %v2718, 3712
        %v2748 = vadd.s32 %v2718, 3840
        %v2749 = vadd.s32 %v2718, 3968
        %s2750 = smul.u32 %s33, 4096
        %v2751 = vstv %s2750
        %v2752 = vadd.s32 %v2718, %v2751
        %v2753 = vadd.s32 %v2719, %v2751
        %v2754 = vadd.s32 %v2720, %v2751
        %v2755 = vadd.s32 %v2721, %v2751
        %v2756 = vadd.s32 %v2722, %v2751
        %v2757 = vadd.s32 %v2723, %v2751
        %v2758 = vadd.s32 %v2724, %v2751
        %v2759 = vadd.s32 %v2725, %v2751
        %v2760 = vadd.s32 %v2726, %v2751
        %v2761 = vadd.s32 %v2727, %v2751
        %v2762 = vadd.s32 %v2728, %v2751
        %v2763 = vadd.s32 %v2729, %v2751
        %v2764 = vadd.s32 %v2730, %v2751
        %v2765 = vadd.s32 %v2731, %v2751
        %v2766 = vadd.s32 %v2732, %v2751
        %v2767 = vadd.s32 %v2733, %v2751
        %v2768 = vadd.s32 %v2734, %v2751
        %v2769 = vadd.s32 %v2735, %v2751
        %v2770 = vadd.s32 %v2736, %v2751
        %v2771 = vadd.s32 %v2737, %v2751
        %v2772 = vadd.s32 %v2738, %v2751
        %v2773 = vadd.s32 %v2739, %v2751
        %v2774 = vadd.s32 %v2740, %v2751
        %v2775 = vadd.s32 %v2741, %v2751
        %v2776 = vadd.s32 %v2742, %v2751
        %v2777 = vadd.s32 %v2743, %v2751
        %v2778 = vadd.s32 %v2744, %v2751
        %v2779 = vadd.s32 %v2745, %v2751
        %v2780 = vadd.s32 %v2746, %v2751
        %v2781 = vadd.s32 %v2747, %v2751
        %v2782 = vadd.s32 %v2748, %v2751
        %v2783 = vadd.s32 %v2749, %v2751
        %vm2784 = vcmp.lt.s32.totalorder %v2752, 4096
        %vm2785 = vcmp.lt.s32.totalorder %v2753, 4096
        %vm2786 = vcmp.lt.s32.totalorder %v2754, 4096
        %vm2787 = vcmp.lt.s32.totalorder %v2755, 4096
        %vm2788 = vcmp.lt.s32.totalorder %v2756, 4096
        %vm2789 = vcmp.lt.s32.totalorder %v2757, 4096
        %vm2790 = vcmp.lt.s32.totalorder %v2758, 4096
        %vm2791 = vcmp.lt.s32.totalorder %v2759, 4096
        %vm2792 = vcmp.lt.s32.totalorder %v2760, 4096
        %vm2793 = vcmp.lt.s32.totalorder %v2761, 4096
        %vm2794 = vcmp.lt.s32.totalorder %v2762, 4096
        %vm2795 = vcmp.lt.s32.totalorder %v2763, 4096
        %vm2796 = vcmp.lt.s32.totalorder %v2764, 4096
        %vm2797 = vcmp.lt.s32.totalorder %v2765, 4096
        %vm2798 = vcmp.lt.s32.totalorder %v2766, 4096
        %vm2799 = vcmp.lt.s32.totalorder %v2767, 4096
        %vm2800 = vcmp.lt.s32.totalorder %v2768, 4096
        %vm2801 = vcmp.lt.s32.totalorder %v2769, 4096
        %vm2802 = vcmp.lt.s32.totalorder %v2770, 4096
        %vm2803 = vcmp.lt.s32.totalorder %v2771, 4096
        %vm2804 = vcmp.lt.s32.totalorder %v2772, 4096
        %vm2805 = vcmp.lt.s32.totalorder %v2773, 4096
        %vm2806 = vcmp.lt.s32.totalorder %v2774, 4096
        %vm2807 = vcmp.lt.s32.totalorder %v2775, 4096
        %vm2808 = vcmp.lt.s32.totalorder %v2776, 4096
        %vm2809 = vcmp.lt.s32.totalorder %v2777, 4096
        %vm2810 = vcmp.lt.s32.totalorder %v2778, 4096
        %vm2811 = vcmp.lt.s32.totalorder %v2779, 4096
        %vm2812 = vcmp.lt.s32.totalorder %v2780, 4096
        %vm2813 = vcmp.lt.s32.totalorder %v2781, 4096
        %vm2814 = vcmp.lt.s32.totalorder %v2782, 4096
        %vm2815 = vcmp.lt.s32.totalorder %v2783, 4096
        %v2816 = vsel %vm2784, 1, 0
        %v2817 = vsel %vm2785, 1, 0
        %v2818 = vsel %vm2786, 1, 0
        %v2819 = vsel %vm2787, 1, 0
        %v2820 = vsel %vm2788, 1, 0
        %v2821 = vsel %vm2789, 1, 0
        %v2822 = vsel %vm2790, 1, 0
        %v2823 = vsel %vm2791, 1, 0
        %v2824 = vsel %vm2792, 1, 0
        %v2825 = vsel %vm2793, 1, 0
        %v2826 = vsel %vm2794, 1, 0
        %v2827 = vsel %vm2795, 1, 0
        %v2828 = vsel %vm2796, 1, 0
        %v2829 = vsel %vm2797, 1, 0
        %v2830 = vsel %vm2798, 1, 0
        %v2831 = vsel %vm2799, 1, 0
        %v2832 = vsel %vm2800, 1, 0
        %v2833 = vsel %vm2801, 1, 0
        %v2834 = vsel %vm2802, 1, 0
        %v2835 = vsel %vm2803, 1, 0
        %v2836 = vsel %vm2804, 1, 0
        %v2837 = vsel %vm2805, 1, 0
        %v2838 = vsel %vm2806, 1, 0
        %v2839 = vsel %vm2807, 1, 0
        %v2840 = vsel %vm2808, 1, 0
        %v2841 = vsel %vm2809, 1, 0
        %v2842 = vsel %vm2810, 1, 0
        %v2843 = vsel %vm2811, 1, 0
        %v2844 = vsel %vm2812, 1, 0
        %v2845 = vsel %vm2813, 1, 0
        %v2846 = vsel %vm2814, 1, 0
        %v2847 = vsel %vm2815, 1, 0
        %v2848 = vcvt.s32.f32 %v2816
        %v2849 = vcvt.s32.f32 %v2817
        %v2850 = vcvt.s32.f32 %v2818
        %v2851 = vcvt.s32.f32 %v2819
        %v2852 = vcvt.s32.f32 %v2820
        %v2853 = vcvt.s32.f32 %v2821
        %v2854 = vcvt.s32.f32 %v2822
        %v2855 = vcvt.s32.f32 %v2823
        %v2856 = vcvt.s32.f32 %v2824
        %v2857 = vcvt.s32.f32 %v2825
        %v2858 = vcvt.s32.f32 %v2826
        %v2859 = vcvt.s32.f32 %v2827
        %v2860 = vcvt.s32.f32 %v2828
        %v2861 = vcvt.s32.f32 %v2829
        %v2862 = vcvt.s32.f32 %v2830
        %v2863 = vcvt.s32.f32 %v2831
        %v2864 = vcvt.s32.f32 %v2832
        %v2865 = vcvt.s32.f32 %v2833
        %v2866 = vcvt.s32.f32 %v2834
        %v2867 = vcvt.s32.f32 %v2835
        %v2868 = vcvt.s32.f32 %v2836
        %v2869 = vcvt.s32.f32 %v2837
        %v2870 = vcvt.s32.f32 %v2838
        %v2871 = vcvt.s32.f32 %v2839
        %v2872 = vcvt.s32.f32 %v2840
        %v2873 = vcvt.s32.f32 %v2841
        %v2874 = vcvt.s32.f32 %v2842
        %v2875 = vcvt.s32.f32 %v2843
        %v2876 = vcvt.s32.f32 %v2844
        %v2877 = vcvt.s32.f32 %v2845
        %v2878 = vcvt.s32.f32 %v2846
        %v2879 = vcvt.s32.f32 %v2847
        %v2880 = vmul.f32 %v2499, %v2848
        %v2881 = vmul.f32 %v2506, %v2849
        %v2882 = vmul.f32 %v2513, %v2850
        %v2883 = vmul.f32 %v2520, %v2851
        %v2884 = vmul.f32 %v2527, %v2852
        %v2885 = vmul.f32 %v2534, %v2853
        %v2886 = vmul.f32 %v2541, %v2854
        %v2887 = vmul.f32 %v2548, %v2855
        %v2888 = vmul.f32 %v2555, %v2856
        %v2889 = vmul.f32 %v2562, %v2857
        %v2890 = vmul.f32 %v2569, %v2858
        %v2891 = vmul.f32 %v2576, %v2859
        %v2892 = vmul.f32 %v2583, %v2860
        %v2893 = vmul.f32 %v2590, %v2861
        %v2894 = vmul.f32 %v2597, %v2862
        %v2895 = vmul.f32 %v2604, %v2863
        %v2896 = vmul.f32 %v2611, %v2864
        %v2897 = vmul.f32 %v2618, %v2865
        %v2898 = vmul.f32 %v2625, %v2866
        %v2899 = vmul.f32 %v2632, %v2867
        %v2900 = vmul.f32 %v2639, %v2868
        %v2901 = vmul.f32 %v2646, %v2869
        %v2902 = vmul.f32 %v2653, %v2870
        %v2903 = vmul.f32 %v2660, %v2871
        %v2904 = vmul.f32 %v2667, %v2872
        %v2905 = vmul.f32 %v2674, %v2873
        %v2906 = vmul.f32 %v2681, %v2874
        %v2907 = vmul.f32 %v2688, %v2875
        %v2908 = vmul.f32 %v2695, %v2876
        %v2909 = vmul.f32 %v2702, %v2877
        %v2910 = vmul.f32 %v2709, %v2878
        %v2911 = vmul.f32 %v2716, %v2879
        %p2912 = scmp.eq.s32.totalorder %s33, 0
        // Predicated region
        $region41: #{tpu_custom_call.1} parent=31 // pred_check
          %p2913 = pneg %p2912
        $region42: #{tpu_custom_call.1} parent=31 // pred_check_branch
          %2915 = sbr.rel (%p2913) target = $region44
        $region43: #{tpu_custom_call.1} parent=31 // pred_region
          %2916 = vst [vmem:[#allocation2] sm:$0xff] 0.0
          %2917 = vst [vmem:[#allocation2 + $0x8] sm:$0xff] 0.0
          %2918 = vst [vmem:[#allocation2 + $0x10] sm:$0xff] 0.0
          %2919 = vst [vmem:[#allocation2 + $0x18] sm:$0xff] 0.0
          %2920 = vst [vmem:[#allocation3] sm:$0xff] 0.0
          %2921 = vst [vmem:[#allocation3 + $0x8] sm:$0xff] 0.0
          %2922 = vst [vmem:[#allocation3 + $0x10] sm:$0xff] 0.0
          %2923 = vst [vmem:[#allocation3 + $0x18] sm:$0xff] 0.0
        $region44: #{tpu_custom_call.1} parent=31 // pred_fallthru
          _
        %v2924 = vld [vmem:[#allocation2] sm:$0xff]
        %v2925 = vld [vmem:[#allocation2 + $0x8] sm:$0xff]
        %v2926 = vld [vmem:[#allocation2 + $0x10] sm:$0xff]
        %v2927 = vld [vmem:[#allocation2 + $0x18] sm:$0xff]
        %v2928 = vmul.f32 %v2880, %v2238
        %v2929 = vmul.f32 %v2881, %v2245
        %v2930 = vmul.f32 %v2882, %v2252
        %v2931 = vmul.f32 %v2883, %v2259
        %v2932 = vmul.f32 %v2884, %v2266
        %v2933 = vmul.f32 %v2885, %v2273
        %v2934 = vmul.f32 %v2886, %v2280
        %v2935 = vmul.f32 %v2887, %v2287
        %v2936 = vmul.f32 %v2888, %v2294
        %v2937 = vmul.f32 %v2889, %v2301
        %v2938 = vmul.f32 %v2890, %v2308
        %v2939 = vmul.f32 %v2891, %v2315
        %v2940 = vmul.f32 %v2892, %v2322
        %v2941 = vmul.f32 %v2893, %v2329
        %v2942 = vmul.f32 %v2894, %v2336
        %v2943 = vmul.f32 %v2895, %v2343
        %v2944 = vmul.f32 %v2896, %v2350
        %v2945 = vmul.f32 %v2897, %v2357
        %v2946 = vmul.f32 %v2898, %v2364
        %v2947 = vmul.f32 %v2899, %v2371
        %v2948 = vmul.f32 %v2900, %v2378
        %v2949 = vmul.f32 %v2901, %v2385
        %v2950 = vmul.f32 %v2902, %v2392
        %v2951 = vmul.f32 %v2903, %v2399
        %v2952 = vmul.f32 %v2904, %v2406
        %v2953 = vmul.f32 %v2905, %v2413
        %v2954 = vmul.f32 %v2906, %v2420
        %v2955 = vmul.f32 %v2907, %v2427
        %v2956 = vmul.f32 %v2908, %v2434
        %v2957 = vmul.f32 %v2909, %v2441
        %v2958 = vmul.f32 %v2910, %v2448
        %v2959 = vmul.f32 %v2911, %v2455
        %v2992 = vrot.slane %v2929, 7
        %v2993 = vrot.slane %v2930, 6
        %v2994 = vrot.slane %v2931, 5
        %v2995 = vrot.slane %v2932, 4
        %v2996 = vrot.slane %v2933, 3
        %v2997 = vrot.slane %v2934, 2
        %v2998 = vrot.slane %v2935, 1
        %v2999 = vrot.slane %v2937, 7
        %v3000 = vrot.slane %v2938, 6
        %v3001 = vrot.slane %v2939, 5
        %v3002 = vrot.slane %v2940, 4
        %v3003 = vrot.slane %v2941, 3
        %v3004 = vrot.slane %v2942, 2
        %v3005 = vrot.slane %v2943, 1
        %v3006 = vrot.slane %v2945, 7
        %v3007 = vrot.slane %v2946, 6
        %v3008 = vrot.slane %v2947, 5
        %v3009 = vrot.slane %v2948, 4
        %v3010 = vrot.slane %v2949, 3
        %v3011 = vrot.slane %v2950, 2
        %v3012 = vrot.slane %v2951, 1
        %v3013 = vrot.slane %v2953, 7
        %v3014 = vrot.slane %v2954, 6
        %v3015 = vrot.slane %v2955, 5
        %v3016 = vrot.slane %v2956, 4
        %v3017 = vrot.slane %v2957, 3
        %v3018 = vrot.slane %v2958, 2
        %v3019 = vrot.slane %v2959, 1
        %vm3020 = vcmask 1040384
        %v3021 = vsel %vm3020, %v2928, %v2992
        %vm3022 = vcmask 1042434
        %v3023 = vsel %vm3022, %v2993, %v2994
        %vm3024 = vcmask 1041408
        %v3025 = vsel %vm3024, %v3021, %v3023
        %vm3026 = vcmask 1044484
        %v3027 = vsel %vm3026, %v2995, %v2996
        %vm3028 = vcmask 1046534
        %v3029 = vsel %vm3028, %v2997, %v2998
        %vm3030 = vcmask 1045508
        %v3031 = vsel %vm3030, %v3027, %v3029
        %v3032 = vsel %vm423, %v3025, %v3031
        %v3033 = vsel %vm3020, %v2936, %v2999
        %v3034 = vsel %vm3022, %v3000, %v3001
        %v3035 = vsel %vm3024, %v3033, %v3034
        %v3036 = vsel %vm3026, %v3002, %v3003
        %v3037 = vsel %vm3028, %v3004, %v3005
        %v3038 = vsel %vm3030, %v3036, %v3037
        %v3039 = vsel %vm423, %v3035, %v3038
        %v3040 = vsel %vm3020, %v2944, %v3006
        %v3041 = vsel %vm3022, %v3007, %v3008
        %v3042 = vsel %vm3024, %v3040, %v3041
        %v3043 = vsel %vm3026, %v3009, %v3010
        %v3044 = vsel %vm3028, %v3011, %v3012
        %v3045 = vsel %vm3030, %v3043, %v3044
        %v3046 = vsel %vm423, %v3042, %v3045
        %v3047 = vsel %vm3020, %v2952, %v3013
        %v3048 = vsel %vm3022, %v3014, %v3015
        %v3049 = vsel %vm3024, %v3047, %v3048
        %v3050 = vsel %vm3026, %v3016, %v3017
        %v3051 = vsel %vm3028, %v3018, %v3019
        %v3052 = vsel %vm3030, %v3050, %v3051
        %v3053 = vsel %vm423, %v3049, %v3052
        %v3058 = vadd.f32 %v2924, %v3032
        %v3059 = vadd.f32 %v2925, %v3039
        %v3060 = vadd.f32 %v2926, %v3046
        %v3061 = vadd.f32 %v2927, %v3053
        %3062 = vst [vmem:[#allocation2] sm:$0xff] %v3058
        %3063 = vst [vmem:[#allocation2 + $0x8] sm:$0xff] %v3059
        %3064 = vst [vmem:[#allocation2 + $0x10] sm:$0xff] %v3060
        %3065 = vst [vmem:[#allocation2 + $0x18] sm:$0xff] %v3061
        %v3066 = vld [vmem:[#allocation3] sm:$0xff]
        %v3067 = vld [vmem:[#allocation3 + $0x8] sm:$0xff]
        %v3068 = vld [vmem:[#allocation3 + $0x10] sm:$0xff]
        %v3069 = vld [vmem:[#allocation3 + $0x18] sm:$0xff]
        %v3102 = vrot.slane %v2881, 7
        %v3103 = vrot.slane %v2882, 6
        %v3104 = vrot.slane %v2883, 5
        %v3105 = vrot.slane %v2884, 4
        %v3106 = vrot.slane %v2885, 3
        %v3107 = vrot.slane %v2886, 2
        %v3108 = vrot.slane %v2887, 1
        %v3109 = vrot.slane %v2889, 7
        %v3110 = vrot.slane %v2890, 6
        %v3111 = vrot.slane %v2891, 5
        %v3112 = vrot.slane %v2892, 4
        %v3113 = vrot.slane %v2893, 3
        %v3114 = vrot.slane %v2894, 2
        %v3115 = vrot.slane %v2895, 1
        %v3116 = vrot.slane %v2897, 7
        %v3117 = vrot.slane %v2898, 6
        %v3118 = vrot.slane %v2899, 5
        %v3119 = vrot.slane %v2900, 4
        %v3120 = vrot.slane %v2901, 3
        %v3121 = vrot.slane %v2902, 2
        %v3122 = vrot.slane %v2903, 1
        %v3123 = vrot.slane %v2905, 7
        %v3124 = vrot.slane %v2906, 6
        %v3125 = vrot.slane %v2907, 5
        %v3126 = vrot.slane %v2908, 4
        %v3127 = vrot.slane %v2909, 3
        %v3128 = vrot.slane %v2910, 2
        %v3129 = vrot.slane %v2911, 1
        %v3130 = vsel %vm3020, %v2880, %v3102
        %v3131 = vsel %vm3022, %v3103, %v3104
        %v3132 = vsel %vm3024, %v3130, %v3131
        %v3133 = vsel %vm3026, %v3105, %v3106
        %v3134 = vsel %vm3028, %v3107, %v3108
        %v3135 = vsel %vm3030, %v3133, %v3134
        %v3136 = vsel %vm423, %v3132, %v3135
        %v3137 = vsel %vm3020, %v2888, %v3109
        %v3138 = vsel %vm3022, %v3110, %v3111
        %v3139 = vsel %vm3024, %v3137, %v3138
        %v3140 = vsel %vm3026, %v3112, %v3113
        %v3141 = vsel %vm3028, %v3114, %v3115
        %v3142 = vsel %vm3030, %v3140, %v3141
        %v3143 = vsel %vm423, %v3139, %v3142
        %v3144 = vsel %vm3020, %v2896, %v3116
        %v3145 = vsel %vm3022, %v3117, %v3118
        %v3146 = vsel %vm3024, %v3144, %v3145
        %v3147 = vsel %vm3026, %v3119, %v3120
        %v3148 = vsel %vm3028, %v3121, %v3122
        %v3149 = vsel %vm3030, %v3147, %v3148
        %v3150 = vsel %vm423, %v3146, %v3149
        %v3151 = vsel %vm3020, %v2904, %v3123
        %v3152 = vsel %vm3022, %v3124, %v3125
        %v3153 = vsel %vm3024, %v3151, %v3152
        %v3154 = vsel %vm3026, %v3126, %v3127
        %v3155 = vsel %vm3028, %v3128, %v3129
        %v3156 = vsel %vm3030, %v3154, %v3155
        %v3157 = vsel %vm423, %v3153, %v3156
        %v3162 = vadd.f32 %v3066, %v3136
        %v3163 = vadd.f32 %v3067, %v3143
        %v3164 = vadd.f32 %v3068, %v3150
        %v3165 = vadd.f32 %v3069, %v3157
        %3166 = vst [vmem:[#allocation3] sm:$0xff] %v3162
        %3167 = vst [vmem:[#allocation3 + $0x8] sm:$0xff] %v3163
        %3168 = vst [vmem:[#allocation3 + $0x10] sm:$0xff] %v3164
        %3169 = vst [vmem:[#allocation3 + $0x18] sm:$0xff] %v3165
        // Predicated region
        $region45: #{tpu_custom_call.1} parent=31 // pred_check
          %p3170 = pneg %p2912
        $region46: #{tpu_custom_call.1} parent=31 // pred_check_branch
          %3172 = sbr.rel (%p3170) target = $region48
        $region47: #{tpu_custom_call.1} parent=31 // pred_region
          %v3173 = vld [vmem:[#allocation2] sm:$0xff]
          %v3174 = vld [vmem:[#allocation2 + $0x8] sm:$0xff]
          %v3175 = vld [vmem:[#allocation2 + $0x10] sm:$0xff]
          %v3176 = vld [vmem:[#allocation2 + $0x18] sm:$0xff]
          %v3181 = vperm.slane %v3173, 0
          %v3182 = vperm.slane %v3173, 1
          %v3183 = vperm.slane %v3173, 2
          %v3184 = vperm.slane %v3173, 3
          %v3185 = vperm.slane %v3173, 4
          %v3186 = vperm.slane %v3173, 5
          %v3187 = vperm.slane %v3173, 6
          %v3188 = vperm.slane %v3173, 7
          %v3189 = vperm.slane %v3174, 0
          %v3190 = vperm.slane %v3174, 1
          %v3191 = vperm.slane %v3174, 2
          %v3192 = vperm.slane %v3174, 3
          %v3193 = vperm.slane %v3174, 4
          %v3194 = vperm.slane %v3174, 5
          %v3195 = vperm.slane %v3174, 6
          %v3196 = vperm.slane %v3174, 7
          %v3197 = vperm.slane %v3175, 0
          %v3198 = vperm.slane %v3175, 1
          %v3199 = vperm.slane %v3175, 2
          %v3200 = vperm.slane %v3175, 3
          %v3201 = vperm.slane %v3175, 4
          %v3202 = vperm.slane %v3175, 5
          %v3203 = vperm.slane %v3175, 6
          %v3204 = vperm.slane %v3175, 7
          %v3205 = vperm.slane %v3176, 0
          %v3206 = vperm.slane %v3176, 1
          %v3207 = vperm.slane %v3176, 2
          %v3208 = vperm.slane %v3176, 3
          %v3209 = vperm.slane %v3176, 4
          %v3210 = vperm.slane %v3176, 5
          %v3211 = vperm.slane %v3176, 6
          %v3212 = vperm.slane %v3176, 7
          %v3245 = vsel %vm3020, %v3181, 0.0
          %v3246 = vsel %vm3020, %v3182, 0.0
          %v3247 = vadd.f32 %v3245, %v3246
          %v3248 = vsel %vm3020, %v3183, 0.0
          %v3249 = vadd.f32 %v3247, %v3248
          %v3250 = vsel %vm3020, %v3184, 0.0
          %v3251 = vadd.f32 %v3249, %v3250
          %v3252 = vsel %vm3020, %v3185, 0.0
          %v3253 = vadd.f32 %v3251, %v3252
          %v3254 = vsel %vm3020, %v3186, 0.0
          %v3255 = vadd.f32 %v3253, %v3254
          %v3256 = vsel %vm3020, %v3187, 0.0
          %v3257 = vadd.f32 %v3255, %v3256
          %v3258 = vsel %vm3020, %v3188, 0.0
          %v3259 = vadd.f32 %v3257, %v3258
          %v3260 = vsel %vm3020, %v3189, 0.0
          %v3261 = vadd.f32 %v3259, %v3260
          %v3262 = vsel %vm3020, %v3190, 0.0
          %v3263 = vadd.f32 %v3261, %v3262
          %v3264 = vsel %vm3020, %v3191, 0.0
          %v3265 = vadd.f32 %v3263, %v3264
          %v3266 = vsel %vm3020, %v3192, 0.0
          %v3267 = vadd.f32 %v3265, %v3266
          %v3268 = vsel %vm3020, %v3193, 0.0
          %v3269 = vadd.f32 %v3267, %v3268
          %v3270 = vsel %vm3020, %v3194, 0.0
          %v3271 = vadd.f32 %v3269, %v3270
          %v3272 = vsel %vm3020, %v3195, 0.0
          %v3273 = vadd.f32 %v3271, %v3272
          %v3274 = vsel %vm3020, %v3196, 0.0
          %v3275 = vadd.f32 %v3273, %v3274
          %v3276 = vsel %vm3020, %v3197, 0.0
          %v3277 = vadd.f32 %v3275, %v3276
          %v3278 = vsel %vm3020, %v3198, 0.0
          %v3279 = vadd.f32 %v3277, %v3278
          %v3280 = vsel %vm3020, %v3199, 0.0
          %v3281 = vadd.f32 %v3279, %v3280
          %v3282 = vsel %vm3020, %v3200, 0.0
          %v3283 = vadd.f32 %v3281, %v3282
          %v3284 = vsel %vm3020, %v3201, 0.0
          %v3285 = vadd.f32 %v3283, %v3284
          %v3286 = vsel %vm3020, %v3202, 0.0
          %v3287 = vadd.f32 %v3285, %v3286
          %v3288 = vsel %vm3020, %v3203, 0.0
          %v3289 = vadd.f32 %v3287, %v3288
          %v3290 = vsel %vm3020, %v3204, 0.0
          %v3291 = vadd.f32 %v3289, %v3290
          %v3292 = vsel %vm3020, %v3205, 0.0
          %v3293 = vadd.f32 %v3291, %v3292
          %v3294 = vsel %vm3020, %v3206, 0.0
          %v3295 = vadd.f32 %v3293, %v3294
          %v3296 = vsel %vm3020, %v3207, 0.0
          %v3297 = vadd.f32 %v3295, %v3296
          %v3298 = vsel %vm3020, %v3208, 0.0
          %v3299 = vadd.f32 %v3297, %v3298
          %v3300 = vsel %vm3020, %v3209, 0.0
          %v3301 = vadd.f32 %v3299, %v3300
          %v3302 = vsel %vm3020, %v3210, 0.0
          %v3303 = vadd.f32 %v3301, %v3302
          %v3304 = vsel %vm3020, %v3211, 0.0
          %v3305 = vadd.f32 %v3303, %v3304
          %v3306 = vsel %vm3020, %v3212, 0.0
          %v3307 = vadd.f32 %v3305, %v3306
          %3308 = vadd.xlane.f32.xlu0 %v3307
          %v3309 = vpop.xlane.xlu0 %3308
          %v3310 = vrot.slane %v3309, 4
          %v3311 = vadd.f32 %v3309, %v3310
          %v3312 = vrot.slane %v3311, 2
          %v3313 = vadd.f32 %v3311, %v3312
          %v3314 = vrot.slane %v3313, 1
          %v3315 = vadd.f32 %v3313, %v3314
          %s3316 = vtos %v3315
          %v3317 = vstv %s3316
          %v3318 = vadd.f32 %v3317, 0.0
          %3319 = vst [vmem:[%s279] sm:$0xff] %v3318
          %v3320 = vld [vmem:[#allocation3] sm:$0xff]
          %v3321 = vld [vmem:[#allocation3 + $0x8] sm:$0xff]
          %v3322 = vld [vmem:[#allocation3 + $0x10] sm:$0xff]
          %v3323 = vld [vmem:[#allocation3 + $0x18] sm:$0xff]
          %v3328 = vperm.slane %v3320, 0
          %v3329 = vperm.slane %v3320, 1
          %v3330 = vperm.slane %v3320, 2
          %v3331 = vperm.slane %v3320, 3
          %v3332 = vperm.slane %v3320, 4
          %v3333 = vperm.slane %v3320, 5
          %v3334 = vperm.slane %v3320, 6
          %v3335 = vperm.slane %v3320, 7
          %v3336 = vperm.slane %v3321, 0
          %v3337 = vperm.slane %v3321, 1
          %v3338 = vperm.slane %v3321, 2
          %v3339 = vperm.slane %v3321, 3
          %v3340 = vperm.slane %v3321, 4
          %v3341 = vperm.slane %v3321, 5
          %v3342 = vperm.slane %v3321, 6
          %v3343 = vperm.slane %v3321, 7
          %v3344 = vperm.slane %v3322, 0
          %v3345 = vperm.slane %v3322, 1
          %v3346 = vperm.slane %v3322, 2
          %v3347 = vperm.slane %v3322, 3
          %v3348 = vperm.slane %v3322, 4
          %v3349 = vperm.slane %v3322, 5
          %v3350 = vperm.slane %v3322, 6
          %v3351 = vperm.slane %v3322, 7
          %v3352 = vperm.slane %v3323, 0
          %v3353 = vperm.slane %v3323, 1
          %v3354 = vperm.slane %v3323, 2
          %v3355 = vperm.slane %v3323, 3
          %v3356 = vperm.slane %v3323, 4
          %v3357 = vperm.slane %v3323, 5
          %v3358 = vperm.slane %v3323, 6
          %v3359 = vperm.slane %v3323, 7
          %v3392 = vsel %vm3020, %v3328, 0.0
          %v3393 = vsel %vm3020, %v3329, 0.0
          %v3394 = vadd.f32 %v3392, %v3393
          %v3395 = vsel %vm3020, %v3330, 0.0
          %v3396 = vadd.f32 %v3394, %v3395
          %v3397 = vsel %vm3020, %v3331, 0.0
          %v3398 = vadd.f32 %v3396, %v3397
          %v3399 = vsel %vm3020, %v3332, 0.0
          %v3400 = vadd.f32 %v3398, %v3399
          %v3401 = vsel %vm3020, %v3333, 0.0
          %v3402 = vadd.f32 %v3400, %v3401
          %v3403 = vsel %vm3020, %v3334, 0.0
          %v3404 = vadd.f32 %v3402, %v3403
          %v3405 = vsel %vm3020, %v3335, 0.0
          %v3406 = vadd.f32 %v3404, %v3405
          %v3407 = vsel %vm3020, %v3336, 0.0
          %v3408 = vadd.f32 %v3406, %v3407
          %v3409 = vsel %vm3020, %v3337, 0.0
          %v3410 = vadd.f32 %v3408, %v3409
          %v3411 = vsel %vm3020, %v3338, 0.0
          %v3412 = vadd.f32 %v3410, %v3411
          %v3413 = vsel %vm3020, %v3339, 0.0
          %v3414 = vadd.f32 %v3412, %v3413
          %v3415 = vsel %vm3020, %v3340, 0.0
          %v3416 = vadd.f32 %v3414, %v3415
          %v3417 = vsel %vm3020, %v3341, 0.0
          %v3418 = vadd.f32 %v3416, %v3417
          %v3419 = vsel %vm3020, %v3342, 0.0
          %v3420 = vadd.f32 %v3418, %v3419
          %v3421 = vsel %vm3020, %v3343, 0.0
          %v3422 = vadd.f32 %v3420, %v3421
          %v3423 = vsel %vm3020, %v3344, 0.0
          %v3424 = vadd.f32 %v3422, %v3423
          %v3425 = vsel %vm3020, %v3345, 0.0
          %v3426 = vadd.f32 %v3424, %v3425
          %v3427 = vsel %vm3020, %v3346, 0.0
          %v3428 = vadd.f32 %v3426, %v3427
          %v3429 = vsel %vm3020, %v3347, 0.0
          %v3430 = vadd.f32 %v3428, %v3429
          %v3431 = vsel %vm3020, %v3348, 0.0
          %v3432 = vadd.f32 %v3430, %v3431
          %v3433 = vsel %vm3020, %v3349, 0.0
          %v3434 = vadd.f32 %v3432, %v3433
          %v3435 = vsel %vm3020, %v3350, 0.0
          %v3436 = vadd.f32 %v3434, %v3435
          %v3437 = vsel %vm3020, %v3351, 0.0
          %v3438 = vadd.f32 %v3436, %v3437
          %v3439 = vsel %vm3020, %v3352, 0.0
          %v3440 = vadd.f32 %v3438, %v3439
          %v3441 = vsel %vm3020, %v3353, 0.0
          %v3442 = vadd.f32 %v3440, %v3441
          %v3443 = vsel %vm3020, %v3354, 0.0
          %v3444 = vadd.f32 %v3442, %v3443
          %v3445 = vsel %vm3020, %v3355, 0.0
          %v3446 = vadd.f32 %v3444, %v3445
          %v3447 = vsel %vm3020, %v3356, 0.0
          %v3448 = vadd.f32 %v3446, %v3447
          %v3449 = vsel %vm3020, %v3357, 0.0
          %v3450 = vadd.f32 %v3448, %v3449
          %v3451 = vsel %vm3020, %v3358, 0.0
          %v3452 = vadd.f32 %v3450, %v3451
          %v3453 = vsel %vm3020, %v3359, 0.0
          %v3454 = vadd.f32 %v3452, %v3453
          %3455 = vadd.xlane.f32.xlu0 %v3454
          %v3456 = vpop.xlane.xlu0 %3455
          %v3457 = vrot.slane %v3456, 4
          %v3458 = vadd.f32 %v3456, %v3457
          %v3459 = vrot.slane %v3458, 2
          %v3460 = vadd.f32 %v3458, %v3459
          %v3461 = vrot.slane %v3460, 1
          %v3462 = vadd.f32 %v3460, %v3461
          %s3463 = vtos %v3462
          %v3464 = vstv %s3463
          %v3465 = vadd.f32 %v3464, 0.0
          %3466 = vst [vmem:[%s286] sm:$0xff] %v3465
        $region48: #{tpu_custom_call.1} parent=31 // pred_fallthru
          _
        %s3467 = sand.u32 %s125, 1
        %s3468 = scalar_lea.sflag [#allocation6], %s3467
        %s3469 = sand.u32 %s125, 1
        %s3470 = smul.addr %s3469, 8
        %s3471 = scalar_lea.vmem [#allocation9], %s3470
        %s3472 = sand.u32 %s151, 1
        %s3473 = scalar_lea.sflag [#allocation11], %s3472
        %s3474 = sand.u32 %s151, 1
        %s3475 = smul.addr %s3474, 8
        %s3476 = scalar_lea.vmem [#allocation10], %s3475
        // Predicated region
        $region49: #{tpu_custom_call.1} parent=31 // pred_check
          %p3477 = pneg %p135
        $region50: #{tpu_custom_call.1} parent=31 // pred_check_branch
          %3479 = sbr.rel (%p3477) target = $region52
        $region51: #{tpu_custom_call.1} parent=31 // pred_region
          %3481 = vsyncadd %s3468, 0
          %s3482 = smul.addr %s32, 8
          %s3483 = scalar_lea.hbm %s3, %s3482
          %s3485 = sshll.u32 %s3471, 4
          %s3486 = int_to_ptr.vmem [resolvable:$true] %s3485
          %s3487 = sshll.u32 %s3483, 4
          %s3488 = int_to_ptr.hbm [resolvable:$true] %s3487
          %3490 = dma.vmem_to_hbm [thread:$0]  %s3486, 128, %s3488, %s3468
        $region52: #{tpu_custom_call.1} parent=31 // pred_fallthru
          _
        // Predicated region
        $region53: #{tpu_custom_call.1} parent=31 // pred_check
          %p3491 = pneg %p161
        $region54: #{tpu_custom_call.1} parent=31 // pred_check_branch
          %3493 = sbr.rel (%p3491) target = $region56
        $region55: #{tpu_custom_call.1} parent=31 // pred_region
          %3495 = vsyncadd %s3473, 0
          %s3496 = smul.addr %s32, 8
          %s3497 = scalar_lea.hbm %s4, %s3496
          %s3499 = sshll.u32 %s3476, 4
          %s3500 = int_to_ptr.vmem [resolvable:$true] %s3499
          %s3501 = sshll.u32 %s3497, 4
          %s3502 = int_to_ptr.hbm [resolvable:$true] %s3501
          %3504 = dma.vmem_to_hbm [thread:$0]  %s3500, 128, %s3502, %s3473
        $region56: #{tpu_custom_call.1} parent=31 // pred_fallthru
          _
      $region32: #{tpu_custom_call.1} parent=5 // pred_fallthru
        _
      %p3505 = scmp.le.s32.totalorder 2, %s23
      // Predicated region
      $region57: #{tpu_custom_call.1} parent=5 // pred_check
        %p3506 = pneg %p3505
      $region58: #{tpu_custom_call.1} parent=5 // pred_check_branch
        %3508 = sbr.rel (%p3506) target = $region60
      $region59: #{tpu_custom_call.1} parent=5 // pred_region
        %s3509 = ssub.s32 %s23, 2
        // Predicated region
        $region61: #{tpu_custom_call.1} parent=59 // pred_check
          %p3510 = pneg %p141
        $region62: #{tpu_custom_call.1} parent=59 // pred_check_branch
          %3512 = sbr.rel (%p3510) target = $region64
        $region63: #{tpu_custom_call.1} parent=59 // pred_region
          %s3513 = sand.u32 %s126, 1
          %s3514 = scalar_lea.sflag [#allocation6], %s3513
          %s3515 = sand.u32 %s126, 1
          %s3516 = smul.addr %s3515, 8
          %s3517 = scalar_lea.vmem [#allocation9], %s3516
          %3519 = dma.done %s3514, 128
        $region64: #{tpu_custom_call.1} parent=59 // pred_fallthru
          _
        // Predicated region
        $region65: #{tpu_custom_call.1} parent=59 // pred_check
          %p3520 = pneg %p167
        $region66: #{tpu_custom_call.1} parent=59 // pred_check_branch
          %3522 = sbr.rel (%p3520) target = $region68
        $region67: #{tpu_custom_call.1} parent=59 // pred_region
          %s3523 = sand.u32 %s152, 1
          %s3524 = scalar_lea.sflag [#allocation11], %s3523
          %s3525 = sand.u32 %s152, 1
          %s3526 = smul.addr %s3525, 8
          %s3527 = scalar_lea.vmem [#allocation10], %s3526
          %3529 = dma.done %s3524, 128
        $region68: #{tpu_custom_call.1} parent=59 // pred_fallthru
          _
      $region60: #{tpu_custom_call.1} parent=5 // pred_fallthru
        _
    $region6: #{tpu_custom_call.1} parent=1 // loop_footer
      %s27 = sadd.s32 1, %s23
    $region7: #{tpu_custom_call.1} parent=1 // loop_footer_branch
      %22 = sbr.rel target = $region3
    $region8: #{tpu_custom_call.1} parent=1 // loop_exit
      _
    %3530 = vsyncpa [#allocation5], 1
    %s3531 = scalar_lea.sflag [#allocation5], 1
    %3532 = vsyncpa %s3531, 1
    %3533 = vsyncpa [#allocation8], 1
    %s3534 = scalar_lea.sflag [#allocation8], 1
    %3535 = vsyncpa %s3534, 1
    %3536 = vsyncpa [#allocation6], 1
    %s3537 = scalar_lea.sflag [#allocation6], 1
    %3538 = vsyncpa %s3537, 1
    %3539 = vsyncpa [#allocation11], 1
    %s3540 = scalar_lea.sflag [#allocation11], 1
    %3541 = vsyncpa %s3540, 1

</llo_original>
